<compile_context>
chip_gen: v6e
topology: v6e:2x2x1
jax: 0.10.0
libtpu: 0.0.40
codegen_flags: <defaults>
</compile_context>

<pallas_src>
import math
import functools

import jax
import jax.numpy as jnp
from jax.experimental import pallas as pl
from jax.experimental.pallas import tpu as pltpu

EPS = 1e-5  # PyTorch nn.LayerNorm default eps


def _layer_norm(x, g, b):
    mu = jnp.mean(x, axis=-1, keepdims=True)
    var = jnp.mean(jnp.square(x - mu), axis=-1, keepdims=True)
    return (x - mu) * jax.lax.rsqrt(var + EPS) * g + b


# ----------------------------- fused encoder-stack kernel -----------------------------
# grid = (streams, layers); layers innermost & "arbitrary"; activations resident in o_ref.

def _encoder_stack_kernel(x_ref, m_ref, wqkvr_ref, fcw_ref, ln1g_ref, ln1b_ref,
                          w1_ref, w2_ref, ln2g_ref, ln2b_ref, o_ref, ctx_ref,
                          *, n_batch, seq_len, n_heads, hid_dim, scale):
    B, L = n_batch, seq_len
    D = o_ref.shape[-1]
    Hhd = n_heads * hid_dim

    # First layer of this stream group: load the input slab into the resident output block.
    @pl.when(pl.program_id(1) == 0)
    def _():
        o_ref[...] = x_ref[...]

    x = o_ref[0]                                            # (B*L, D) float32, resident

    # fc0 (residual) + Q + K + V as one (B*L, D) @ (D, D + 3*H*hd) matmul (bf16 in, f32 acc)
    proj = jnp.dot(x.astype(jnp.bfloat16), wqkvr_ref[0, 0],
                   preferred_element_type=jnp.float32)      # (B*L, D + 3*H*hd)

    residual = proj[:, :D]                                  # fc0(x)
    q = proj[:, D:D + Hhd].astype(jnp.bfloat16)
    k = proj[:, D + Hhd:D + 2 * Hhd].astype(jnp.bfloat16)
    v = proj[:, D + 2 * Hhd:D + 3 * Hhd].astype(jnp.bfloat16)

    mask = m_ref[0]                                         # (B, L), 1.0 where key is padding

    # Tiny per-(batch, head) attention; contexts land in lane/sublane slices of ctx_ref so
    # the output projection below is a single (B*L, H*hd) @ (H*hd, D) matmul.
    for b in range(B):
        rows = slice(b * L, (b + 1) * L)
        key_pad = mask[b:b + 1, :] > 0.5                    # (1, L) broadcast over queries
        for h in range(n_heads):
            cols = slice(h * hid_dim, (h + 1) * hid_dim)
            qh, kh, vh = q[rows, cols], k[rows, cols], v[rows, cols]
            s = jax.lax.dot_general(qh, kh, (((1,), (1,)), ((), ())),
                                    preferred_element_type=jnp.float32) * scale
            s = jnp.where(key_pad, jnp.float32(-1e9), s)    # masked_fill_(mask, -1e9)
            e = jnp.exp(s - jnp.max(s, axis=-1, keepdims=True))
            p = e * pl.reciprocal(jnp.sum(e, axis=-1, keepdims=True), approx=True)
            ctx_ref[rows, cols] = jnp.dot(p.astype(jnp.bfloat16), vh,
                                          preferred_element_type=jnp.float32)

    attn_out = residual + jnp.dot(ctx_ref[...].astype(jnp.bfloat16), fcw_ref[0, 0],
                                  preferred_element_type=jnp.float32)

    # LayerNorm(attention_output + residual)
    y = _layer_norm(attn_out, ln1g_ref[0, 0], ln1b_ref[0, 0])

    # PoswiseFeedForwardNet: LayerNorm(W2 relu(W1 y) + y)
    h1 = jnp.maximum(jnp.dot(y.astype(jnp.bfloat16), w1_ref[0, 0],
                             preferred_element_type=jnp.float32), 0.0)
    z = jnp.dot(h1.astype(jnp.bfloat16), w2_ref[0, 0],
                preferred_element_type=jnp.float32) + y
    o_ref[0] = _layer_norm(z, ln2g_ref[0, 0], ln2b_ref[0, 0])


def pallas_encoder_stack(x, pad_mask, p, *, n_batch, seq_len, n_heads, hid_dim):
    """x: (S, B*L, D) stacked stream inputs; pad_mask: (S, B, L); p: stacked weights (S, n_layers, ...)."""
    S, BL, D = x.shape
    n_layers = p['w_qkvr'].shape[1]
    P = p['w_qkvr'].shape[-1]
    Hhd = n_heads * hid_dim
    F = p['ffn_w1'].shape[-1]

    kern = functools.partial(_encoder_stack_kernel, n_batch=n_batch, seq_len=seq_len,
                             n_heads=n_heads, hid_dim=hid_dim,
                             scale=1.0 / math.sqrt(hid_dim))

    def wspec(a, b):   # per-(stream, layer) weight block, full last two dims
        return pl.BlockSpec((1, 1, a, b), lambda s, l: (s, l, 0, 0))

    return pl.pallas_call(
        kern,
        grid=(S, n_layers),
        in_specs=[
            pl.BlockSpec((1, BL, D), lambda s, l: (s, 0, 0)),           # x (read at layer 0)
            pl.BlockSpec((1, n_batch, seq_len), lambda s, l: (s, 0, 0)),  # key-pad mask
            wspec(D, P),                                                 # [fc0 | Wq | Wk | Wv]
            wspec(Hhd, D),                                               # fc
            wspec(1, D), wspec(1, D),                                    # ln1 gamma / beta
            wspec(D, F), wspec(F, D),                                    # ffn W1 / W2
            wspec(1, D), wspec(1, D),                                    # ln2 gamma / beta
        ],
        # block index independent of the layer axis -> activations stay resident across layers
        out_specs=pl.BlockSpec((1, BL, D), lambda s, l: (s, 0, 0)),
        out_shape=jax.ShapeDtypeStruct((S, BL, D), jnp.float32),
        scratch_shapes=[pltpu.VMEM((BL, Hhd), jnp.float32)],             # per-layer attention ctx
        compiler_params=pltpu.CompilerParams(
            dimension_semantics=("parallel", "arbitrary")),
    )(x, pad_mask, p['w_qkvr'], p['fc_w'], p['ln1_g'], p['ln1_b'],
      p['ffn_w1'], p['ffn_w2'], p['ln2_g'], p['ln2_b'])


# ----------------------------- fused prediction-head kernel -----------------------------

def _head_kernel(e_ref, w0_ref, g0_ref, b0_ref, w1_ref, g1_ref, b1_ref, w2_ref, o_ref,
                 *, d_model, valid_lens):
    """Whole batch: seq-sums of [drugS1, drugS2, tarS1, tarS2], fc0->LN->ReLU, fc1->LN->ReLU, fc2."""
    D = d_model
    h0 = None
    # concat([sum(drugS1), sum(drugS2), sum(tarS1), sum(tarS2)]) @ w0, with the concat folded
    # into a split-weight matmul (no concat materialized).
    for i, vl in enumerate(valid_lens):
        blk = e_ref[i]                                          # (B, L, D)
        si = jnp.sum(blk[:, :vl, :], axis=1)                    # (B, D) sum over valid seq prefix
        c = jnp.dot(si.astype(jnp.bfloat16), w0_ref[i * D:(i + 1) * D, :],
                    preferred_element_type=jnp.float32)
        h0 = c if h0 is None else h0 + c

    h0 = jnp.maximum(_layer_norm(h0, g0_ref[...], b0_ref[...]), 0.0)
    h1 = jnp.dot(h0.astype(jnp.bfloat16), w1_ref[...], preferred_element_type=jnp.float32)
    h1 = jnp.maximum(_layer_norm(h1, g1_ref[...], b1_ref[...]), 0.0)
    o_ref[...] = jnp.dot(h1, w2_ref[...], preferred_element_type=jnp.float32)


def pallas_head(enc12, params, *, valid_lens, d_model):
    """enc12: (4, B, L, D) = [drugS1, drugS2, tarS1, tarS2] encoder outputs."""
    S, B, L, D = enc12.shape
    C16 = params['fc0_w'].shape[1]
    C4 = params['fc1_w'].shape[1]
    n_out = params['fc2_w'].shape[1]

    kern = functools.partial(_head_kernel, d_model=d_model, valid_lens=valid_lens)
    return pl.pallas_call(
        kern,
        grid=(1,),
        in_specs=[
            pl.BlockSpec((S, B, L, D), lambda i: (0, 0, 0, 0)),
            pl.BlockSpec((4 * D, C16), lambda i: (0, 0)),
            pl.BlockSpec((1, C16), lambda i: (0, 0)),
            pl.BlockSpec((1, C16), lambda i: (0, 0)),
            pl.BlockSpec((C16, C4), lambda i: (0, 0)),
            pl.BlockSpec((1, C4), lambda i: (0, 0)),
            pl.BlockSpec((1, C4), lambda i: (0, 0)),
            pl.BlockSpec((C4, n_out), lambda i: (0, 0)),
        ],
        out_specs=pl.BlockSpec((B, n_out), lambda i: (0, 0)),
        out_shape=jax.ShapeDtypeStruct((B, n_out), jnp.float32),
    )(enc12, params['fc0_w'], params['fc0_g'], params['fc0_b'],
      params['fc1_w'], params['fc1_g'], params['fc1_b'], params['fc2_w'])


# ----------------------------- parameter construction (pre-stacked) -----------------------------

def _init_linear(key, din, dout, scale=0.05):
    return scale * jax.random.normal(key, (din, dout), jnp.float32)


def init_layer_params(key, d_model, n_heads, d_ff, hid_dim):
    ks = jax.random.split(key, 7)
    fc0_w = _init_linear(ks[0], d_model, d_model)
    wq = _init_linear(ks[1], d_model, n_heads * hid_dim)
    wk = _init_linear(ks[2], d_model, n_heads * hid_dim)
    wv = _init_linear(ks[3], d_model, n_heads * hid_dim)
    return dict(
        w_qkvr=jnp.concatenate([fc0_w, wq, wk, wv], axis=1).astype(jnp.bfloat16),
        fc_w=_init_linear(ks[4], n_heads * hid_dim, d_model).astype(jnp.bfloat16),
        ln1_g=jnp.ones((1, d_model), jnp.float32),
        ln1_b=jnp.zeros((1, d_model), jnp.float32),
        ffn_w1=_init_linear(ks[5], d_model, d_ff).astype(jnp.bfloat16),
        ffn_w2=_init_linear(ks[6], d_ff, d_model).astype(jnp.bfloat16),
        ln2_g=jnp.ones((1, d_model), jnp.float32),
        ln2_b=jnp.zeros((1, d_model), jnp.float32),
    )


def _stack(list_of_trees):
    return jax.tree_util.tree_map(lambda *xs: jnp.stack(xs, axis=0), *list_of_trees)


def init_encoder_streams(key, vocab_size, d_model, n_layers, n_heads, d_ff, hid_dim):
    k_emb, k0, k1, k2 = jax.random.split(key, 4)

    def stream(k):   # dict of (n_layers, ...) arrays
        return _stack([init_layer_params(kk, d_model, n_heads, d_ff, hid_dim)
                       for kk in jax.random.split(k, n_layers)])

    return dict(emb=0.1 * jax.random.normal(k_emb, (vocab_size, d_model), jnp.float32),
                s0=stream(k0), s1=stream(k1), s2=stream(k2))


def init_mrbdta_params(key, n_output, d_model, n_layers, n_heads, d_ff, hid_dim):
    kD, kT, k0, k1, k2 = jax.random.split(key, 5)
    encD = init_encoder_streams(kD, 65 + 1, d_model, n_layers, n_heads, d_ff, hid_dim)
    encT = init_encoder_streams(kT, 25 + 1, d_model, n_layers, n_heads, d_ff, hid_dim)
    return dict(
        embD=encD['emb'], embT=encT['emb'],
        # pre-stacked once (outside the forward): (S, n_layers, ...) weight blocks
        stream0=_stack([encD['s0'], encT['s0']]),                       # S = 2
        stream12=_stack([encD['s1'], encD['s2'], encT['s1'], encT['s2']]),  # S = 4
        fc0_w=_init_linear(k0, 4 * d_model, 16 * d_model).astype(jnp.bfloat16),
        fc0_g=jnp.ones((1, 16 * d_model), jnp.float32),
        fc0_b=jnp.zeros((1, 16 * d_model), jnp.float32),
        fc1_w=_init_linear(k1, 16 * d_model, 4 * d_model).astype(jnp.bfloat16),
        fc1_g=jnp.ones((1, 4 * d_model), jnp.float32),
        fc1_b=jnp.zeros((1, 4 * d_model), jnp.float32),
        fc2_w=_init_linear(k2, 4 * d_model, n_output),
    )


# ----------------------------- model glue (plain JAX) -----------------------------

def make_pe(seq_len, d_model):
    pos = jnp.arange(seq_len, dtype=jnp.float32)[:, None]
    div = jnp.exp(jnp.arange(0, d_model, 2, dtype=jnp.float32) * (-math.log(10000.0) / d_model))
    pe = jnp.zeros((seq_len, d_model), jnp.float32)
    pe = pe.at[:, 0::2].set(jnp.sin(pos * div))
    pe = pe.at[:, 1::2].set(jnp.cos(pos * div))
    return pe


def _embed(tokens, emb, d_model, l_pad):
    """Embedding + positional encoding (dropout = eval identity) + key-padding mask."""
    B, L = tokens.shape
    if L < l_pad:
        tokens = jnp.pad(tokens, ((0, 0), (0, l_pad - L)))   # pad token id 0
    x = jnp.take(emb, tokens, axis=0) + make_pe(l_pad, d_model)[None, :, :]
    pad = (tokens == 0).astype(jnp.float32)                  # (B, l_pad) key-pad mask
    return x.reshape(B, l_pad * d_model).reshape(B * l_pad, d_model).reshape(B * l_pad, d_model), \
        x.reshape(B * l_pad, d_model), pad


def mrbdta_forward(params, drug_tokens, tar_tokens, *, d_model, n_heads, hid_dim):
    B, Ld = drug_tokens.shape
    _, Lt = tar_tokens.shape
    L = max(Ld, Lt)                                           # common padded length

    _, xd, md = _embed(drug_tokens, params['embD'], d_model, L)   # (B*L, D), (B, L)
    _, xt, mt = _embed(tar_tokens, params['embT'], d_model, L)

    # phase 1: stream0 of both encoders in one launch (S = 2)
    x1 = jnp.stack([xd, xt], axis=0)                          # (2, B*L, D)
    m1 = jnp.stack([md, mt], axis=0)                          # (2, B, L)
    s0 = pallas_encoder_stack(x1, m1, params['stream0'],
                              n_batch=B, seq_len=L, n_heads=n_heads, hid_dim=hid_dim)

    # phase 2: streams 1 & 2 of both encoders in one launch (S = 4)
    base_d = s0[0] + xd
    base_t = s0[1] + xt
    x2 = jnp.stack([base_d, base_d, base_t, base_t], axis=0)  # (4, B*L, D)
    m2 = jnp.stack([md, md, mt, mt], axis=0)                  # (4, B, L)
    s12 = pallas_encoder_stack(x2, m2, params['stream12'],
                               n_batch=B, seq_len=L, n_heads=n_heads, hid_dim=hid_dim)

    # prediction head: seq-sum (valid prefixes only), concat-as-split-matmul, fc0/fc1/fc2
    enc12 = s12.reshape(4, B, L, d_model)                     # [drugS1, drugS2, tarS1, tarS2]
    return pallas_head(enc12, params, valid_lens=(Ld, Ld, Lt, Lt), d_model=d_model)


# ----------------------------- demo -----------------------------

if __name__ == "__main__":
    # small config consistent with the module's constructor
    d_model, n_layers, n_heads, d_ff, hid_dim, n_output = 32, 2, 2, 64, 16, 1
    B, L_drug, L_tar = 2, 8, 16

    key = jax.random.PRNGKey(0)
    kp, kd, kt = jax.random.split(key, 3)
    params = init_mrbdta_params(kp, n_output, d_model, n_layers, n_heads, d_ff, hid_dim)

    # token ids; 0 is the padding index (exercises get_attn_pad_mask)
    drug_tokens = jax.random.randint(kd, (B, L_drug), 1, 66, dtype=jnp.int32)
    drug_tokens = drug_tokens.at[1, -2:].set(0)
    tar_tokens = jax.random.randint(kt, (B, L_tar), 1, 26, dtype=jnp.int32)
    tar_tokens = tar_tokens.at[0, -3:].set(0)

    fwd = jax.jit(functools.partial(mrbdta_forward,
                                    d_model=d_model, n_heads=n_heads, hid_dim=hid_dim))
    out = fwd(params, drug_tokens, tar_tokens)
    jax.block_until_ready(out)
    assert out.shape == (B, n_output) and out.dtype == jnp.float32
    assert bool(jnp.all(jnp.isfinite(out)))
    print("KERNEL_OK")
</pallas_src>

<mosaic_0001>
module attributes {stable_mosaic.version = 11 : i64} {
  func.func @_encoder_stack_kernel(%arg0: i32, %arg1: i32, %arg2: memref<1x32x32xf32, #tpu.memory_space<vmem>>, %arg3: memref<1x2x16xf32, #tpu.memory_space<vmem>>, %arg4: memref<1x1x32x128xbf16, #tpu.memory_space<vmem>>, %arg5: memref<1x1x32x32xbf16, #tpu.memory_space<vmem>>, %arg6: memref<1x1x1x32xf32, #tpu.memory_space<vmem>>, %arg7: memref<1x1x1x32xf32, #tpu.memory_space<vmem>>, %arg8: memref<1x1x32x64xbf16, #tpu.memory_space<vmem>>, %arg9: memref<1x1x64x32xbf16, #tpu.memory_space<vmem>>, %arg10: memref<1x1x1x32xf32, #tpu.memory_space<vmem>>, %arg11: memref<1x1x1x32xf32, #tpu.memory_space<vmem>>, %arg12: memref<1x32x32xf32, #tpu.memory_space<vmem>>, %arg13: memref<32x32xf32, #tpu.memory_space<vmem>>) attributes {dimension_semantics = [#tpu.dimension_semantics<parallel>, #tpu.dimension_semantics<arbitrary>], iteration_bounds = array<i64: 2, 2>, scalar_prefetch = 0 : i64, scratch_operands = 1 : i64, tpu.core_type = #tpu.core_type<tc>, window_params = [{transform_indices = @transform_0, window_bounds = array<i64: 1, 32, 32>}, {transform_indices = @transform_1, window_bounds = array<i64: 1, 2, 16>}, {transform_indices = @transform_2, window_bounds = array<i64: 1, 1, 32, 128>}, {transform_indices = @transform_3, window_bounds = array<i64: 1, 1, 32, 32>}, {transform_indices = @transform_4, window_bounds = array<i64: 1, 1, 1, 32>}, {transform_indices = @transform_5, window_bounds = array<i64: 1, 1, 1, 32>}, {transform_indices = @transform_6, window_bounds = array<i64: 1, 1, 32, 64>}, {transform_indices = @transform_7, window_bounds = array<i64: 1, 1, 64, 32>}, {transform_indices = @transform_8, window_bounds = array<i64: 1, 1, 1, 32>}, {transform_indices = @transform_9, window_bounds = array<i64: 1, 1, 1, 32>}, {transform_indices = @transform_10, window_bounds = array<i64: 1, 32, 32>}]} {
    %c0_i32 = arith.constant 0 : i32
    %0 = arith.cmpi eq, %arg1, %c0_i32 : i32
    %1 = arith.extui %0 : i1 to i32
    %c0_i32_0 = arith.constant 0 : i32
    %2 = arith.cmpi ne, %1, %c0_i32_0 : i32
    scf.if %2 {
      %c0_90 = arith.constant 0 : index
      %c0_91 = arith.constant 0 : index
      %c0_92 = arith.constant 0 : index
      %188 = vector.load %arg2[%c0_90, %c0_91, %c0_92] : memref<1x32x32xf32, #tpu.memory_space<vmem>>, vector<1x32x32xf32>
      %c0_93 = arith.constant 0 : index
      %c0_94 = arith.constant 0 : index
      %c0_95 = arith.constant 0 : index
      %189 = vector.load %arg12[%c0_93, %c0_94, %c0_95] : memref<1x32x32xf32, #tpu.memory_space<vmem>>, vector<1x32x32xf32>
      tpu.vector_store %arg12[%c0_93, %c0_94, %c0_95], %188 {strides = array<i32>} : memref<1x32x32xf32, #tpu.memory_space<vmem>>, vector<1x32x32xf32>,
    } else {
    }
    %c0 = arith.constant 0 : index
    %c0_1 = arith.constant 0 : index
    %c0_2 = arith.constant 0 : index
    %3 = vector.load %arg12[%c0, %c0_1, %c0_2] : memref<1x32x32xf32, #tpu.memory_space<vmem>>, vector<1x32x32xf32>
    %4 = vector.shape_cast %3 : vector<1x32x32xf32> to vector<32x32xf32>
    %5 = arith.truncf %4 : vector<32x32xf32> to vector<32x32xbf16>
    %c0_3 = arith.constant 0 : index
    %c0_4 = arith.constant 0 : index
    %c0_5 = arith.constant 0 : index
    %c0_6 = arith.constant 0 : index
    %6 = vector.load %arg4[%c0_3, %c0_4, %c0_5, %c0_6] : memref<1x1x32x128xbf16, #tpu.memory_space<vmem>>, vector<1x1x32x128xbf16>
    %7 = vector.shape_cast %6 : vector<1x1x32x128xbf16> to vector<32x128xbf16>
    %cst = arith.constant dense<0.000000e+00> : vector<32x128xf32>
    %8 = tpu.matmul %5, %7, %cst {dimension_numbers = #tpu.dot_dimension_numbers<[1], [0], [0], [1], [0, 0, 1, 1], [], []>} : vector<32x32xbf16>, vector<32x128xbf16>, vector<32x128xf32> -> vector<32x128xf32>
    %9 = vector.extract_strided_slice %8 {offsets = [0, 0], sizes = [32, 32], strides = [1, 1]} : vector<32x128xf32> to vector<32x32xf32>
    %10 = vector.extract_strided_slice %8 {offsets = [0, 32], sizes = [32, 32], strides = [1, 1]} : vector<32x128xf32> to vector<32x32xf32>
    %11 = arith.truncf %10 : vector<32x32xf32> to vector<32x32xbf16>
    %12 = vector.extract_strided_slice %8 {offsets = [0, 64], sizes = [32, 32], strides = [1, 1]} : vector<32x128xf32> to vector<32x32xf32>
    %13 = arith.truncf %12 : vector<32x32xf32> to vector<32x32xbf16>
    %14 = vector.extract_strided_slice %8 {offsets = [0, 96], sizes = [32, 32], strides = [1, 1]} : vector<32x128xf32> to vector<32x32xf32>
    %15 = arith.truncf %14 : vector<32x32xf32> to vector<32x32xbf16>
    %c0_7 = arith.constant 0 : index
    %c0_8 = arith.constant 0 : index
    %c0_9 = arith.constant 0 : index
    %16 = vector.load %arg3[%c0_7, %c0_8, %c0_9] : memref<1x2x16xf32, #tpu.memory_space<vmem>>, vector<1x2x16xf32>
    %17 = vector.shape_cast %16 : vector<1x2x16xf32> to vector<2x16xf32>
    %18 = vector.extract_strided_slice %17 {offsets = [0, 0], sizes = [1, 16], strides = [1, 1]} : vector<2x16xf32> to vector<1x16xf32>
    %cst_10 = arith.constant 5.000000e-01 : f32
    %19 = vector.broadcast %cst_10 : f32 to vector<1x16xf32>
    %20 = arith.cmpf ogt, %18, %19 : vector<1x16xf32>
    %21 = vector.extract_strided_slice %11 {offsets = [0, 0], sizes = [16, 16], strides = [1, 1]} : vector<32x32xbf16> to vector<16x16xbf16>
    %22 = vector.extract_strided_slice %13 {offsets = [0, 0], sizes = [16, 16], strides = [1, 1]} : vector<32x32xbf16> to vector<16x16xbf16>
    %23 = vector.extract_strided_slice %15 {offsets = [0, 0], sizes = [16, 16], strides = [1, 1]} : vector<32x32xbf16> to vector<16x16xbf16>
    %cst_11 = arith.constant dense<0.000000e+00> : vector<16x16xf32>
    %24 = tpu.matmul %21, %22, %cst_11 {dimension_numbers = #tpu.dot_dimension_numbers<[1], [1], [0], [0], [0, 0, 1, 0], [], []>} : vector<16x16xbf16>, vector<16x16xbf16>, vector<16x16xf32> -> vector<16x16xf32>
    %cst_12 = arith.constant 2.500000e-01 : f32
    %25 = vector.broadcast %cst_12 : f32 to vector<16x16xf32>
    %26 = arith.mulf %24, %25 : vector<16x16xf32>
    %cst_13 = arith.constant -1.000000e+09 : f32
    %27 = vector.shape_cast %20 : vector<1x16xi1> to vector<1x16xi1>
    %28 = vector.broadcast %27 : vector<1x16xi1> to vector<16x16xi1>
    %29 = vector.broadcast %cst_13 : f32 to vector<16x16xf32>
    %30 = arith.select %28, %29, %26 : vector<16x16xi1>, vector<16x16xf32>
    %cst_14 = arith.constant dense<0xFF800000> : vector<16xf32>
    %31 = vector.multi_reduction <maximumf>, %30, %cst_14 [1] : vector<16x16xf32> to vector<16xf32>
    %32 = vector.shape_cast %31 : vector<16xf32> to vector<16x1xf32>
    %33 = vector.broadcast %32 : vector<16x1xf32> to vector<16x16xf32>
    %34 = arith.subf %30, %33 : vector<16x16xf32>
    %35 = math.exp %34 : vector<16x16xf32>
    %cst_15 = arith.constant dense<0.000000e+00> : vector<16xf32>
    %36 = vector.multi_reduction <add>, %35, %cst_15 [1] : vector<16x16xf32> to vector<16xf32>
    %37 = vector.shape_cast %36 : vector<16xf32> to vector<16x1xf32>
    %38 = tpu.reciprocal %37 {approx = true} : vector<16x1xf32> -> vector<16x1xf32>
    %39 = vector.broadcast %38 : vector<16x1xf32> to vector<16x16xf32>
    %40 = arith.mulf %35, %39 : vector<16x16xf32>
    %41 = arith.truncf %40 : vector<16x16xf32> to vector<16x16xbf16>
    %cst_16 = arith.constant dense<0.000000e+00> : vector<16x16xf32>
    %42 = tpu.matmul %41, %23, %cst_16 {dimension_numbers = #tpu.dot_dimension_numbers<[1], [0], [0], [1], [0, 0, 1, 1], [], []>} : vector<16x16xbf16>, vector<16x16xbf16>, vector<16x16xf32> -> vector<16x16xf32>
    %c0_17 = arith.constant 0 : index
    %c0_18 = arith.constant 0 : index
    %43 = vector.load %arg13[%c0_17, %c0_18] : memref<32x32xf32, #tpu.memory_space<vmem>>, vector<16x16xf32>
    tpu.vector_store %arg13[%c0_17, %c0_18], %42 {strides = array<i32>} : memref<32x32xf32, #tpu.memory_space<vmem>>, vector<16x16xf32>,
    %44 = vector.extract_strided_slice %11 {offsets = [0, 16], sizes = [16, 16], strides = [1, 1]} : vector<32x32xbf16> to vector<16x16xbf16>
    %45 = vector.extract_strided_slice %13 {offsets = [0, 16], sizes = [16, 16], strides = [1, 1]} : vector<32x32xbf16> to vector<16x16xbf16>
    %46 = vector.extract_strided_slice %15 {offsets = [0, 16], sizes = [16, 16], strides = [1, 1]} : vector<32x32xbf16> to vector<16x16xbf16>
    %cst_19 = arith.constant dense<0.000000e+00> : vector<16x16xf32>
    %47 = tpu.matmul %44, %45, %cst_19 {dimension_numbers = #tpu.dot_dimension_numbers<[1], [1], [0], [0], [0, 0, 1, 0], [], []>} : vector<16x16xbf16>, vector<16x16xbf16>, vector<16x16xf32> -> vector<16x16xf32>
    %cst_20 = arith.constant 2.500000e-01 : f32
    %48 = vector.broadcast %cst_20 : f32 to vector<16x16xf32>
    %49 = arith.mulf %47, %48 : vector<16x16xf32>
    %cst_21 = arith.constant -1.000000e+09 : f32
    %50 = vector.shape_cast %20 : vector<1x16xi1> to vector<1x16xi1>
    %51 = vector.broadcast %50 : vector<1x16xi1> to vector<16x16xi1>
    %52 = vector.broadcast %cst_21 : f32 to vector<16x16xf32>
    %53 = arith.select %51, %52, %49 : vector<16x16xi1>, vector<16x16xf32>
    %cst_22 = arith.constant dense<0xFF800000> : vector<16xf32>
    %54 = vector.multi_reduction <maximumf>, %53, %cst_22 [1] : vector<16x16xf32> to vector<16xf32>
    %55 = vector.shape_cast %54 : vector<16xf32> to vector<16x1xf32>
    %56 = vector.broadcast %55 : vector<16x1xf32> to vector<16x16xf32>
    %57 = arith.subf %53, %56 : vector<16x16xf32>
    %58 = math.exp %57 : vector<16x16xf32>
    %cst_23 = arith.constant dense<0.000000e+00> : vector<16xf32>
    %59 = vector.multi_reduction <add>, %58, %cst_23 [1] : vector<16x16xf32> to vector<16xf32>
    %60 = vector.shape_cast %59 : vector<16xf32> to vector<16x1xf32>
    %61 = tpu.reciprocal %60 {approx = true} : vector<16x1xf32> -> vector<16x1xf32>
    %62 = vector.broadcast %61 : vector<16x1xf32> to vector<16x16xf32>
    %63 = arith.mulf %58, %62 : vector<16x16xf32>
    %64 = arith.truncf %63 : vector<16x16xf32> to vector<16x16xbf16>
    %cst_24 = arith.constant dense<0.000000e+00> : vector<16x16xf32>
    %65 = tpu.matmul %64, %46, %cst_24 {dimension_numbers = #tpu.dot_dimension_numbers<[1], [0], [0], [1], [0, 0, 1, 1], [], []>} : vector<16x16xbf16>, vector<16x16xbf16>, vector<16x16xf32> -> vector<16x16xf32>
    %c0_25 = arith.constant 0 : index
    %c16 = arith.constant 16 : index
    %66 = vector.load %arg13[%c0_25, %c16] : memref<32x32xf32, #tpu.memory_space<vmem>>, vector<16x16xf32>
    tpu.vector_store %arg13[%c0_25, %c16], %65 {strides = array<i32>} : memref<32x32xf32, #tpu.memory_space<vmem>>, vector<16x16xf32>,
    %67 = vector.extract_strided_slice %17 {offsets = [1, 0], sizes = [1, 16], strides = [1, 1]} : vector<2x16xf32> to vector<1x16xf32>
    %cst_26 = arith.constant 5.000000e-01 : f32
    %68 = vector.broadcast %cst_26 : f32 to vector<1x16xf32>
    %69 = arith.cmpf ogt, %67, %68 : vector<1x16xf32>
    %70 = vector.extract_strided_slice %11 {offsets = [16, 0], sizes = [16, 16], strides = [1, 1]} : vector<32x32xbf16> to vector<16x16xbf16>
    %71 = vector.extract_strided_slice %13 {offsets = [16, 0], sizes = [16, 16], strides = [1, 1]} : vector<32x32xbf16> to vector<16x16xbf16>
    %72 = vector.extract_strided_slice %15 {offsets = [16, 0], sizes = [16, 16], strides = [1, 1]} : vector<32x32xbf16> to vector<16x16xbf16>
    %cst_27 = arith.constant dense<0.000000e+00> : vector<16x16xf32>
    %73 = tpu.matmul %70, %71, %cst_27 {dimension_numbers = #tpu.dot_dimension_numbers<[1], [1], [0], [0], [0, 0, 1, 0], [], []>} : vector<16x16xbf16>, vector<16x16xbf16>, vector<16x16xf32> -> vector<16x16xf32>
    %cst_28 = arith.constant 2.500000e-01 : f32
    %74 = vector.broadcast %cst_28 : f32 to vector<16x16xf32>
    %75 = arith.mulf %73, %74 : vector<16x16xf32>
    %cst_29 = arith.constant -1.000000e+09 : f32
    %76 = vector.shape_cast %69 : vector<1x16xi1> to vector<1x16xi1>
    %77 = vector.broadcast %76 : vector<1x16xi1> to vector<16x16xi1>
    %78 = vector.broadcast %cst_29 : f32 to vector<16x16xf32>
    %79 = arith.select %77, %78, %75 : vector<16x16xi1>, vector<16x16xf32>
    %cst_30 = arith.constant dense<0xFF800000> : vector<16xf32>
    %80 = vector.multi_reduction <maximumf>, %79, %cst_30 [1] : vector<16x16xf32> to vector<16xf32>
    %81 = vector.shape_cast %80 : vector<16xf32> to vector<16x1xf32>
    %82 = vector.broadcast %81 : vector<16x1xf32> to vector<16x16xf32>
    %83 = arith.subf %79, %82 : vector<16x16xf32>
    %84 = math.exp %83 : vector<16x16xf32>
    %cst_31 = arith.constant dense<0.000000e+00> : vector<16xf32>
    %85 = vector.multi_reduction <add>, %84, %cst_31 [1] : vector<16x16xf32> to vector<16xf32>
    %86 = vector.shape_cast %85 : vector<16xf32> to vector<16x1xf32>
    %87 = tpu.reciprocal %86 {approx = true} : vector<16x1xf32> -> vector<16x1xf32>
    %88 = vector.broadcast %87 : vector<16x1xf32> to vector<16x16xf32>
    %89 = arith.mulf %84, %88 : vector<16x16xf32>
    %90 = arith.truncf %89 : vector<16x16xf32> to vector<16x16xbf16>
    %cst_32 = arith.constant dense<0.000000e+00> : vector<16x16xf32>
    %91 = tpu.matmul %90, %72, %cst_32 {dimension_numbers = #tpu.dot_dimension_numbers<[1], [0], [0], [1], [0, 0, 1, 1], [], []>} : vector<16x16xbf16>, vector<16x16xbf16>, vector<16x16xf32> -> vector<16x16xf32>
    %c16_33 = arith.constant 16 : index
    %c0_34 = arith.constant 0 : index
    %92 = vector.load %arg13[%c16_33, %c0_34] : memref<32x32xf32, #tpu.memory_space<vmem>>, vector<16x16xf32>
    tpu.vector_store %arg13[%c16_33, %c0_34], %91 {strides = array<i32>} : memref<32x32xf32, #tpu.memory_space<vmem>>, vector<16x16xf32>,
    %93 = vector.extract_strided_slice %11 {offsets = [16, 16], sizes = [16, 16], strides = [1, 1]} : vector<32x32xbf16> to vector<16x16xbf16>
    %94 = vector.extract_strided_slice %13 {offsets = [16, 16], sizes = [16, 16], strides = [1, 1]} : vector<32x32xbf16> to vector<16x16xbf16>
    %95 = vector.extract_strided_slice %15 {offsets = [16, 16], sizes = [16, 16], strides = [1, 1]} : vector<32x32xbf16> to vector<16x16xbf16>
    %cst_35 = arith.constant dense<0.000000e+00> : vector<16x16xf32>
    %96 = tpu.matmul %93, %94, %cst_35 {dimension_numbers = #tpu.dot_dimension_numbers<[1], [1], [0], [0], [0, 0, 1, 0], [], []>} : vector<16x16xbf16>, vector<16x16xbf16>, vector<16x16xf32> -> vector<16x16xf32>
    %cst_36 = arith.constant 2.500000e-01 : f32
    %97 = vector.broadcast %cst_36 : f32 to vector<16x16xf32>
    %98 = arith.mulf %96, %97 : vector<16x16xf32>
    %cst_37 = arith.constant -1.000000e+09 : f32
    %99 = vector.shape_cast %69 : vector<1x16xi1> to vector<1x16xi1>
    %100 = vector.broadcast %99 : vector<1x16xi1> to vector<16x16xi1>
    %101 = vector.broadcast %cst_37 : f32 to vector<16x16xf32>
    %102 = arith.select %100, %101, %98 : vector<16x16xi1>, vector<16x16xf32>
    %cst_38 = arith.constant dense<0xFF800000> : vector<16xf32>
    %103 = vector.multi_reduction <maximumf>, %102, %cst_38 [1] : vector<16x16xf32> to vector<16xf32>
    %104 = vector.shape_cast %103 : vector<16xf32> to vector<16x1xf32>
    %105 = vector.broadcast %104 : vector<16x1xf32> to vector<16x16xf32>
    %106 = arith.subf %102, %105 : vector<16x16xf32>
    %107 = math.exp %106 : vector<16x16xf32>
    %cst_39 = arith.constant dense<0.000000e+00> : vector<16xf32>
    %108 = vector.multi_reduction <add>, %107, %cst_39 [1] : vector<16x16xf32> to vector<16xf32>
    %109 = vector.shape_cast %108 : vector<16xf32> to vector<16x1xf32>
    %110 = tpu.reciprocal %109 {approx = true} : vector<16x1xf32> -> vector<16x1xf32>
    %111 = vector.broadcast %110 : vector<16x1xf32> to vector<16x16xf32>
    %112 = arith.mulf %107, %111 : vector<16x16xf32>
    %113 = arith.truncf %112 : vector<16x16xf32> to vector<16x16xbf16>
    %cst_40 = arith.constant dense<0.000000e+00> : vector<16x16xf32>
    %114 = tpu.matmul %113, %95, %cst_40 {dimension_numbers = #tpu.dot_dimension_numbers<[1], [0], [0], [1], [0, 0, 1, 1], [], []>} : vector<16x16xbf16>, vector<16x16xbf16>, vector<16x16xf32> -> vector<16x16xf32>
    %c16_41 = arith.constant 16 : index
    %c16_42 = arith.constant 16 : index
    %115 = vector.load %arg13[%c16_41, %c16_42] : memref<32x32xf32, #tpu.memory_space<vmem>>, vector<16x16xf32>
    tpu.vector_store %arg13[%c16_41, %c16_42], %114 {strides = array<i32>} : memref<32x32xf32, #tpu.memory_space<vmem>>, vector<16x16xf32>,
    %c0_43 = arith.constant 0 : index
    %c0_44 = arith.constant 0 : index
    %116 = vector.load %arg13[%c0_43, %c0_44] : memref<32x32xf32, #tpu.memory_space<vmem>>, vector<32x32xf32>
    %117 = arith.truncf %116 : vector<32x32xf32> to vector<32x32xbf16>
    %c0_45 = arith.constant 0 : index
    %c0_46 = arith.constant 0 : index
    %c0_47 = arith.constant 0 : index
    %c0_48 = arith.constant 0 : index
    %118 = vector.load %arg5[%c0_45, %c0_46, %c0_47, %c0_48] : memref<1x1x32x32xbf16, #tpu.memory_space<vmem>>, vector<1x1x32x32xbf16>
    %119 = vector.shape_cast %118 : vector<1x1x32x32xbf16> to vector<32x32xbf16>
    %cst_49 = arith.constant dense<0.000000e+00> : vector<32x32xf32>
    %120 = tpu.matmul %117, %119, %cst_49 {dimension_numbers = #tpu.dot_dimension_numbers<[1], [0], [0], [1], [0, 0, 1, 1], [], []>} : vector<32x32xbf16>, vector<32x32xbf16>, vector<32x32xf32> -> vector<32x32xf32>
    %121 = arith.addf %9, %120 : vector<32x32xf32>
    %c0_50 = arith.constant 0 : index
    %c0_51 = arith.constant 0 : index
    %c0_52 = arith.constant 0 : index
    %c0_53 = arith.constant 0 : index
    %122 = vector.load %arg6[%c0_50, %c0_51, %c0_52, %c0_53] : memref<1x1x1x32xf32, #tpu.memory_space<vmem>>, vector<1x1x1x32xf32>
    %123 = vector.shape_cast %122 : vector<1x1x1x32xf32> to vector<1x32xf32>
    %c0_54 = arith.constant 0 : index
    %c0_55 = arith.constant 0 : index
    %c0_56 = arith.constant 0 : index
    %c0_57 = arith.constant 0 : index
    %124 = vector.load %arg7[%c0_54, %c0_55, %c0_56, %c0_57] : memref<1x1x1x32xf32, #tpu.memory_space<vmem>>, vector<1x1x1x32xf32>
    %125 = vector.shape_cast %124 : vector<1x1x1x32xf32> to vector<1x32xf32>
    %cst_58 = arith.constant dense<0.000000e+00> : vector<32xf32>
    %126 = vector.multi_reduction <add>, %121, %cst_58 [1] : vector<32x32xf32> to vector<32xf32>
    %127 = vector.shape_cast %126 : vector<32xf32> to vector<32x1xf32>
    %cst_59 = arith.constant 3.200000e+01 : f32
    %128 = vector.broadcast %cst_59 : f32 to vector<32x1xf32>
    %129 = arith.divf %127, %128 : vector<32x1xf32>
    %130 = vector.broadcast %129 : vector<32x1xf32> to vector<32x32xf32>
    %131 = arith.subf %121, %130 : vector<32x32xf32>
    %132 = arith.mulf %131, %131 : vector<32x32xf32>
    %cst_60 = arith.constant dense<0.000000e+00> : vector<32xf32>
    %133 = vector.multi_reduction <add>, %132, %cst_60 [1] : vector<32x32xf32> to vector<32xf32>
    %134 = vector.shape_cast %133 : vector<32xf32> to vector<32x1xf32>
    %cst_61 = arith.constant 3.200000e+01 : f32
    %135 = vector.broadcast %cst_61 : f32 to vector<32x1xf32>
    %136 = arith.divf %134, %135 : vector<32x1xf32>
    %137 = vector.broadcast %129 : vector<32x1xf32> to vector<32x32xf32>
    %138 = arith.subf %121, %137 : vector<32x32xf32>
    %cst_62 = arith.constant 9.99999974E-6 : f32
    %139 = vector.broadcast %cst_62 : f32 to vector<32x1xf32>
    %140 = arith.addf %136, %139 : vector<32x1xf32>
    %141 = math.rsqrt %140 : vector<32x1xf32>
    %142 = vector.broadcast %141 : vector<32x1xf32> to vector<32x32xf32>
    %143 = arith.mulf %138, %142 : vector<32x32xf32>
    %144 = vector.broadcast %123 : vector<1x32xf32> to vector<32x32xf32>
    %145 = arith.mulf %143, %144 : vector<32x32xf32>
    %146 = vector.broadcast %125 : vector<1x32xf32> to vector<32x32xf32>
    %147 = arith.addf %145, %146 : vector<32x32xf32>
    %148 = arith.truncf %147 : vector<32x32xf32> to vector<32x32xbf16>
    %c0_63 = arith.constant 0 : index
    %c0_64 = arith.constant 0 : index
    %c0_65 = arith.constant 0 : index
    %c0_66 = arith.constant 0 : index
    %149 = vector.load %arg8[%c0_63, %c0_64, %c0_65, %c0_66] : memref<1x1x32x64xbf16, #tpu.memory_space<vmem>>, vector<1x1x32x64xbf16>
    %150 = vector.shape_cast %149 : vector<1x1x32x64xbf16> to vector<32x64xbf16>
    %cst_67 = arith.constant dense<0.000000e+00> : vector<32x64xf32>
    %151 = tpu.matmul %148, %150, %cst_67 {dimension_numbers = #tpu.dot_dimension_numbers<[1], [0], [0], [1], [0, 0, 1, 1], [], []>} : vector<32x32xbf16>, vector<32x64xbf16>, vector<32x64xf32> -> vector<32x64xf32>
    %cst_68 = arith.constant 0.000000e+00 : f32
    %152 = vector.broadcast %cst_68 : f32 to vector<32x64xf32>
    %153 = arith.maximumf %151, %152 : vector<32x64xf32>
    %154 = arith.truncf %153 : vector<32x64xf32> to vector<32x64xbf16>
    %c0_69 = arith.constant 0 : index
    %c0_70 = arith.constant 0 : index
    %c0_71 = arith.constant 0 : index
    %c0_72 = arith.constant 0 : index
    %155 = vector.load %arg9[%c0_69, %c0_70, %c0_71, %c0_72] : memref<1x1x64x32xbf16, #tpu.memory_space<vmem>>, vector<1x1x64x32xbf16>
    %156 = vector.shape_cast %155 : vector<1x1x64x32xbf16> to vector<64x32xbf16>
    %cst_73 = arith.constant dense<0.000000e+00> : vector<32x32xf32>
    %157 = tpu.matmul %154, %156, %cst_73 {dimension_numbers = #tpu.dot_dimension_numbers<[1], [0], [0], [1], [0, 0, 1, 1], [], []>} : vector<32x64xbf16>, vector<64x32xbf16>, vector<32x32xf32> -> vector<32x32xf32>
    %158 = arith.addf %157, %147 : vector<32x32xf32>
    %c0_74 = arith.constant 0 : index
    %c0_75 = arith.constant 0 : index
    %c0_76 = arith.constant 0 : index
    %c0_77 = arith.constant 0 : index
    %159 = vector.load %arg10[%c0_74, %c0_75, %c0_76, %c0_77] : memref<1x1x1x32xf32, #tpu.memory_space<vmem>>, vector<1x1x1x32xf32>
    %160 = vector.shape_cast %159 : vector<1x1x1x32xf32> to vector<1x32xf32>
    %c0_78 = arith.constant 0 : index
    %c0_79 = arith.constant 0 : index
    %c0_80 = arith.constant 0 : index
    %c0_81 = arith.constant 0 : index
    %161 = vector.load %arg11[%c0_78, %c0_79, %c0_80, %c0_81] : memref<1x1x1x32xf32, #tpu.memory_space<vmem>>, vector<1x1x1x32xf32>
    %162 = vector.shape_cast %161 : vector<1x1x1x32xf32> to vector<1x32xf32>
    %cst_82 = arith.constant dense<0.000000e+00> : vector<32xf32>
    %163 = vector.multi_reduction <add>, %158, %cst_82 [1] : vector<32x32xf32> to vector<32xf32>
    %164 = vector.shape_cast %163 : vector<32xf32> to vector<32x1xf32>
    %cst_83 = arith.constant 3.200000e+01 : f32
    %165 = vector.broadcast %cst_83 : f32 to vector<32x1xf32>
    %166 = arith.divf %164, %165 : vector<32x1xf32>
    %167 = vector.broadcast %166 : vector<32x1xf32> to vector<32x32xf32>
    %168 = arith.subf %158, %167 : vector<32x32xf32>
    %169 = arith.mulf %168, %168 : vector<32x32xf32>
    %cst_84 = arith.constant dense<0.000000e+00> : vector<32xf32>
    %170 = vector.multi_reduction <add>, %169, %cst_84 [1] : vector<32x32xf32> to vector<32xf32>
    %171 = vector.shape_cast %170 : vector<32xf32> to vector<32x1xf32>
    %cst_85 = arith.constant 3.200000e+01 : f32
    %172 = vector.broadcast %cst_85 : f32 to vector<32x1xf32>
    %173 = arith.divf %171, %172 : vector<32x1xf32>
    %174 = vector.broadcast %166 : vector<32x1xf32> to vector<32x32xf32>
    %175 = arith.subf %158, %174 : vector<32x32xf32>
    %cst_86 = arith.constant 9.99999974E-6 : f32
    %176 = vector.broadcast %cst_86 : f32 to vector<32x1xf32>
    %177 = arith.addf %173, %176 : vector<32x1xf32>
    %178 = math.rsqrt %177 : vector<32x1xf32>
    %179 = vector.broadcast %178 : vector<32x1xf32> to vector<32x32xf32>
    %180 = arith.mulf %175, %179 : vector<32x32xf32>
    %181 = vector.broadcast %160 : vector<1x32xf32> to vector<32x32xf32>
    %182 = arith.mulf %180, %181 : vector<32x32xf32>
    %183 = vector.broadcast %162 : vector<1x32xf32> to vector<32x32xf32>
    %184 = arith.addf %182, %183 : vector<32x32xf32>
    %c0_87 = arith.constant 0 : index
    %c0_88 = arith.constant 0 : index
    %c0_89 = arith.constant 0 : index
    %185 = vector.load %arg12[%c0_87, %c0_88, %c0_89] : memref<1x32x32xf32, #tpu.memory_space<vmem>>, vector<1x32x32xf32>
    %186 = vector.shape_cast %185 : vector<1x32x32xf32> to vector<32x32xf32>
    %187 = vector.shape_cast %184 : vector<32x32xf32> to vector<1x32x32xf32>
    tpu.vector_store %arg12[%c0_87, %c0_88, %c0_89], %187 {strides = array<i32>} : memref<1x32x32xf32, #tpu.memory_space<vmem>>, vector<1x32x32xf32>,
    return
  }
  func.func @transform_0(%arg0: i32, %arg1: i32) -> (i32, i32, i32) {
    %c0_i32 = arith.constant 0 : i32
    %c0_i32_0 = arith.constant 0 : i32
    %c0_i32_1 = arith.constant 0 : i32
    return %arg0, %c0_i32, %c0_i32_0 : i32, i32, i32
  }
  func.func @transform_1(%arg0: i32, %arg1: i32) -> (i32, i32, i32) {
    %c0_i32 = arith.constant 0 : i32
    %c0_i32_0 = arith.constant 0 : i32
    %c0_i32_1 = arith.constant 0 : i32
    return %arg0, %c0_i32, %c0_i32_0 : i32, i32, i32
  }
  func.func @transform_2(%arg0: i32, %arg1: i32) -> (i32, i32, i32, i32) {
    %c0_i32 = arith.constant 0 : i32
    %c0_i32_0 = arith.constant 0 : i32
    %c0_i32_1 = arith.constant 0 : i32
    return %arg0, %arg1, %c0_i32, %c0_i32_0 : i32, i32, i32, i32
  }
  func.func @transform_3(%arg0: i32, %arg1: i32) -> (i32, i32, i32, i32) {
    %c0_i32 = arith.constant 0 : i32
    %c0_i32_0 = arith.constant 0 : i32
    %c0_i32_1 = arith.constant 0 : i32
    return %arg0, %arg1, %c0_i32, %c0_i32_0 : i32, i32, i32, i32
  }
  func.func @transform_4(%arg0: i32, %arg1: i32) -> (i32, i32, i32, i32) {
    %c0_i32 = arith.constant 0 : i32
    %c0_i32_0 = arith.constant 0 : i32
    %c0_i32_1 = arith.constant 0 : i32
    return %arg0, %arg1, %c0_i32, %c0_i32_0 : i32, i32, i32, i32
  }
  func.func @transform_5(%arg0: i32, %arg1: i32) -> (i32, i32, i32, i32) {
    %c0_i32 = arith.constant 0 : i32
    %c0_i32_0 = arith.constant 0 : i32
    %c0_i32_1 = arith.constant 0 : i32
    return %arg0, %arg1, %c0_i32, %c0_i32_0 : i32, i32, i32, i32
  }
  func.func @transform_6(%arg0: i32, %arg1: i32) -> (i32, i32, i32, i32) {
    %c0_i32 = arith.constant 0 : i32
    %c0_i32_0 = arith.constant 0 : i32
    %c0_i32_1 = arith.constant 0 : i32
    return %arg0, %arg1, %c0_i32, %c0_i32_0 : i32, i32, i32, i32
  }
  func.func @transform_7(%arg0: i32, %arg1: i32) -> (i32, i32, i32, i32) {
    %c0_i32 = arith.constant 0 : i32
    %c0_i32_0 = arith.constant 0 : i32
    %c0_i32_1 = arith.constant 0 : i32
    return %arg0, %arg1, %c0_i32, %c0_i32_0 : i32, i32, i32, i32
  }
  func.func @transform_8(%arg0: i32, %arg1: i32) -> (i32, i32, i32, i32) {
    %c0_i32 = arith.constant 0 : i32
    %c0_i32_0 = arith.constant 0 : i32
    %c0_i32_1 = arith.constant 0 : i32
    return %arg0, %arg1, %c0_i32, %c0_i32_0 : i32, i32, i32, i32
  }
  func.func @transform_9(%arg0: i32, %arg1: i32) -> (i32, i32, i32, i32) {
    %c0_i32 = arith.constant 0 : i32
    %c0_i32_0 = arith.constant 0 : i32
    %c0_i32_1 = arith.constant 0 : i32
    return %arg0, %arg1, %c0_i32, %c0_i32_0 : i32, i32, i32, i32
  }
  func.func @transform_10(%arg0: i32, %arg1: i32) -> (i32, i32, i32) {
    %c0_i32 = arith.constant 0 : i32
    %c0_i32_0 = arith.constant 0 : i32
    %c0_i32_1 = arith.constant 0 : i32
    return %arg0, %c0_i32, %c0_i32_0 : i32, i32, i32
  }
}

module attributes {stable_mosaic.version = 11 : i64} {
  func.func @_encoder_stack_kernel(%arg0: i32, %arg1: i32, %arg2: memref<1x32x32xf32, #tpu.memory_space<vmem>>, %arg3: memref<1x2x16xf32, #tpu.memory_space<vmem>>, %arg4: memref<1x1x32x128xbf16, #tpu.memory_space<vmem>>, %arg5: memref<1x1x32x32xbf16, #tpu.memory_space<vmem>>, %arg6: memref<1x1x1x32xf32, #tpu.memory_space<vmem>>, %arg7: memref<1x1x1x32xf32, #tpu.memory_space<vmem>>, %arg8: memref<1x1x32x64xbf16, #tpu.memory_space<vmem>>, %arg9: memref<1x1x64x32xbf16, #tpu.memory_space<vmem>>, %arg10: memref<1x1x1x32xf32, #tpu.memory_space<vmem>>, %arg11: memref<1x1x1x32xf32, #tpu.memory_space<vmem>>, %arg12: memref<1x32x32xf32, #tpu.memory_space<vmem>>, %arg13: memref<32x32xf32, #tpu.memory_space<vmem>>) attributes {dimension_semantics = [#tpu.dimension_semantics<parallel>, #tpu.dimension_semantics<arbitrary>], iteration_bounds = array<i64: 4, 2>, scalar_prefetch = 0 : i64, scratch_operands = 1 : i64, tpu.core_type = #tpu.core_type<tc>, window_params = [{transform_indices = @transform_0, window_bounds = array<i64: 1, 32, 32>}, {transform_indices = @transform_1, window_bounds = array<i64: 1, 2, 16>}, {transform_indices = @transform_2, window_bounds = array<i64: 1, 1, 32, 128>}, {transform_indices = @transform_3, window_bounds = array<i64: 1, 1, 32, 32>}, {transform_indices = @transform_4, window_bounds = array<i64: 1, 1, 1, 32>}, {transform_indices = @transform_5, window_bounds = array<i64: 1, 1, 1, 32>}, {transform_indices = @transform_6, window_bounds = array<i64: 1, 1, 32, 64>}, {transform_indices = @transform_7, window_bounds = array<i64: 1, 1, 64, 32>}, {transform_indices = @transform_8, window_bounds = array<i64: 1, 1, 1, 32>}, {transform_indices = @transform_9, window_bounds = array<i64: 1, 1, 1, 32>}, {transform_indices = @transform_10, window_bounds = array<i64: 1, 32, 32>}]} {
    %c0_i32 = arith.constant 0 : i32
    %0 = arith.cmpi eq, %arg1, %c0_i32 : i32
    %1 = arith.extui %0 : i1 to i32
    %c0_i32_0 = arith.constant 0 : i32
    %2 = arith.cmpi ne, %1, %c0_i32_0 : i32
    scf.if %2 {
      %c0_90 = arith.constant 0 : index
      %c0_91 = arith.constant 0 : index
      %c0_92 = arith.constant 0 : index
      %188 = vector.load %arg2[%c0_90, %c0_91, %c0_92] : memref<1x32x32xf32, #tpu.memory_space<vmem>>, vector<1x32x32xf32>
      %c0_93 = arith.constant 0 : index
      %c0_94 = arith.constant 0 : index
      %c0_95 = arith.constant 0 : index
      %189 = vector.load %arg12[%c0_93, %c0_94, %c0_95] : memref<1x32x32xf32, #tpu.memory_space<vmem>>, vector<1x32x32xf32>
      tpu.vector_store %arg12[%c0_93, %c0_94, %c0_95], %188 {strides = array<i32>} : memref<1x32x32xf32, #tpu.memory_space<vmem>>, vector<1x32x32xf32>,
    } else {
    }
    %c0 = arith.constant 0 : index
    %c0_1 = arith.constant 0 : index
    %c0_2 = arith.constant 0 : index
    %3 = vector.load %arg12[%c0, %c0_1, %c0_2] : memref<1x32x32xf32, #tpu.memory_space<vmem>>, vector<1x32x32xf32>
    %4 = vector.shape_cast %3 : vector<1x32x32xf32> to vector<32x32xf32>
    %5 = arith.truncf %4 : vector<32x32xf32> to vector<32x32xbf16>
    %c0_3 = arith.constant 0 : index
    %c0_4 = arith.constant 0 : index
    %c0_5 = arith.constant 0 : index
    %c0_6 = arith.constant 0 : index
    %6 = vector.load %arg4[%c0_3, %c0_4, %c0_5, %c0_6] : memref<1x1x32x128xbf16, #tpu.memory_space<vmem>>, vector<1x1x32x128xbf16>
    %7 = vector.shape_cast %6 : vector<1x1x32x128xbf16> to vector<32x128xbf16>
    %cst = arith.constant dense<0.000000e+00> : vector<32x128xf32>
    %8 = tpu.matmul %5, %7, %cst {dimension_numbers = #tpu.dot_dimension_numbers<[1], [0], [0], [1], [0, 0, 1, 1], [], []>} : vector<32x32xbf16>, vector<32x128xbf16>, vector<32x128xf32> -> vector<32x128xf32>
    %9 = vector.extract_strided_slice %8 {offsets = [0, 0], sizes = [32, 32], strides = [1, 1]} : vector<32x128xf32> to vector<32x32xf32>
    %10 = vector.extract_strided_slice %8 {offsets = [0, 32], sizes = [32, 32], strides = [1, 1]} : vector<32x128xf32> to vector<32x32xf32>
    %11 = arith.truncf %10 : vector<32x32xf32> to vector<32x32xbf16>
    %12 = vector.extract_strided_slice %8 {offsets = [0, 64], sizes = [32, 32], strides = [1, 1]} : vector<32x128xf32> to vector<32x32xf32>
    %13 = arith.truncf %12 : vector<32x32xf32> to vector<32x32xbf16>
    %14 = vector.extract_strided_slice %8 {offsets = [0, 96], sizes = [32, 32], strides = [1, 1]} : vector<32x128xf32> to vector<32x32xf32>
    %15 = arith.truncf %14 : vector<32x32xf32> to vector<32x32xbf16>
    %c0_7 = arith.constant 0 : index
    %c0_8 = arith.constant 0 : index
    %c0_9 = arith.constant 0 : index
    %16 = vector.load %arg3[%c0_7, %c0_8, %c0_9] : memref<1x2x16xf32, #tpu.memory_space<vmem>>, vector<1x2x16xf32>
    %17 = vector.shape_cast %16 : vector<1x2x16xf32> to vector<2x16xf32>
    %18 = vector.extract_strided_slice %17 {offsets = [0, 0], sizes = [1, 16], strides = [1, 1]} : vector<2x16xf32> to vector<1x16xf32>
    %cst_10 = arith.constant 5.000000e-01 : f32
    %19 = vector.broadcast %cst_10 : f32 to vector<1x16xf32>
    %20 = arith.cmpf ogt, %18, %19 : vector<1x16xf32>
    %21 = vector.extract_strided_slice %11 {offsets = [0, 0], sizes = [16, 16], strides = [1, 1]} : vector<32x32xbf16> to vector<16x16xbf16>
    %22 = vector.extract_strided_slice %13 {offsets = [0, 0], sizes = [16, 16], strides = [1, 1]} : vector<32x32xbf16> to vector<16x16xbf16>
    %23 = vector.extract_strided_slice %15 {offsets = [0, 0], sizes = [16, 16], strides = [1, 1]} : vector<32x32xbf16> to vector<16x16xbf16>
    %cst_11 = arith.constant dense<0.000000e+00> : vector<16x16xf32>
    %24 = tpu.matmul %21, %22, %cst_11 {dimension_numbers = #tpu.dot_dimension_numbers<[1], [1], [0], [0], [0, 0, 1, 0], [], []>} : vector<16x16xbf16>, vector<16x16xbf16>, vector<16x16xf32> -> vector<16x16xf32>
    %cst_12 = arith.constant 2.500000e-01 : f32
    %25 = vector.broadcast %cst_12 : f32 to vector<16x16xf32>
    %26 = arith.mulf %24, %25 : vector<16x16xf32>
    %cst_13 = arith.constant -1.000000e+09 : f32
    %27 = vector.shape_cast %20 : vector<1x16xi1> to vector<1x16xi1>
    %28 = vector.broadcast %27 : vector<1x16xi1> to vector<16x16xi1>
    %29 = vector.broadcast %cst_13 : f32 to vector<16x16xf32>
    %30 = arith.select %28, %29, %26 : vector<16x16xi1>, vector<16x16xf32>
    %cst_14 = arith.constant dense<0xFF800000> : vector<16xf32>
    %31 = vector.multi_reduction <maximumf>, %30, %cst_14 [1] : vector<16x16xf32> to vector<16xf32>
    %32 = vector.shape_cast %31 : vector<16xf32> to vector<16x1xf32>
    %33 = vector.broadcast %32 : vector<16x1xf32> to vector<16x16xf32>
    %34 = arith.subf %30, %33 : vector<16x16xf32>
    %35 = math.exp %34 : vector<16x16xf32>
    %cst_15 = arith.constant dense<0.000000e+00> : vector<16xf32>
    %36 = vector.multi_reduction <add>, %35, %cst_15 [1] : vector<16x16xf32> to vector<16xf32>
    %37 = vector.shape_cast %36 : vector<16xf32> to vector<16x1xf32>
    %38 = tpu.reciprocal %37 {approx = true} : vector<16x1xf32> -> vector<16x1xf32>
    %39 = vector.broadcast %38 : vector<16x1xf32> to vector<16x16xf32>
    %40 = arith.mulf %35, %39 : vector<16x16xf32>
    %41 = arith.truncf %40 : vector<16x16xf32> to vector<16x16xbf16>
    %cst_16 = arith.constant dense<0.000000e+00> : vector<16x16xf32>
    %42 = tpu.matmul %41, %23, %cst_16 {dimension_numbers = #tpu.dot_dimension_numbers<[1], [0], [0], [1], [0, 0, 1, 1], [], []>} : vector<16x16xbf16>, vector<16x16xbf16>, vector<16x16xf32> -> vector<16x16xf32>
    %c0_17 = arith.constant 0 : index
    %c0_18 = arith.constant 0 : index
    %43 = vector.load %arg13[%c0_17, %c0_18] : memref<32x32xf32, #tpu.memory_space<vmem>>, vector<16x16xf32>
    tpu.vector_store %arg13[%c0_17, %c0_18], %42 {strides = array<i32>} : memref<32x32xf32, #tpu.memory_space<vmem>>, vector<16x16xf32>,
    %44 = vector.extract_strided_slice %11 {offsets = [0, 16], sizes = [16, 16], strides = [1, 1]} : vector<32x32xbf16> to vector<16x16xbf16>
    %45 = vector.extract_strided_slice %13 {offsets = [0, 16], sizes = [16, 16], strides = [1, 1]} : vector<32x32xbf16> to vector<16x16xbf16>
    %46 = vector.extract_strided_slice %15 {offsets = [0, 16], sizes = [16, 16], strides = [1, 1]} : vector<32x32xbf16> to vector<16x16xbf16>
    %cst_19 = arith.constant dense<0.000000e+00> : vector<16x16xf32>
    %47 = tpu.matmul %44, %45, %cst_19 {dimension_numbers = #tpu.dot_dimension_numbers<[1], [1], [0], [0], [0, 0, 1, 0], [], []>} : vector<16x16xbf16>, vector<16x16xbf16>, vector<16x16xf32> -> vector<16x16xf32>
    %cst_20 = arith.constant 2.500000e-01 : f32
    %48 = vector.broadcast %cst_20 : f32 to vector<16x16xf32>
    %49 = arith.mulf %47, %48 : vector<16x16xf32>
    %cst_21 = arith.constant -1.000000e+09 : f32
    %50 = vector.shape_cast %20 : vector<1x16xi1> to vector<1x16xi1>
    %51 = vector.broadcast %50 : vector<1x16xi1> to vector<16x16xi1>
    %52 = vector.broadcast %cst_21 : f32 to vector<16x16xf32>
    %53 = arith.select %51, %52, %49 : vector<16x16xi1>, vector<16x16xf32>
    %cst_22 = arith.constant dense<0xFF800000> : vector<16xf32>
    %54 = vector.multi_reduction <maximumf>, %53, %cst_22 [1] : vector<16x16xf32> to vector<16xf32>
    %55 = vector.shape_cast %54 : vector<16xf32> to vector<16x1xf32>
    %56 = vector.broadcast %55 : vector<16x1xf32> to vector<16x16xf32>
    %57 = arith.subf %53, %56 : vector<16x16xf32>
    %58 = math.exp %57 : vector<16x16xf32>
    %cst_23 = arith.constant dense<0.000000e+00> : vector<16xf32>
    %59 = vector.multi_reduction <add>, %58, %cst_23 [1] : vector<16x16xf32> to vector<16xf32>
    %60 = vector.shape_cast %59 : vector<16xf32> to vector<16x1xf32>
    %61 = tpu.reciprocal %60 {approx = true} : vector<16x1xf32> -> vector<16x1xf32>
    %62 = vector.broadcast %61 : vector<16x1xf32> to vector<16x16xf32>
    %63 = arith.mulf %58, %62 : vector<16x16xf32>
    %64 = arith.truncf %63 : vector<16x16xf32> to vector<16x16xbf16>
    %cst_24 = arith.constant dense<0.000000e+00> : vector<16x16xf32>
    %65 = tpu.matmul %64, %46, %cst_24 {dimension_numbers = #tpu.dot_dimension_numbers<[1], [0], [0], [1], [0, 0, 1, 1], [], []>} : vector<16x16xbf16>, vector<16x16xbf16>, vector<16x16xf32> -> vector<16x16xf32>
    %c0_25 = arith.constant 0 : index
    %c16 = arith.constant 16 : index
    %66 = vector.load %arg13[%c0_25, %c16] : memref<32x32xf32, #tpu.memory_space<vmem>>, vector<16x16xf32>
    tpu.vector_store %arg13[%c0_25, %c16], %65 {strides = array<i32>} : memref<32x32xf32, #tpu.memory_space<vmem>>, vector<16x16xf32>,
    %67 = vector.extract_strided_slice %17 {offsets = [1, 0], sizes = [1, 16], strides = [1, 1]} : vector<2x16xf32> to vector<1x16xf32>
    %cst_26 = arith.constant 5.000000e-01 : f32
    %68 = vector.broadcast %cst_26 : f32 to vector<1x16xf32>
    %69 = arith.cmpf ogt, %67, %68 : vector<1x16xf32>
    %70 = vector.extract_strided_slice %11 {offsets = [16, 0], sizes = [16, 16], strides = [1, 1]} : vector<32x32xbf16> to vector<16x16xbf16>
    %71 = vector.extract_strided_slice %13 {offsets = [16, 0], sizes = [16, 16], strides = [1, 1]} : vector<32x32xbf16> to vector<16x16xbf16>
    %72 = vector.extract_strided_slice %15 {offsets = [16, 0], sizes = [16, 16], strides = [1, 1]} : vector<32x32xbf16> to vector<16x16xbf16>
    %cst_27 = arith.constant dense<0.000000e+00> : vector<16x16xf32>
    %73 = tpu.matmul %70, %71, %cst_27 {dimension_numbers = #tpu.dot_dimension_numbers<[1], [1], [0], [0], [0, 0, 1, 0], [], []>} : vector<16x16xbf16>, vector<16x16xbf16>, vector<16x16xf32> -> vector<16x16xf32>
    %cst_28 = arith.constant 2.500000e-01 : f32
    %74 = vector.broadcast %cst_28 : f32 to vector<16x16xf32>
    %75 = arith.mulf %73, %74 : vector<16x16xf32>
    %cst_29 = arith.constant -1.000000e+09 : f32
    %76 = vector.shape_cast %69 : vector<1x16xi1> to vector<1x16xi1>
    %77 = vector.broadcast %76 : vector<1x16xi1> to vector<16x16xi1>
    %78 = vector.broadcast %cst_29 : f32 to vector<16x16xf32>
    %79 = arith.select %77, %78, %75 : vector<16x16xi1>, vector<16x16xf32>
    %cst_30 = arith.constant dense<0xFF800000> : vector<16xf32>
    %80 = vector.multi_reduction <maximumf>, %79, %cst_30 [1] : vector<16x16xf32> to vector<16xf32>
    %81 = vector.shape_cast %80 : vector<16xf32> to vector<16x1xf32>
    %82 = vector.broadcast %81 : vector<16x1xf32> to vector<16x16xf32>
    %83 = arith.subf %79, %82 : vector<16x16xf32>
    %84 = math.exp %83 : vector<16x16xf32>
    %cst_31 = arith.constant dense<0.000000e+00> : vector<16xf32>
    %85 = vector.multi_reduction <add>, %84, %cst_31 [1] : vector<16x16xf32> to vector<16xf32>
    %86 = vector.shape_cast %85 : vector<16xf32> to vector<16x1xf32>
    %87 = tpu.reciprocal %86 {approx = true} : vector<16x1xf32> -> vector<16x1xf32>
    %88 = vector.broadcast %87 : vector<16x1xf32> to vector<16x16xf32>
    %89 = arith.mulf %84, %88 : vector<16x16xf32>
    %90 = arith.truncf %89 : vector<16x16xf32> to vector<16x16xbf16>
    %cst_32 = arith.constant dense<0.000000e+00> : vector<16x16xf32>
    %91 = tpu.matmul %90, %72, %cst_32 {dimension_numbers = #tpu.dot_dimension_numbers<[1], [0], [0], [1], [0, 0, 1, 1], [], []>} : vector<16x16xbf16>, vector<16x16xbf16>, vector<16x16xf32> -> vector<16x16xf32>
    %c16_33 = arith.constant 16 : index
    %c0_34 = arith.constant 0 : index
    %92 = vector.load %arg13[%c16_33, %c0_34] : memref<32x32xf32, #tpu.memory_space<vmem>>, vector<16x16xf32>
    tpu.vector_store %arg13[%c16_33, %c0_34], %91 {strides = array<i32>} : memref<32x32xf32, #tpu.memory_space<vmem>>, vector<16x16xf32>,
    %93 = vector.extract_strided_slice %11 {offsets = [16, 16], sizes = [16, 16], strides = [1, 1]} : vector<32x32xbf16> to vector<16x16xbf16>
    %94 = vector.extract_strided_slice %13 {offsets = [16, 16], sizes = [16, 16], strides = [1, 1]} : vector<32x32xbf16> to vector<16x16xbf16>
    %95 = vector.extract_strided_slice %15 {offsets = [16, 16], sizes = [16, 16], strides = [1, 1]} : vector<32x32xbf16> to vector<16x16xbf16>
    %cst_35 = arith.constant dense<0.000000e+00> : vector<16x16xf32>
    %96 = tpu.matmul %93, %94, %cst_35 {dimension_numbers = #tpu.dot_dimension_numbers<[1], [1], [0], [0], [0, 0, 1, 0], [], []>} : vector<16x16xbf16>, vector<16x16xbf16>, vector<16x16xf32> -> vector<16x16xf32>
    %cst_36 = arith.constant 2.500000e-01 : f32
    %97 = vector.broadcast %cst_36 : f32 to vector<16x16xf32>
    %98 = arith.mulf %96, %97 : vector<16x16xf32>
    %cst_37 = arith.constant -1.000000e+09 : f32
    %99 = vector.shape_cast %69 : vector<1x16xi1> to vector<1x16xi1>
    %100 = vector.broadcast %99 : vector<1x16xi1> to vector<16x16xi1>
    %101 = vector.broadcast %cst_37 : f32 to vector<16x16xf32>
    %102 = arith.select %100, %101, %98 : vector<16x16xi1>, vector<16x16xf32>
    %cst_38 = arith.constant dense<0xFF800000> : vector<16xf32>
    %103 = vector.multi_reduction <maximumf>, %102, %cst_38 [1] : vector<16x16xf32> to vector<16xf32>
    %104 = vector.shape_cast %103 : vector<16xf32> to vector<16x1xf32>
    %105 = vector.broadcast %104 : vector<16x1xf32> to vector<16x16xf32>
    %106 = arith.subf %102, %105 : vector<16x16xf32>
    %107 = math.exp %106 : vector<16x16xf32>
    %cst_39 = arith.constant dense<0.000000e+00> : vector<16xf32>
    %108 = vector.multi_reduction <add>, %107, %cst_39 [1] : vector<16x16xf32> to vector<16xf32>
    %109 = vector.shape_cast %108 : vector<16xf32> to vector<16x1xf32>
    %110 = tpu.reciprocal %109 {approx = true} : vector<16x1xf32> -> vector<16x1xf32>
    %111 = vector.broadcast %110 : vector<16x1xf32> to vector<16x16xf32>
    %112 = arith.mulf %107, %111 : vector<16x16xf32>
    %113 = arith.truncf %112 : vector<16x16xf32> to vector<16x16xbf16>
    %cst_40 = arith.constant dense<0.000000e+00> : vector<16x16xf32>
    %114 = tpu.matmul %113, %95, %cst_40 {dimension_numbers = #tpu.dot_dimension_numbers<[1], [0], [0], [1], [0, 0, 1, 1], [], []>} : vector<16x16xbf16>, vector<16x16xbf16>, vector<16x16xf32> -> vector<16x16xf32>
    %c16_41 = arith.constant 16 : index
    %c16_42 = arith.constant 16 : index
    %115 = vector.load %arg13[%c16_41, %c16_42] : memref<32x32xf32, #tpu.memory_space<vmem>>, vector<16x16xf32>
    tpu.vector_store %arg13[%c16_41, %c16_42], %114 {strides = array<i32>} : memref<32x32xf32, #tpu.memory_space<vmem>>, vector<16x16xf32>,
    %c0_43 = arith.constant 0 : index
    %c0_44 = arith.constant 0 : index
    %116 = vector.load %arg13[%c0_43, %c0_44] : memref<32x32xf32, #tpu.memory_space<vmem>>, vector<32x32xf32>
    %117 = arith.truncf %116 : vector<32x32xf32> to vector<32x32xbf16>
    %c0_45 = arith.constant 0 : index
    %c0_46 = arith.constant 0 : index
    %c0_47 = arith.constant 0 : index
    %c0_48 = arith.constant 0 : index
    %118 = vector.load %arg5[%c0_45, %c0_46, %c0_47, %c0_48] : memref<1x1x32x32xbf16, #tpu.memory_space<vmem>>, vector<1x1x32x32xbf16>
    %119 = vector.shape_cast %118 : vector<1x1x32x32xbf16> to vector<32x32xbf16>
    %cst_49 = arith.constant dense<0.000000e+00> : vector<32x32xf32>
    %120 = tpu.matmul %117, %119, %cst_49 {dimension_numbers = #tpu.dot_dimension_numbers<[1], [0], [0], [1], [0, 0, 1, 1], [], []>} : vector<32x32xbf16>, vector<32x32xbf16>, vector<32x32xf32> -> vector<32x32xf32>
    %121 = arith.addf %9, %120 : vector<32x32xf32>
    %c0_50 = arith.constant 0 : index
    %c0_51 = arith.constant 0 : index
    %c0_52 = arith.constant 0 : index
    %c0_53 = arith.constant 0 : index
    %122 = vector.load %arg6[%c0_50, %c0_51, %c0_52, %c0_53] : memref<1x1x1x32xf32, #tpu.memory_space<vmem>>, vector<1x1x1x32xf32>
    %123 = vector.shape_cast %122 : vector<1x1x1x32xf32> to vector<1x32xf32>
    %c0_54 = arith.constant 0 : index
    %c0_55 = arith.constant 0 : index
    %c0_56 = arith.constant 0 : index
    %c0_57 = arith.constant 0 : index
    %124 = vector.load %arg7[%c0_54, %c0_55, %c0_56, %c0_57] : memref<1x1x1x32xf32, #tpu.memory_space<vmem>>, vector<1x1x1x32xf32>
    %125 = vector.shape_cast %124 : vector<1x1x1x32xf32> to vector<1x32xf32>
    %cst_58 = arith.constant dense<0.000000e+00> : vector<32xf32>
    %126 = vector.multi_reduction <add>, %121, %cst_58 [1] : vector<32x32xf32> to vector<32xf32>
    %127 = vector.shape_cast %126 : vector<32xf32> to vector<32x1xf32>
    %cst_59 = arith.constant 3.200000e+01 : f32
    %128 = vector.broadcast %cst_59 : f32 to vector<32x1xf32>
    %129 = arith.divf %127, %128 : vector<32x1xf32>
    %130 = vector.broadcast %129 : vector<32x1xf32> to vector<32x32xf32>
    %131 = arith.subf %121, %130 : vector<32x32xf32>
    %132 = arith.mulf %131, %131 : vector<32x32xf32>
    %cst_60 = arith.constant dense<0.000000e+00> : vector<32xf32>
    %133 = vector.multi_reduction <add>, %132, %cst_60 [1] : vector<32x32xf32> to vector<32xf32>
    %134 = vector.shape_cast %133 : vector<32xf32> to vector<32x1xf32>
    %cst_61 = arith.constant 3.200000e+01 : f32
    %135 = vector.broadcast %cst_61 : f32 to vector<32x1xf32>
    %136 = arith.divf %134, %135 : vector<32x1xf32>
    %137 = vector.broadcast %129 : vector<32x1xf32> to vector<32x32xf32>
    %138 = arith.subf %121, %137 : vector<32x32xf32>
    %cst_62 = arith.constant 9.99999974E-6 : f32
    %139 = vector.broadcast %cst_62 : f32 to vector<32x1xf32>
    %140 = arith.addf %136, %139 : vector<32x1xf32>
    %141 = math.rsqrt %140 : vector<32x1xf32>
    %142 = vector.broadcast %141 : vector<32x1xf32> to vector<32x32xf32>
    %143 = arith.mulf %138, %142 : vector<32x32xf32>
    %144 = vector.broadcast %123 : vector<1x32xf32> to vector<32x32xf32>
    %145 = arith.mulf %143, %144 : vector<32x32xf32>
    %146 = vector.broadcast %125 : vector<1x32xf32> to vector<32x32xf32>
    %147 = arith.addf %145, %146 : vector<32x32xf32>
    %148 = arith.truncf %147 : vector<32x32xf32> to vector<32x32xbf16>
    %c0_63 = arith.constant 0 : index
    %c0_64 = arith.constant 0 : index
    %c0_65 = arith.constant 0 : index
    %c0_66 = arith.constant 0 : index
    %149 = vector.load %arg8[%c0_63, %c0_64, %c0_65, %c0_66] : memref<1x1x32x64xbf16, #tpu.memory_space<vmem>>, vector<1x1x32x64xbf16>
    %150 = vector.shape_cast %149 : vector<1x1x32x64xbf16> to vector<32x64xbf16>
    %cst_67 = arith.constant dense<0.000000e+00> : vector<32x64xf32>
    %151 = tpu.matmul %148, %150, %cst_67 {dimension_numbers = #tpu.dot_dimension_numbers<[1], [0], [0], [1], [0, 0, 1, 1], [], []>} : vector<32x32xbf16>, vector<32x64xbf16>, vector<32x64xf32> -> vector<32x64xf32>
    %cst_68 = arith.constant 0.000000e+00 : f32
    %152 = vector.broadcast %cst_68 : f32 to vector<32x64xf32>
    %153 = arith.maximumf %151, %152 : vector<32x64xf32>
    %154 = arith.truncf %153 : vector<32x64xf32> to vector<32x64xbf16>
    %c0_69 = arith.constant 0 : index
    %c0_70 = arith.constant 0 : index
    %c0_71 = arith.constant 0 : index
    %c0_72 = arith.constant 0 : index
    %155 = vector.load %arg9[%c0_69, %c0_70, %c0_71, %c0_72] : memref<1x1x64x32xbf16, #tpu.memory_space<vmem>>, vector<1x1x64x32xbf16>
    %156 = vector.shape_cast %155 : vector<1x1x64x32xbf16> to vector<64x32xbf16>
    %cst_73 = arith.constant dense<0.000000e+00> : vector<32x32xf32>
    %157 = tpu.matmul %154, %156, %cst_73 {dimension_numbers = #tpu.dot_dimension_numbers<[1], [0], [0], [1], [0, 0, 1, 1], [], []>} : vector<32x64xbf16>, vector<64x32xbf16>, vector<32x32xf32> -> vector<32x32xf32>
    %158 = arith.addf %157, %147 : vector<32x32xf32>
    %c0_74 = arith.constant 0 : index
    %c0_75 = arith.constant 0 : index
    %c0_76 = arith.constant 0 : index
    %c0_77 = arith.constant 0 : index
    %159 = vector.load %arg10[%c0_74, %c0_75, %c0_76, %c0_77] : memref<1x1x1x32xf32, #tpu.memory_space<vmem>>, vector<1x1x1x32xf32>
    %160 = vector.shape_cast %159 : vector<1x1x1x32xf32> to vector<1x32xf32>
    %c0_78 = arith.constant 0 : index
    %c0_79 = arith.constant 0 : index
    %c0_80 = arith.constant 0 : index
    %c0_81 = arith.constant 0 : index
    %161 = vector.load %arg11[%c0_78, %c0_79, %c0_80, %c0_81] : memref<1x1x1x32xf32, #tpu.memory_space<vmem>>, vector<1x1x1x32xf32>
    %162 = vector.shape_cast %161 : vector<1x1x1x32xf32> to vector<1x32xf32>
    %cst_82 = arith.constant dense<0.000000e+00> : vector<32xf32>
    %163 = vector.multi_reduction <add>, %158, %cst_82 [1] : vector<32x32xf32> to vector<32xf32>
    %164 = vector.shape_cast %163 : vector<32xf32> to vector<32x1xf32>
    %cst_83 = arith.constant 3.200000e+01 : f32
    %165 = vector.broadcast %cst_83 : f32 to vector<32x1xf32>
    %166 = arith.divf %164, %165 : vector<32x1xf32>
    %167 = vector.broadcast %166 : vector<32x1xf32> to vector<32x32xf32>
    %168 = arith.subf %158, %167 : vector<32x32xf32>
    %169 = arith.mulf %168, %168 : vector<32x32xf32>
    %cst_84 = arith.constant dense<0.000000e+00> : vector<32xf32>
    %170 = vector.multi_reduction <add>, %169, %cst_84 [1] : vector<32x32xf32> to vector<32xf32>
    %171 = vector.shape_cast %170 : vector<32xf32> to vector<32x1xf32>
    %cst_85 = arith.constant 3.200000e+01 : f32
    %172 = vector.broadcast %cst_85 : f32 to vector<32x1xf32>
    %173 = arith.divf %171, %172 : vector<32x1xf32>
    %174 = vector.broadcast %166 : vector<32x1xf32> to vector<32x32xf32>
    %175 = arith.subf %158, %174 : vector<32x32xf32>
    %cst_86 = arith.constant 9.99999974E-6 : f32
    %176 = vector.broadcast %cst_86 : f32 to vector<32x1xf32>
    %177 = arith.addf %173, %176 : vector<32x1xf32>
    %178 = math.rsqrt %177 : vector<32x1xf32>
    %179 = vector.broadcast %178 : vector<32x1xf32> to vector<32x32xf32>
    %180 = arith.mulf %175, %179 : vector<32x32xf32>
    %181 = vector.broadcast %160 : vector<1x32xf32> to vector<32x32xf32>
    %182 = arith.mulf %180, %181 : vector<32x32xf32>
    %183 = vector.broadcast %162 : vector<1x32xf32> to vector<32x32xf32>
    %184 = arith.addf %182, %183 : vector<32x32xf32>
    %c0_87 = arith.constant 0 : index
    %c0_88 = arith.constant 0 : index
    %c0_89 = arith.constant 0 : index
    %185 = vector.load %arg12[%c0_87, %c0_88, %c0_89] : memref<1x32x32xf32, #tpu.memory_space<vmem>>, vector<1x32x32xf32>
    %186 = vector.shape_cast %185 : vector<1x32x32xf32> to vector<32x32xf32>
    %187 = vector.shape_cast %184 : vector<32x32xf32> to vector<1x32x32xf32>
    tpu.vector_store %arg12[%c0_87, %c0_88, %c0_89], %187 {strides = array<i32>} : memref<1x32x32xf32, #tpu.memory_space<vmem>>, vector<1x32x32xf32>,
    return
  }
  func.func @transform_0(%arg0: i32, %arg1: i32) -> (i32, i32, i32) {
    %c0_i32 = arith.constant 0 : i32
    %c0_i32_0 = arith.constant 0 : i32
    %c0_i32_1 = arith.constant 0 : i32
    return %arg0, %c0_i32, %c0_i32_0 : i32, i32, i32
  }
  func.func @transform_1(%arg0: i32, %arg1: i32) -> (i32, i32, i32) {
    %c0_i32 = arith.constant 0 : i32
    %c0_i32_0 = arith.constant 0 : i32
    %c0_i32_1 = arith.constant 0 : i32
    return %arg0, %c0_i32, %c0_i32_0 : i32, i32, i32
  }
  func.func @transform_2(%arg0: i32, %arg1: i32) -> (i32, i32, i32, i32) {
    %c0_i32 = arith.constant 0 : i32
    %c0_i32_0 = arith.constant 0 : i32
    %c0_i32_1 = arith.constant 0 : i32
    return %arg0, %arg1, %c0_i32, %c0_i32_0 : i32, i32, i32, i32
  }
  func.func @transform_3(%arg0: i32, %arg1: i32) -> (i32, i32, i32, i32) {
    %c0_i32 = arith.constant 0 : i32
    %c0_i32_0 = arith.constant 0 : i32
    %c0_i32_1 = arith.constant 0 : i32
    return %arg0, %arg1, %c0_i32, %c0_i32_0 : i32, i32, i32, i32
  }
  func.func @transform_4(%arg0: i32, %arg1: i32) -> (i32, i32, i32, i32) {
    %c0_i32 = arith.constant 0 : i32
    %c0_i32_0 = arith.constant 0 : i32
    %c0_i32_1 = arith.constant 0 : i32
    return %arg0, %arg1, %c0_i32, %c0_i32_0 : i32, i32, i32, i32
  }
  func.func @transform_5(%arg0: i32, %arg1: i32) -> (i32, i32, i32, i32) {
    %c0_i32 = arith.constant 0 : i32
    %c0_i32_0 = arith.constant 0 : i32
    %c0_i32_1 = arith.constant 0 : i32
    return %arg0, %arg1, %c0_i32, %c0_i32_0 : i32, i32, i32, i32
  }
  func.func @transform_6(%arg0: i32, %arg1: i32) -> (i32, i32, i32, i32) {
    %c0_i32 = arith.constant 0 : i32
    %c0_i32_0 = arith.constant 0 : i32
    %c0_i32_1 = arith.constant 0 : i32
    return %arg0, %arg1, %c0_i32, %c0_i32_0 : i32, i32, i32, i32
  }
  func.func @transform_7(%arg0: i32, %arg1: i32) -> (i32, i32, i32, i32) {
    %c0_i32 = arith.constant 0 : i32
    %c0_i32_0 = arith.constant 0 : i32
    %c0_i32_1 = arith.constant 0 : i32
    return %arg0, %arg1, %c0_i32, %c0_i32_0 : i32, i32, i32, i32
  }
  func.func @transform_8(%arg0: i32, %arg1: i32) -> (i32, i32, i32, i32) {
    %c0_i32 = arith.constant 0 : i32
    %c0_i32_0 = arith.constant 0 : i32
    %c0_i32_1 = arith.constant 0 : i32
    return %arg0, %arg1, %c0_i32, %c0_i32_0 : i32, i32, i32, i32
  }
  func.func @transform_9(%arg0: i32, %arg1: i32) -> (i32, i32, i32, i32) {
    %c0_i32 = arith.constant 0 : i32
    %c0_i32_0 = arith.constant 0 : i32
    %c0_i32_1 = arith.constant 0 : i32
    return %arg0, %arg1, %c0_i32, %c0_i32_0 : i32, i32, i32, i32
  }
  func.func @transform_10(%arg0: i32, %arg1: i32) -> (i32, i32, i32) {
    %c0_i32 = arith.constant 0 : i32
    %c0_i32_0 = arith.constant 0 : i32
    %c0_i32_1 = arith.constant 0 : i32
    return %arg0, %c0_i32, %c0_i32_0 : i32, i32, i32
  }
}

module attributes {stable_mosaic.version = 11 : i64} {
  func.func @_head_kernel(%arg0: i32, %arg1: memref<4x2x16x32xf32, #tpu.memory_space<vmem>>, %arg2: memref<128x512xbf16, #tpu.memory_space<vmem>>, %arg3: memref<1x512xf32, #tpu.memory_space<vmem>>, %arg4: memref<1x512xf32, #tpu.memory_space<vmem>>, %arg5: memref<512x128xbf16, #tpu.memory_space<vmem>>, %arg6: memref<1x128xf32, #tpu.memory_space<vmem>>, %arg7: memref<1x128xf32, #tpu.memory_space<vmem>>, %arg8: memref<128x1xf32, #tpu.memory_space<vmem>>, %arg9: memref<2x1xf32, #tpu.memory_space<vmem>>) attributes {dimension_semantics = [#tpu.dimension_semantics<arbitrary>], iteration_bounds = array<i64: 1>, scalar_prefetch = 0 : i64, scratch_operands = 0 : i64, tpu.core_type = #tpu.core_type<tc>, window_params = [{pipeline_mode = #tpu.pipeline_mode<synchronous>, transform_indices = @transform_0, window_bounds = array<i64: 4, 2, 16, 32>}, {pipeline_mode = #tpu.pipeline_mode<synchronous>, transform_indices = @transform_1, window_bounds = array<i64: 128, 512>}, {pipeline_mode = #tpu.pipeline_mode<synchronous>, transform_indices = @transform_2, window_bounds = array<i64: 1, 512>}, {pipeline_mode = #tpu.pipeline_mode<synchronous>, transform_indices = @transform_3, window_bounds = array<i64: 1, 512>}, {pipeline_mode = #tpu.pipeline_mode<synchronous>, transform_indices = @transform_4, window_bounds = array<i64: 512, 128>}, {pipeline_mode = #tpu.pipeline_mode<synchronous>, transform_indices = @transform_5, window_bounds = array<i64: 1, 128>}, {pipeline_mode = #tpu.pipeline_mode<synchronous>, transform_indices = @transform_6, window_bounds = array<i64: 1, 128>}, {pipeline_mode = #tpu.pipeline_mode<synchronous>, transform_indices = @transform_7, window_bounds = array<i64: 128, 1>}, {pipeline_mode = #tpu.pipeline_mode<synchronous>, transform_indices = @transform_8, window_bounds = array<i64: 2, 1>}]} {
    %c0 = arith.constant 0 : index
    %c0_0 = arith.constant 0 : index
    %c0_1 = arith.constant 0 : index
    %c0_2 = arith.constant 0 : index
    %0 = vector.load %arg1[%c0, %c0_0, %c0_1, %c0_2] : memref<4x2x16x32xf32, #tpu.memory_space<vmem>>, vector<1x2x16x32xf32>
    %1 = vector.shape_cast %0 : vector<1x2x16x32xf32> to vector<2x16x32xf32>
    %2 = vector.extract_strided_slice %1 {offsets = [0, 0, 0], sizes = [2, 8, 32], strides = [1, 1, 1]} : vector<2x16x32xf32> to vector<2x8x32xf32>
    %cst = arith.constant dense<0.000000e+00> : vector<2x32xf32>
    %3 = vector.multi_reduction <add>, %2, %cst [1] : vector<2x8x32xf32> to vector<2x32xf32>
    %4 = arith.truncf %3 : vector<2x32xf32> to vector<2x32xbf16>
    %c0_3 = arith.constant 0 : index
    %c0_4 = arith.constant 0 : index
    %5 = vector.load %arg2[%c0_3, %c0_4] : memref<128x512xbf16, #tpu.memory_space<vmem>>, vector<32x512xbf16>
    %cst_5 = arith.constant dense<0.000000e+00> : vector<2x512xf32>
    %6 = tpu.matmul %4, %5, %cst_5 {dimension_numbers = #tpu.dot_dimension_numbers<[1], [0], [0], [1], [0, 0, 1, 1], [], []>} : vector<2x32xbf16>, vector<32x512xbf16>, vector<2x512xf32> -> vector<2x512xf32>
    %c1 = arith.constant 1 : index
    %c0_6 = arith.constant 0 : index
    %c0_7 = arith.constant 0 : index
    %c0_8 = arith.constant 0 : index
    %7 = vector.load %arg1[%c1, %c0_6, %c0_7, %c0_8] : memref<4x2x16x32xf32, #tpu.memory_space<vmem>>, vector<1x2x16x32xf32>
    %8 = vector.shape_cast %7 : vector<1x2x16x32xf32> to vector<2x16x32xf32>
    %9 = vector.extract_strided_slice %8 {offsets = [0, 0, 0], sizes = [2, 8, 32], strides = [1, 1, 1]} : vector<2x16x32xf32> to vector<2x8x32xf32>
    %cst_9 = arith.constant dense<0.000000e+00> : vector<2x32xf32>
    %10 = vector.multi_reduction <add>, %9, %cst_9 [1] : vector<2x8x32xf32> to vector<2x32xf32>
    %11 = arith.truncf %10 : vector<2x32xf32> to vector<2x32xbf16>
    %c32 = arith.constant 32 : index
    %c0_10 = arith.constant 0 : index
    %12 = vector.load %arg2[%c32, %c0_10] : memref<128x512xbf16, #tpu.memory_space<vmem>>, vector<32x512xbf16>
    %cst_11 = arith.constant dense<0.000000e+00> : vector<2x512xf32>
    %13 = tpu.matmul %11, %12, %cst_11 {dimension_numbers = #tpu.dot_dimension_numbers<[1], [0], [0], [1], [0, 0, 1, 1], [], []>} : vector<2x32xbf16>, vector<32x512xbf16>, vector<2x512xf32> -> vector<2x512xf32>
    %14 = arith.addf %6, %13 : vector<2x512xf32>
    %c2 = arith.constant 2 : index
    %c0_12 = arith.constant 0 : index
    %c0_13 = arith.constant 0 : index
    %c0_14 = arith.constant 0 : index
    %15 = vector.load %arg1[%c2, %c0_12, %c0_13, %c0_14] : memref<4x2x16x32xf32, #tpu.memory_space<vmem>>, vector<1x2x16x32xf32>
    %16 = vector.shape_cast %15 : vector<1x2x16x32xf32> to vector<2x16x32xf32>
    %cst_15 = arith.constant dense<0.000000e+00> : vector<2x32xf32>
    %17 = vector.multi_reduction <add>, %16, %cst_15 [1] : vector<2x16x32xf32> to vector<2x32xf32>
    %18 = arith.truncf %17 : vector<2x32xf32> to vector<2x32xbf16>
    %c64 = arith.constant 64 : index
    %c0_16 = arith.constant 0 : index
    %19 = vector.load %arg2[%c64, %c0_16] : memref<128x512xbf16, #tpu.memory_space<vmem>>, vector<32x512xbf16>
    %cst_17 = arith.constant dense<0.000000e+00> : vector<2x512xf32>
    %20 = tpu.matmul %18, %19, %cst_17 {dimension_numbers = #tpu.dot_dimension_numbers<[1], [0], [0], [1], [0, 0, 1, 1], [], []>} : vector<2x32xbf16>, vector<32x512xbf16>, vector<2x512xf32> -> vector<2x512xf32>
    %21 = arith.addf %14, %20 : vector<2x512xf32>
    %c3 = arith.constant 3 : index
    %c0_18 = arith.constant 0 : index
    %c0_19 = arith.constant 0 : index
    %c0_20 = arith.constant 0 : index
    %22 = vector.load %arg1[%c3, %c0_18, %c0_19, %c0_20] : memref<4x2x16x32xf32, #tpu.memory_space<vmem>>, vector<1x2x16x32xf32>
    %23 = vector.shape_cast %22 : vector<1x2x16x32xf32> to vector<2x16x32xf32>
    %cst_21 = arith.constant dense<0.000000e+00> : vector<2x32xf32>
    %24 = vector.multi_reduction <add>, %23, %cst_21 [1] : vector<2x16x32xf32> to vector<2x32xf32>
    %25 = arith.truncf %24 : vector<2x32xf32> to vector<2x32xbf16>
    %c96 = arith.constant 96 : index
    %c0_22 = arith.constant 0 : index
    %26 = vector.load %arg2[%c96, %c0_22] : memref<128x512xbf16, #tpu.memory_space<vmem>>, vector<32x512xbf16>
    %cst_23 = arith.constant dense<0.000000e+00> : vector<2x512xf32>
    %27 = tpu.matmul %25, %26, %cst_23 {dimension_numbers = #tpu.dot_dimension_numbers<[1], [0], [0], [1], [0, 0, 1, 1], [], []>} : vector<2x32xbf16>, vector<32x512xbf16>, vector<2x512xf32> -> vector<2x512xf32>
    %28 = arith.addf %21, %27 : vector<2x512xf32>
    %c0_24 = arith.constant 0 : index
    %c0_25 = arith.constant 0 : index
    %29 = vector.load %arg3[%c0_24, %c0_25] : memref<1x512xf32, #tpu.memory_space<vmem>>, vector<1x512xf32>
    %c0_26 = arith.constant 0 : index
    %c0_27 = arith.constant 0 : index
    %30 = vector.load %arg4[%c0_26, %c0_27] : memref<1x512xf32, #tpu.memory_space<vmem>>, vector<1x512xf32>
    %cst_28 = arith.constant dense<0.000000e+00> : vector<2xf32>
    %31 = vector.multi_reduction <add>, %28, %cst_28 [1] : vector<2x512xf32> to vector<2xf32>
    %32 = vector.shape_cast %31 : vector<2xf32> to vector<2x1xf32>
    %cst_29 = arith.constant 5.120000e+02 : f32
    %33 = vector.broadcast %cst_29 : f32 to vector<2x1xf32>
    %34 = arith.divf %32, %33 : vector<2x1xf32>
    %35 = vector.broadcast %34 : vector<2x1xf32> to vector<2x512xf32>
    %36 = arith.subf %28, %35 : vector<2x512xf32>
    %37 = arith.mulf %36, %36 : vector<2x512xf32>
    %cst_30 = arith.constant dense<0.000000e+00> : vector<2xf32>
    %38 = vector.multi_reduction <add>, %37, %cst_30 [1] : vector<2x512xf32> to vector<2xf32>
    %39 = vector.shape_cast %38 : vector<2xf32> to vector<2x1xf32>
    %cst_31 = arith.constant 5.120000e+02 : f32
    %40 = vector.broadcast %cst_31 : f32 to vector<2x1xf32>
    %41 = arith.divf %39, %40 : vector<2x1xf32>
    %42 = vector.broadcast %34 : vector<2x1xf32> to vector<2x512xf32>
    %43 = arith.subf %28, %42 : vector<2x512xf32>
    %cst_32 = arith.constant 9.99999974E-6 : f32
    %44 = vector.broadcast %cst_32 : f32 to vector<2x1xf32>
    %45 = arith.addf %41, %44 : vector<2x1xf32>
    %46 = math.rsqrt %45 : vector<2x1xf32>
    %47 = vector.broadcast %46 : vector<2x1xf32> to vector<2x512xf32>
    %48 = arith.mulf %43, %47 : vector<2x512xf32>
    %49 = vector.broadcast %29 : vector<1x512xf32> to vector<2x512xf32>
    %50 = arith.mulf %48, %49 : vector<2x512xf32>
    %51 = vector.broadcast %30 : vector<1x512xf32> to vector<2x512xf32>
    %52 = arith.addf %50, %51 : vector<2x512xf32>
    %cst_33 = arith.constant 0.000000e+00 : f32
    %53 = vector.broadcast %cst_33 : f32 to vector<2x512xf32>
    %54 = arith.maximumf %52, %53 : vector<2x512xf32>
    %55 = arith.truncf %54 : vector<2x512xf32> to vector<2x512xbf16>
    %c0_34 = arith.constant 0 : index
    %c0_35 = arith.constant 0 : index
    %56 = vector.load %arg5[%c0_34, %c0_35] : memref<512x128xbf16, #tpu.memory_space<vmem>>, vector<512x128xbf16>
    %cst_36 = arith.constant dense<0.000000e+00> : vector<2x128xf32>
    %57 = tpu.matmul %55, %56, %cst_36 {dimension_numbers = #tpu.dot_dimension_numbers<[1], [0], [0], [1], [0, 0, 1, 1], [], []>} : vector<2x512xbf16>, vector<512x128xbf16>, vector<2x128xf32> -> vector<2x128xf32>
    %c0_37 = arith.constant 0 : index
    %c0_38 = arith.constant 0 : index
    %58 = vector.load %arg6[%c0_37, %c0_38] : memref<1x128xf32, #tpu.memory_space<vmem>>, vector<1x128xf32>
    %c0_39 = arith.constant 0 : index
    %c0_40 = arith.constant 0 : index
    %59 = vector.load %arg7[%c0_39, %c0_40] : memref<1x128xf32, #tpu.memory_space<vmem>>, vector<1x128xf32>
    %cst_41 = arith.constant dense<0.000000e+00> : vector<2xf32>
    %60 = vector.multi_reduction <add>, %57, %cst_41 [1] : vector<2x128xf32> to vector<2xf32>
    %61 = vector.shape_cast %60 : vector<2xf32> to vector<2x1xf32>
    %cst_42 = arith.constant 1.280000e+02 : f32
    %62 = vector.broadcast %cst_42 : f32 to vector<2x1xf32>
    %63 = arith.divf %61, %62 : vector<2x1xf32>
    %64 = vector.broadcast %63 : vector<2x1xf32> to vector<2x128xf32>
    %65 = arith.subf %57, %64 : vector<2x128xf32>
    %66 = arith.mulf %65, %65 : vector<2x128xf32>
    %cst_43 = arith.constant dense<0.000000e+00> : vector<2xf32>
    %67 = vector.multi_reduction <add>, %66, %cst_43 [1] : vector<2x128xf32> to vector<2xf32>
    %68 = vector.shape_cast %67 : vector<2xf32> to vector<2x1xf32>
    %cst_44 = arith.constant 1.280000e+02 : f32
    %69 = vector.broadcast %cst_44 : f32 to vector<2x1xf32>
    %70 = arith.divf %68, %69 : vector<2x1xf32>
    %71 = vector.broadcast %63 : vector<2x1xf32> to vector<2x128xf32>
    %72 = arith.subf %57, %71 : vector<2x128xf32>
    %cst_45 = arith.constant 9.99999974E-6 : f32
    %73 = vector.broadcast %cst_45 : f32 to vector<2x1xf32>
    %74 = arith.addf %70, %73 : vector<2x1xf32>
    %75 = math.rsqrt %74 : vector<2x1xf32>
    %76 = vector.broadcast %75 : vector<2x1xf32> to vector<2x128xf32>
    %77 = arith.mulf %72, %76 : vector<2x128xf32>
    %78 = vector.broadcast %58 : vector<1x128xf32> to vector<2x128xf32>
    %79 = arith.mulf %77, %78 : vector<2x128xf32>
    %80 = vector.broadcast %59 : vector<1x128xf32> to vector<2x128xf32>
    %81 = arith.addf %79, %80 : vector<2x128xf32>
    %cst_46 = arith.constant 0.000000e+00 : f32
    %82 = vector.broadcast %cst_46 : f32 to vector<2x128xf32>
    %83 = arith.maximumf %81, %82 : vector<2x128xf32>
    %c0_47 = arith.constant 0 : index
    %c0_48 = arith.constant 0 : index
    %84 = vector.load %arg8[%c0_47, %c0_48] : memref<128x1xf32, #tpu.memory_space<vmem>>, vector<128x1xf32>
    %cst_49 = arith.constant dense<0.000000e+00> : vector<2x1xf32>
    %85 = tpu.matmul %83, %84, %cst_49 {dimension_numbers = #tpu.dot_dimension_numbers<[1], [0], [0], [1], [0, 0, 1, 1], [], []>} : vector<2x128xf32>, vector<128x1xf32>, vector<2x1xf32> -> vector<2x1xf32>
    %c0_50 = arith.constant 0 : index
    %c0_51 = arith.constant 0 : index
    %86 = vector.load %arg9[%c0_50, %c0_51] : memref<2x1xf32, #tpu.memory_space<vmem>>, vector<2x1xf32>
    tpu.vector_store %arg9[%c0_50, %c0_51], %85 {strides = array<i32>} : memref<2x1xf32, #tpu.memory_space<vmem>>, vector<2x1xf32>,
    return
  }
  func.func @transform_0(%arg0: i32) -> (i32, i32, i32, i32) {
    %c0_i32 = arith.constant 0 : i32
    %c0_i32_0 = arith.constant 0 : i32
    %c0_i32_1 = arith.constant 0 : i32
    %c0_i32_2 = arith.constant 0 : i32
    %c0_i32_3 = arith.constant 0 : i32
    return %c0_i32, %c0_i32_0, %c0_i32_1, %c0_i32_2 : i32, i32, i32, i32
  }
  func.func @transform_1(%arg0: i32) -> (i32, i32) {
    %c0_i32 = arith.constant 0 : i32
    %c0_i32_0 = arith.constant 0 : i32
    %c0_i32_1 = arith.constant 0 : i32
    return %c0_i32, %c0_i32_0 : i32, i32
  }
  func.func @transform_2(%arg0: i32) -> (i32, i32) {
    %c0_i32 = arith.constant 0 : i32
    %c0_i32_0 = arith.constant 0 : i32
    %c0_i32_1 = arith.constant 0 : i32
    return %c0_i32, %c0_i32_0 : i32, i32
  }
  func.func @transform_3(%arg0: i32) -> (i32, i32) {
    %c0_i32 = arith.constant 0 : i32
    %c0_i32_0 = arith.constant 0 : i32
    %c0_i32_1 = arith.constant 0 : i32
    return %c0_i32, %c0_i32_0 : i32, i32
  }
  func.func @transform_4(%arg0: i32) -> (i32, i32) {
    %c0_i32 = arith.constant 0 : i32
    %c0_i32_0 = arith.constant 0 : i32
    %c0_i32_1 = arith.constant 0 : i32
    return %c0_i32, %c0_i32_0 : i32, i32
  }
  func.func @transform_5(%arg0: i32) -> (i32, i32) {
    %c0_i32 = arith.constant 0 : i32
    %c0_i32_0 = arith.constant 0 : i32
    %c0_i32_1 = arith.constant 0 : i32
    return %c0_i32, %c0_i32_0 : i32, i32
  }
  func.func @transform_6(%arg0: i32) -> (i32, i32) {
    %c0_i32 = arith.constant 0 : i32
    %c0_i32_0 = arith.constant 0 : i32
    %c0_i32_1 = arith.constant 0 : i32
    return %c0_i32, %c0_i32_0 : i32, i32
  }
  func.func @transform_7(%arg0: i32) -> (i32, i32) {
    %c0_i32 = arith.constant 0 : i32
    %c0_i32_0 = arith.constant 0 : i32
    %c0_i32_1 = arith.constant 0 : i32
    return %c0_i32, %c0_i32_0 : i32, i32
  }
  func.func @transform_8(%arg0: i32) -> (i32, i32) {
    %c0_i32 = arith.constant 0 : i32
    %c0_i32_0 = arith.constant 0 : i32
    %c0_i32_1 = arith.constant 0 : i32
    return %c0_i32, %c0_i32_0 : i32, i32
  }
}

</mosaic_0001>

<llo_original>
// kernel: mrbdta_forward.3
$region0: #{mrbdta_forward.3}
  #allocation0 [shape = 'u32[]', space=smem, size = 0x4, offset = 0x4, fixed_abs, tag = 'smem constant byte address 0x4 - core index']
  #allocation1 [shape = 'u32[144,128]{1,0:T(1,128)}', space=vmem, size = 0x12000, scoped, tag = 'internal scratch']
  #allocation2 [shape = 'f32[32,32]{1,0:T(8,128)}', space=vmem, size = 0x4000, scoped, tag = 'scratch operand']
  %s0 = inlined_call_operand.vmem [shape: f32[2,32,32], index: 0, kind: input, shape index: {}]
  %s1 = inlined_call_operand.vmem [shape: f32[2,2,16], index: 1, kind: input, shape index: {}]
  %s2 = inlined_call_operand.vmem [shape: bf16[2,2,32,128], index: 2, kind: input, shape index: {}]
  %s3 = inlined_call_operand.vmem [shape: bf16[2,2,32,32], index: 3, kind: input, shape index: {}]
  %s4 = inlined_call_operand.vmem [shape: f32[2,2,1,32], index: 4, kind: input, shape index: {}]
  %s5 = inlined_call_operand.vmem [shape: f32[2,2,1,32], index: 5, kind: input, shape index: {}]
  %s6 = inlined_call_operand.vmem [shape: bf16[2,2,32,64], index: 6, kind: input, shape index: {}]
  %s7 = inlined_call_operand.vmem [shape: bf16[2,2,64,32], index: 7, kind: input, shape index: {}]
  %s8 = inlined_call_operand.vmem [shape: f32[2,2,1,32], index: 8, kind: input, shape index: {}]
  %s9 = inlined_call_operand.vmem [shape: f32[2,2,1,32], index: 9, kind: input, shape index: {}]
  %s10 = inlined_call_operand.vmem [shape: f32[2,32,32], index: 10, kind: output, shape index: {}]
  %s11 = sld [smem:[#allocation0]]
  $region77: #{mrbdta_forward.3} parent=0
    _
  %s13 = ssub.s32 1, %s11
  %s14 = scalar_select 0, %s13, %s11
  loop: start=0, step=1, limit=6
  $region2: #{mrbdta_forward.3} parent=0 // loop_pre_header
    _
  $region3: #{mrbdta_forward.3} parent=0 // loop_header
    %s16 = sphi 0, %s20
    %p17 = scmp.ge.s32.totalorder %s16, 6
    %s23 = sphi 0, %s35
    %s24 = sphi 0, %s31
    %s25 = sphi 0, %s23
    %s26 = sphi 0, %s24
    %s27 = sphi 0, %s25
    %s28 = sphi 0, %s26
    %s38 = sphi 0, %s40
    %s41 = sphi 0, %s38
    %s42 = sphi 0, %s41
    %s58 = sphi 0, %s42
    %s64 = sphi 0, %s66
    %s67 = sphi 0, %s64
    %s68 = sphi 0, %s67
    %s84 = sphi 0, %s68
    %s92 = sphi 0, %s94
    %s95 = sphi 0, %s92
    %s96 = sphi 0, %s95
    %s112 = sphi 0, %s96
    %s120 = sphi 0, %s122
    %s123 = sphi 0, %s120
    %s124 = sphi 0, %s123
    %s140 = sphi 0, %s124
    %s148 = sphi 0, %s150
    %s151 = sphi 0, %s148
    %s152 = sphi 0, %s151
    %s168 = sphi 0, %s152
    %s176 = sphi 0, %s178
    %s179 = sphi 0, %s176
    %s180 = sphi 0, %s179
    %s196 = sphi 0, %s180
    %s204 = sphi 0, %s206
    %s207 = sphi 0, %s204
    %s208 = sphi 0, %s207
    %s224 = sphi 0, %s208
    %s232 = sphi 0, %s234
    %s235 = sphi 0, %s232
    %s236 = sphi 0, %s235
    %s252 = sphi 0, %s236
    %s260 = sphi 0, %s262
    %s263 = sphi 0, %s260
    %s264 = sphi 0, %s263
    %s280 = sphi 0, %s264
    %s288 = sphi 0, %s290
    %s291 = sphi 0, %s288
    %s292 = sphi 0, %s291
    %s308 = sphi 0, %s292
    %s314 = sphi 0, %s316
    %s317 = sphi 0, %s314
    %s318 = sphi 0, %s317
    %s334 = sphi 0, %s318
  $region4: #{mrbdta_forward.3} parent=0 // loop_header_branch
    %19 = sbr.rel (%p17) target = $region8
  $region5: #{mrbdta_forward.3} parent=0 // loop_body
    %s21 = ssub.s32 %s16, 1
    %s22 = ssub.s32 %s16, 2
    %s29 = sadd.s32 1, %s24
    %p30 = scmp.ge.s32.totalorder %s29, 2
    %s31 = scalar_select %p30, 0, %s29
    %s32 = sadd.s32 1, %s23
    %s33 = scalar_select %p30, %s32, %s23
    %p34 = scmp.ge.s32.totalorder %s33, 2
    %s35 = scalar_select %p34, 0, %s33
    %s36 = ssub.s32 %s23, %s35
    %p37 = scmp.eq.s32.totalorder %s36, 0
    %s39 = sadd.s32 %s38, 1
    %s40 = scalar_select %p37, %s38, %s39
    %p43 = pneg %p37
    %p44 = scmp.eq.s32.totalorder %s16, 3
    %p45 = por %p43, %p44
    %p46 = scmp.ne.s32.totalorder %s38, %s41
    %p47 = scmp.eq.s32.totalorder %s16, 0
    %p48 = por %p46, %p47
    %p49 = scmp.ne.s32.totalorder %s38, %s41
    %p50 = scmp.eq.s32.totalorder %s21, 3
    %p51 = por %p49, %p50
    %p52 = scmp.ne.s32.totalorder %s41, %s42
    %p53 = scmp.eq.s32.totalorder %s21, 0
    %p54 = por %p52, %p53
    %p55 = scmp.ne.s32.totalorder %s41, %s42
    %p56 = scmp.eq.s32.totalorder %s22, 3
    %p57 = por %p55, %p56
    %p59 = scmp.ne.s32.totalorder %s42, %s58
    %p60 = scmp.eq.s32.totalorder %s22, 0
    %p61 = por %p59, %p60
    %s62 = ssub.s32 %s23, %s35
    %p63 = scmp.eq.s32.totalorder %s62, 0
    %s65 = sadd.s32 %s64, 1
    %s66 = scalar_select %p63, %s64, %s65
    %p69 = pneg %p63
    %p70 = scmp.eq.s32.totalorder %s16, 3
    %p71 = por %p69, %p70
    %p72 = scmp.ne.s32.totalorder %s64, %s67
    %p73 = scmp.eq.s32.totalorder %s16, 0
    %p74 = por %p72, %p73
    %p75 = scmp.ne.s32.totalorder %s64, %s67
    %p76 = scmp.eq.s32.totalorder %s21, 3
    %p77 = por %p75, %p76
    %p78 = scmp.ne.s32.totalorder %s67, %s68
    %p79 = scmp.eq.s32.totalorder %s21, 0
    %p80 = por %p78, %p79
    %p81 = scmp.ne.s32.totalorder %s67, %s68
    %p82 = scmp.eq.s32.totalorder %s22, 3
    %p83 = por %p81, %p82
    %p85 = scmp.ne.s32.totalorder %s68, %s84
    %p86 = scmp.eq.s32.totalorder %s22, 0
    %p87 = por %p85, %p86
    %s88 = ssub.s32 %s23, %s35
    %s89 = ssub.s32 %s24, %s31
    %s90 = sor.u32 %s88, %s89
    %p91 = scmp.eq.s32.totalorder %s90, 0
    %s93 = sadd.s32 %s92, 1
    %s94 = scalar_select %p91, %s92, %s93
    %p97 = pneg %p91
    %p98 = scmp.eq.s32.totalorder %s16, 3
    %p99 = por %p97, %p98
    %p100 = scmp.ne.s32.totalorder %s92, %s95
    %p101 = scmp.eq.s32.totalorder %s16, 0
    %p102 = por %p100, %p101
    %p103 = scmp.ne.s32.totalorder %s92, %s95
    %p104 = scmp.eq.s32.totalorder %s21, 3
    %p105 = por %p103, %p104
    %p106 = scmp.ne.s32.totalorder %s95, %s96
    %p107 = scmp.eq.s32.totalorder %s21, 0
    %p108 = por %p106, %p107
    %p109 = scmp.ne.s32.totalorder %s95, %s96
    %p110 = scmp.eq.s32.totalorder %s22, 3
    %p111 = por %p109, %p110
    %p113 = scmp.ne.s32.totalorder %s96, %s112
    %p114 = scmp.eq.s32.totalorder %s22, 0
    %p115 = por %p113, %p114
    %s116 = ssub.s32 %s23, %s35
    %s117 = ssub.s32 %s24, %s31
    %s118 = sor.u32 %s116, %s117
    %p119 = scmp.eq.s32.totalorder %s118, 0
    %s121 = sadd.s32 %s120, 1
    %s122 = scalar_select %p119, %s120, %s121
    %p125 = pneg %p119
    %p126 = scmp.eq.s32.totalorder %s16, 3
    %p127 = por %p125, %p126
    %p128 = scmp.ne.s32.totalorder %s120, %s123
    %p129 = scmp.eq.s32.totalorder %s16, 0
    %p130 = por %p128, %p129
    %p131 = scmp.ne.s32.totalorder %s120, %s123
    %p132 = scmp.eq.s32.totalorder %s21, 3
    %p133 = por %p131, %p132
    %p134 = scmp.ne.s32.totalorder %s123, %s124
    %p135 = scmp.eq.s32.totalorder %s21, 0
    %p136 = por %p134, %p135
    %p137 = scmp.ne.s32.totalorder %s123, %s124
    %p138 = scmp.eq.s32.totalorder %s22, 3
    %p139 = por %p137, %p138
    %p141 = scmp.ne.s32.totalorder %s124, %s140
    %p142 = scmp.eq.s32.totalorder %s22, 0
    %p143 = por %p141, %p142
    %s144 = ssub.s32 %s23, %s35
    %s145 = ssub.s32 %s24, %s31
    %s146 = sor.u32 %s144, %s145
    %p147 = scmp.eq.s32.totalorder %s146, 0
    %s149 = sadd.s32 %s148, 1
    %s150 = scalar_select %p147, %s148, %s149
    %p153 = pneg %p147
    %p154 = scmp.eq.s32.totalorder %s16, 3
    %p155 = por %p153, %p154
    %p156 = scmp.ne.s32.totalorder %s148, %s151
    %p157 = scmp.eq.s32.totalorder %s16, 0
    %p158 = por %p156, %p157
    %p159 = scmp.ne.s32.totalorder %s148, %s151
    %p160 = scmp.eq.s32.totalorder %s21, 3
    %p161 = por %p159, %p160
    %p162 = scmp.ne.s32.totalorder %s151, %s152
    %p163 = scmp.eq.s32.totalorder %s21, 0
    %p164 = por %p162, %p163
    %p165 = scmp.ne.s32.totalorder %s151, %s152
    %p166 = scmp.eq.s32.totalorder %s22, 3
    %p167 = por %p165, %p166
    %p169 = scmp.ne.s32.totalorder %s152, %s168
    %p170 = scmp.eq.s32.totalorder %s22, 0
    %p171 = por %p169, %p170
    %s172 = ssub.s32 %s23, %s35
    %s173 = ssub.s32 %s24, %s31
    %s174 = sor.u32 %s172, %s173
    %p175 = scmp.eq.s32.totalorder %s174, 0
    %s177 = sadd.s32 %s176, 1
    %s178 = scalar_select %p175, %s176, %s177
    %p181 = pneg %p175
    %p182 = scmp.eq.s32.totalorder %s16, 3
    %p183 = por %p181, %p182
    %p184 = scmp.ne.s32.totalorder %s176, %s179
    %p185 = scmp.eq.s32.totalorder %s16, 0
    %p186 = por %p184, %p185
    %p187 = scmp.ne.s32.totalorder %s176, %s179
    %p188 = scmp.eq.s32.totalorder %s21, 3
    %p189 = por %p187, %p188
    %p190 = scmp.ne.s32.totalorder %s179, %s180
    %p191 = scmp.eq.s32.totalorder %s21, 0
    %p192 = por %p190, %p191
    %p193 = scmp.ne.s32.totalorder %s179, %s180
    %p194 = scmp.eq.s32.totalorder %s22, 3
    %p195 = por %p193, %p194
    %p197 = scmp.ne.s32.totalorder %s180, %s196
    %p198 = scmp.eq.s32.totalorder %s22, 0
    %p199 = por %p197, %p198
    %s200 = ssub.s32 %s23, %s35
    %s201 = ssub.s32 %s24, %s31
    %s202 = sor.u32 %s200, %s201
    %p203 = scmp.eq.s32.totalorder %s202, 0
    %s205 = sadd.s32 %s204, 1
    %s206 = scalar_select %p203, %s204, %s205
    %p209 = pneg %p203
    %p210 = scmp.eq.s32.totalorder %s16, 3
    %p211 = por %p209, %p210
    %p212 = scmp.ne.s32.totalorder %s204, %s207
    %p213 = scmp.eq.s32.totalorder %s16, 0
    %p214 = por %p212, %p213
    %p215 = scmp.ne.s32.totalorder %s204, %s207
    %p216 = scmp.eq.s32.totalorder %s21, 3
    %p217 = por %p215, %p216
    %p218 = scmp.ne.s32.totalorder %s207, %s208
    %p219 = scmp.eq.s32.totalorder %s21, 0
    %p220 = por %p218, %p219
    %p221 = scmp.ne.s32.totalorder %s207, %s208
    %p222 = scmp.eq.s32.totalorder %s22, 3
    %p223 = por %p221, %p222
    %p225 = scmp.ne.s32.totalorder %s208, %s224
    %p226 = scmp.eq.s32.totalorder %s22, 0
    %p227 = por %p225, %p226
    %s228 = ssub.s32 %s23, %s35
    %s229 = ssub.s32 %s24, %s31
    %s230 = sor.u32 %s228, %s229
    %p231 = scmp.eq.s32.totalorder %s230, 0
    %s233 = sadd.s32 %s232, 1
    %s234 = scalar_select %p231, %s232, %s233
    %p237 = pneg %p231
    %p238 = scmp.eq.s32.totalorder %s16, 3
    %p239 = por %p237, %p238
    %p240 = scmp.ne.s32.totalorder %s232, %s235
    %p241 = scmp.eq.s32.totalorder %s16, 0
    %p242 = por %p240, %p241
    %p243 = scmp.ne.s32.totalorder %s232, %s235
    %p244 = scmp.eq.s32.totalorder %s21, 3
    %p245 = por %p243, %p244
    %p246 = scmp.ne.s32.totalorder %s235, %s236
    %p247 = scmp.eq.s32.totalorder %s21, 0
    %p248 = por %p246, %p247
    %p249 = scmp.ne.s32.totalorder %s235, %s236
    %p250 = scmp.eq.s32.totalorder %s22, 3
    %p251 = por %p249, %p250
    %p253 = scmp.ne.s32.totalorder %s236, %s252
    %p254 = scmp.eq.s32.totalorder %s22, 0
    %p255 = por %p253, %p254
    %s256 = ssub.s32 %s23, %s35
    %s257 = ssub.s32 %s24, %s31
    %s258 = sor.u32 %s256, %s257
    %p259 = scmp.eq.s32.totalorder %s258, 0
    %s261 = sadd.s32 %s260, 1
    %s262 = scalar_select %p259, %s260, %s261
    %p265 = pneg %p259
    %p266 = scmp.eq.s32.totalorder %s16, 3
    %p267 = por %p265, %p266
    %p268 = scmp.ne.s32.totalorder %s260, %s263
    %p269 = scmp.eq.s32.totalorder %s16, 0
    %p270 = por %p268, %p269
    %p271 = scmp.ne.s32.totalorder %s260, %s263
    %p272 = scmp.eq.s32.totalorder %s21, 3
    %p273 = por %p271, %p272
    %p274 = scmp.ne.s32.totalorder %s263, %s264
    %p275 = scmp.eq.s32.totalorder %s21, 0
    %p276 = por %p274, %p275
    %p277 = scmp.ne.s32.totalorder %s263, %s264
    %p278 = scmp.eq.s32.totalorder %s22, 3
    %p279 = por %p277, %p278
    %p281 = scmp.ne.s32.totalorder %s264, %s280
    %p282 = scmp.eq.s32.totalorder %s22, 0
    %p283 = por %p281, %p282
    %s284 = ssub.s32 %s23, %s35
    %s285 = ssub.s32 %s24, %s31
    %s286 = sor.u32 %s284, %s285
    %p287 = scmp.eq.s32.totalorder %s286, 0
    %s289 = sadd.s32 %s288, 1
    %s290 = scalar_select %p287, %s288, %s289
    %p293 = pneg %p287
    %p294 = scmp.eq.s32.totalorder %s16, 3
    %p295 = por %p293, %p294
    %p296 = scmp.ne.s32.totalorder %s288, %s291
    %p297 = scmp.eq.s32.totalorder %s16, 0
    %p298 = por %p296, %p297
    %p299 = scmp.ne.s32.totalorder %s288, %s291
    %p300 = scmp.eq.s32.totalorder %s21, 3
    %p301 = por %p299, %p300
    %p302 = scmp.ne.s32.totalorder %s291, %s292
    %p303 = scmp.eq.s32.totalorder %s21, 0
    %p304 = por %p302, %p303
    %p305 = scmp.ne.s32.totalorder %s291, %s292
    %p306 = scmp.eq.s32.totalorder %s22, 3
    %p307 = por %p305, %p306
    %p309 = scmp.ne.s32.totalorder %s292, %s308
    %p310 = scmp.eq.s32.totalorder %s22, 0
    %p311 = por %p309, %p310
    %s312 = ssub.s32 %s23, %s35
    %p313 = scmp.eq.s32.totalorder %s312, 0
    %s315 = sadd.s32 %s314, 1
    %s316 = scalar_select %p313, %s314, %s315
    %p319 = pneg %p313
    %p320 = scmp.eq.s32.totalorder %s16, 3
    %p321 = por %p319, %p320
    %p322 = scmp.ne.s32.totalorder %s314, %s317
    %p323 = scmp.eq.s32.totalorder %s16, 0
    %p324 = por %p322, %p323
    %p325 = scmp.ne.s32.totalorder %s314, %s317
    %p326 = scmp.eq.s32.totalorder %s21, 3
    %p327 = por %p325, %p326
    %p328 = scmp.ne.s32.totalorder %s317, %s318
    %p329 = scmp.eq.s32.totalorder %s21, 0
    %p330 = por %p328, %p329
    %p331 = scmp.ne.s32.totalorder %s317, %s318
    %p332 = scmp.eq.s32.totalorder %s22, 3
    %p333 = por %p331, %p332
    %p335 = scmp.ne.s32.totalorder %s318, %s334
    %p336 = scmp.eq.s32.totalorder %s22, 0
    %p337 = por %p335, %p336
    %p338 = scmp.le.s32.totalorder 1, %s16
    %p339 = scmp.lt.s32.totalorder %s16, 5
    %p340 = pnand %p338, %p339
    %p341 = pneg %p340
    // Predicated region
    $region9: #{mrbdta_forward.3} parent=5 // pred_check
      _
    $region10: #{mrbdta_forward.3} parent=5 // pred_check_branch
      %343 = sbr.rel (%p340) target = $region12
    $region11: #{mrbdta_forward.3} parent=5 // pred_region
      %s344 = ssub.s32 %s16, 1
    $region12: #{mrbdta_forward.3} parent=5 // pred_fallthru
      _
    %p345 = scmp.lt.s32.totalorder %s16, 4
    // Predicated region
    $region13: #{mrbdta_forward.3} parent=5 // pred_check
      %p346 = pneg %p345
    $region14: #{mrbdta_forward.3} parent=5 // pred_check_branch
      %348 = sbr.rel (%p346) target = $region16
    $region15: #{mrbdta_forward.3} parent=5 // pred_region
      // Predicated region
      $region17: #{mrbdta_forward.3} parent=15 // pred_check
        %p349 = pneg %p48
      $region18: #{mrbdta_forward.3} parent=15 // pred_check_branch
        %351 = sbr.rel (%p349) target = $region20
      $region19: #{mrbdta_forward.3} parent=15 // pred_region
        %p352 = scmp.lt.s32.totalorder %s23, 1
        %s353 = scalar_select %p352, %s23, 1
        %s354 = smul.addr %s353, 4
        %s355 = smul.addr %s354, 8
        %s356 = scalar_lea.vmem %s0, %s355
      $region20: #{mrbdta_forward.3} parent=15 // pred_fallthru
        _
      // Predicated region
      $region21: #{mrbdta_forward.3} parent=15 // pred_check
        %p357 = pneg %p74
      $region22: #{mrbdta_forward.3} parent=15 // pred_check_branch
        %359 = sbr.rel (%p357) target = $region24
      $region23: #{mrbdta_forward.3} parent=15 // pred_region
        %p360 = scmp.lt.s32.totalorder %s23, 1
        %s361 = scalar_select %p360, %s23, 1
        %s362 = smul.addr %s361, 2
        %s363 = scalar_lea.vmem %s1, %s362
      $region24: #{mrbdta_forward.3} parent=15 // pred_fallthru
        _
      // Predicated region
      $region25: #{mrbdta_forward.3} parent=15 // pred_check
        %p364 = pneg %p102
      $region26: #{mrbdta_forward.3} parent=15 // pred_check_branch
        %366 = sbr.rel (%p364) target = $region28
      $region27: #{mrbdta_forward.3} parent=15 // pred_region
        %p367 = scmp.lt.s32.totalorder %s23, 1
        %s368 = scalar_select %p367, %s23, 1
        %p369 = scmp.lt.s32.totalorder %s24, 1
        %s370 = scalar_select %p369, %s24, 1
        %s371 = smul.addr %s370, 4
        %s372 = smul.addr %s368, 8
        %s373 = sadd.s32 %s371, %s372
        %s374 = smul.addr %s373, 4
        %s375 = scalar_lea.vmem %s2, %s374
      $region28: #{mrbdta_forward.3} parent=15 // pred_fallthru
        _
      // Predicated region
      $region29: #{mrbdta_forward.3} parent=15 // pred_check
        %p376 = pneg %p130
      $region30: #{mrbdta_forward.3} parent=15 // pred_check_branch
        %378 = sbr.rel (%p376) target = $region32
      $region31: #{mrbdta_forward.3} parent=15 // pred_region
        %p379 = scmp.lt.s32.totalorder %s23, 1
        %s380 = scalar_select %p379, %s23, 1
        %p381 = scmp.lt.s32.totalorder %s24, 1
        %s382 = scalar_select %p381, %s24, 1
        %s383 = smul.addr %s382, 4
        %s384 = smul.addr %s380, 8
        %s385 = sadd.s32 %s383, %s384
        %s386 = smul.addr %s385, 4
        %s387 = scalar_lea.vmem %s3, %s386
      $region32: #{mrbdta_forward.3} parent=15 // pred_fallthru
        _
      // Predicated region
      $region33: #{mrbdta_forward.3} parent=15 // pred_check
        %p388 = pneg %p158
      $region34: #{mrbdta_forward.3} parent=15 // pred_check_branch
        %390 = sbr.rel (%p388) target = $region36
      $region35: #{mrbdta_forward.3} parent=15 // pred_region
        %p391 = scmp.lt.s32.totalorder %s23, 1
        %s392 = scalar_select %p391, %s23, 1
        %p393 = scmp.lt.s32.totalorder %s24, 1
        %s394 = scalar_select %p393, %s24, 1
        %s395 = smul.addr %s392, 2
        %s396 = sadd.s32 %s394, %s395
        %s397 = scalar_lea.vmem %s4, %s396
      $region36: #{mrbdta_forward.3} parent=15 // pred_fallthru
        _
      // Predicated region
      $region37: #{mrbdta_forward.3} parent=15 // pred_check
        %p398 = pneg %p186
      $region38: #{mrbdta_forward.3} parent=15 // pred_check_branch
        %400 = sbr.rel (%p398) target = $region40
      $region39: #{mrbdta_forward.3} parent=15 // pred_region
        %p401 = scmp.lt.s32.totalorder %s23, 1
        %s402 = scalar_select %p401, %s23, 1
        %p403 = scmp.lt.s32.totalorder %s24, 1
        %s404 = scalar_select %p403, %s24, 1
        %s405 = smul.addr %s402, 2
        %s406 = sadd.s32 %s404, %s405
        %s407 = scalar_lea.vmem %s5, %s406
      $region40: #{mrbdta_forward.3} parent=15 // pred_fallthru
        _
      // Predicated region
      $region41: #{mrbdta_forward.3} parent=15 // pred_check
        %p408 = pneg %p214
      $region42: #{mrbdta_forward.3} parent=15 // pred_check_branch
        %410 = sbr.rel (%p408) target = $region44
      $region43: #{mrbdta_forward.3} parent=15 // pred_region
        %p411 = scmp.lt.s32.totalorder %s23, 1
        %s412 = scalar_select %p411, %s23, 1
        %p413 = scmp.lt.s32.totalorder %s24, 1
        %s414 = scalar_select %p413, %s24, 1
        %s415 = smul.addr %s414, 4
        %s416 = smul.addr %s412, 8
        %s417 = sadd.s32 %s415, %s416
        %s418 = smul.addr %s417, 4
        %s419 = scalar_lea.vmem %s6, %s418
      $region44: #{mrbdta_forward.3} parent=15 // pred_fallthru
        _
      // Predicated region
      $region45: #{mrbdta_forward.3} parent=15 // pred_check
        %p420 = pneg %p242
      $region46: #{mrbdta_forward.3} parent=15 // pred_check_branch
        %422 = sbr.rel (%p420) target = $region48
      $region47: #{mrbdta_forward.3} parent=15 // pred_region
        %p423 = scmp.lt.s32.totalorder %s23, 1
        %s424 = scalar_select %p423, %s23, 1
        %p425 = scmp.lt.s32.totalorder %s24, 1
        %s426 = scalar_select %p425, %s24, 1
        %s427 = smul.addr %s426, 8
        %s428 = smul.addr %s424, 16
        %s429 = sadd.s32 %s427, %s428
        %s430 = smul.addr %s429, 4
        %s431 = scalar_lea.vmem %s7, %s430
      $region48: #{mrbdta_forward.3} parent=15 // pred_fallthru
        _
      // Predicated region
      $region49: #{mrbdta_forward.3} parent=15 // pred_check
        %p432 = pneg %p270
      $region50: #{mrbdta_forward.3} parent=15 // pred_check_branch
        %434 = sbr.rel (%p432) target = $region52
      $region51: #{mrbdta_forward.3} parent=15 // pred_region
        %p435 = scmp.lt.s32.totalorder %s23, 1
        %s436 = scalar_select %p435, %s23, 1
        %p437 = scmp.lt.s32.totalorder %s24, 1
        %s438 = scalar_select %p437, %s24, 1
        %s439 = smul.addr %s436, 2
        %s440 = sadd.s32 %s438, %s439
        %s441 = scalar_lea.vmem %s8, %s440
      $region52: #{mrbdta_forward.3} parent=15 // pred_fallthru
        _
      // Predicated region
      $region53: #{mrbdta_forward.3} parent=15 // pred_check
        %p442 = pneg %p298
      $region54: #{mrbdta_forward.3} parent=15 // pred_check_branch
        %444 = sbr.rel (%p442) target = $region56
      $region55: #{mrbdta_forward.3} parent=15 // pred_region
        %p445 = scmp.lt.s32.totalorder %s23, 1
        %s446 = scalar_select %p445, %s23, 1
        %p447 = scmp.lt.s32.totalorder %s24, 1
        %s448 = scalar_select %p447, %s24, 1
        %s449 = smul.addr %s446, 2
        %s450 = sadd.s32 %s448, %s449
        %s451 = scalar_lea.vmem %s9, %s450
      $region56: #{mrbdta_forward.3} parent=15 // pred_fallthru
        _
    $region16: #{mrbdta_forward.3} parent=5 // pred_fallthru
      _
    %p452 = scmp.le.s32.totalorder 1, %s16
    %p453 = scmp.lt.s32.totalorder %s16, 5
    %p454 = pnand %p452, %p453
    %p455 = pneg %p454
    // Predicated region
    $region57: #{mrbdta_forward.3} parent=5 // pred_check
      _
    $region58: #{mrbdta_forward.3} parent=5 // pred_check_branch
      %457 = sbr.rel (%p454) target = $region60
    $region59: #{mrbdta_forward.3} parent=5 // pred_region
      %s458 = ssub.s32 %s16, 1
      %p459 = scmp.lt.s32.totalorder %s25, 1
      %s460 = scalar_select %p459, %s25, 1
      %s461 = smul.addr %s460, 4
      %s462 = smul.addr %s461, 8
      %s463 = scalar_lea.vmem %s0, %s462
      %p464 = pneg %p54
      %p465 = pneg %p51
      %p466 = scmp.lt.s32.totalorder %s25, 1
      %s467 = scalar_select %p466, %s25, 1
      %s468 = smul.addr %s467, 2
      %s469 = scalar_lea.vmem %s1, %s468
      %p470 = pneg %p80
      %p471 = pneg %p77
      %p472 = scmp.lt.s32.totalorder %s25, 1
      %s473 = scalar_select %p472, %s25, 1
      %p474 = scmp.lt.s32.totalorder %s26, 1
      %s475 = scalar_select %p474, %s26, 1
      %s476 = smul.addr %s475, 4
      %s477 = smul.addr %s473, 8
      %s478 = sadd.s32 %s476, %s477
      %s479 = smul.addr %s478, 4
      %s480 = scalar_lea.vmem %s2, %s479
      %p481 = pneg %p108
      %p482 = pneg %p105
      %p483 = scmp.lt.s32.totalorder %s25, 1
      %s484 = scalar_select %p483, %s25, 1
      %p485 = scmp.lt.s32.totalorder %s26, 1
      %s486 = scalar_select %p485, %s26, 1
      %s487 = smul.addr %s486, 4
      %s488 = smul.addr %s484, 8
      %s489 = sadd.s32 %s487, %s488
      %s490 = smul.addr %s489, 4
      %s491 = scalar_lea.vmem %s3, %s490
      %p492 = pneg %p136
      %p493 = pneg %p133
      %p494 = scmp.lt.s32.totalorder %s25, 1
      %s495 = scalar_select %p494, %s25, 1
      %p496 = scmp.lt.s32.totalorder %s26, 1
      %s497 = scalar_select %p496, %s26, 1
      %s498 = smul.addr %s495, 2
      %s499 = sadd.s32 %s497, %s498
      %s500 = scalar_lea.vmem %s4, %s499
      %p501 = pneg %p164
      %p502 = pneg %p161
      %p503 = scmp.lt.s32.totalorder %s25, 1
      %s504 = scalar_select %p503, %s25, 1
      %p505 = scmp.lt.s32.totalorder %s26, 1
      %s506 = scalar_select %p505, %s26, 1
      %s507 = smul.addr %s504, 2
      %s508 = sadd.s32 %s506, %s507
      %s509 = scalar_lea.vmem %s5, %s508
      %p510 = pneg %p192
      %p511 = pneg %p189
      %p512 = scmp.lt.s32.totalorder %s25, 1
      %s513 = scalar_select %p512, %s25, 1
      %p514 = scmp.lt.s32.totalorder %s26, 1
      %s515 = scalar_select %p514, %s26, 1
      %s516 = smul.addr %s515, 4
      %s517 = smul.addr %s513, 8
      %s518 = sadd.s32 %s516, %s517
      %s519 = smul.addr %s518, 4
      %s520 = scalar_lea.vmem %s6, %s519
      %p521 = pneg %p220
      %p522 = pneg %p217
      %p523 = scmp.lt.s32.totalorder %s25, 1
      %s524 = scalar_select %p523, %s25, 1
      %p525 = scmp.lt.s32.totalorder %s26, 1
      %s526 = scalar_select %p525, %s26, 1
      %s527 = smul.addr %s526, 8
      %s528 = smul.addr %s524, 16
      %s529 = sadd.s32 %s527, %s528
      %s530 = smul.addr %s529, 4
      %s531 = scalar_lea.vmem %s7, %s530
      %p532 = pneg %p248
      %p533 = pneg %p245
      %p534 = scmp.lt.s32.totalorder %s25, 1
      %s535 = scalar_select %p534, %s25, 1
      %p536 = scmp.lt.s32.totalorder %s26, 1
      %s537 = scalar_select %p536, %s26, 1
      %s538 = smul.addr %s535, 2
      %s539 = sadd.s32 %s537, %s538
      %s540 = scalar_lea.vmem %s8, %s539
      %p541 = pneg %p276
      %p542 = pneg %p273
      %p543 = scmp.lt.s32.totalorder %s25, 1
      %s544 = scalar_select %p543, %s25, 1
      %p545 = scmp.lt.s32.totalorder %s26, 1
      %s546 = scalar_select %p545, %s26, 1
      %s547 = smul.addr %s544, 2
      %s548 = sadd.s32 %s546, %s547
      %s549 = scalar_lea.vmem %s9, %s548
      %p550 = pneg %p304
      %p551 = pneg %p301
      %p552 = pneg %p330
      %p553 = pneg %p327
      %p554 = scmp.lt.s32.totalorder %s25, 1
      %s555 = scalar_select %p554, %s25, 1
      %s556 = smul.addr %s555, 4
      %s557 = smul.addr %s556, 8
      %s558 = scalar_lea.vmem %s10, %s557
      %p559 = scmp.lt.s32.totalorder %s25, 1
      %s560 = scalar_select %p559, %s25, 1
      %s561 = smul.addr %s560, 4
      %s562 = smul.addr %s561, 8
      %s563 = scalar_lea.vmem %s0, %s562
      %p564 = scmp.lt.s32.totalorder %s25, 1
      %s565 = scalar_select %p564, %s25, 1
      %s566 = smul.addr %s565, 2
      %s567 = scalar_lea.vmem %s1, %s566
      %p568 = scmp.lt.s32.totalorder %s25, 1
      %s569 = scalar_select %p568, %s25, 1
      %p570 = scmp.lt.s32.totalorder %s26, 1
      %s571 = scalar_select %p570, %s26, 1
      %s572 = smul.addr %s571, 4
      %s573 = smul.addr %s569, 8
      %s574 = sadd.s32 %s572, %s573
      %s575 = smul.addr %s574, 4
      %s576 = scalar_lea.vmem %s2, %s575
      %p577 = scmp.lt.s32.totalorder %s25, 1
      %s578 = scalar_select %p577, %s25, 1
      %p579 = scmp.lt.s32.totalorder %s26, 1
      %s580 = scalar_select %p579, %s26, 1
      %s581 = smul.addr %s580, 4
      %s582 = smul.addr %s578, 8
      %s583 = sadd.s32 %s581, %s582
      %s584 = smul.addr %s583, 4
      %s585 = scalar_lea.vmem %s3, %s584
      %p586 = scmp.lt.s32.totalorder %s25, 1
      %s587 = scalar_select %p586, %s25, 1
      %p588 = scmp.lt.s32.totalorder %s26, 1
      %s589 = scalar_select %p588, %s26, 1
      %s590 = smul.addr %s587, 2
      %s591 = sadd.s32 %s589, %s590
      %s592 = scalar_lea.vmem %s4, %s591
      %p593 = scmp.lt.s32.totalorder %s25, 1
      %s594 = scalar_select %p593, %s25, 1
      %p595 = scmp.lt.s32.totalorder %s26, 1
      %s596 = scalar_select %p595, %s26, 1
      %s597 = smul.addr %s594, 2
      %s598 = sadd.s32 %s596, %s597
      %s599 = scalar_lea.vmem %s5, %s598
      %p600 = scmp.lt.s32.totalorder %s25, 1
      %s601 = scalar_select %p600, %s25, 1
      %p602 = scmp.lt.s32.totalorder %s26, 1
      %s603 = scalar_select %p602, %s26, 1
      %s604 = smul.addr %s603, 4
      %s605 = smul.addr %s601, 8
      %s606 = sadd.s32 %s604, %s605
      %s607 = smul.addr %s606, 4
      %s608 = scalar_lea.vmem %s6, %s607
      %p609 = scmp.lt.s32.totalorder %s25, 1
      %s610 = scalar_select %p609, %s25, 1
      %p611 = scmp.lt.s32.totalorder %s26, 1
      %s612 = scalar_select %p611, %s26, 1
      %s613 = smul.addr %s612, 8
      %s614 = smul.addr %s610, 16
      %s615 = sadd.s32 %s613, %s614
      %s616 = smul.addr %s615, 4
      %s617 = scalar_lea.vmem %s7, %s616
      %p618 = scmp.lt.s32.totalorder %s25, 1
      %s619 = scalar_select %p618, %s25, 1
      %p620 = scmp.lt.s32.totalorder %s26, 1
      %s621 = scalar_select %p620, %s26, 1
      %s622 = smul.addr %s619, 2
      %s623 = sadd.s32 %s621, %s622
      %s624 = scalar_lea.vmem %s8, %s623
      %p625 = scmp.lt.s32.totalorder %s25, 1
      %s626 = scalar_select %p625, %s25, 1
      %p627 = scmp.lt.s32.totalorder %s26, 1
      %s628 = scalar_select %p627, %s26, 1
      %s629 = smul.addr %s626, 2
      %s630 = sadd.s32 %s628, %s629
      %s631 = scalar_lea.vmem %s9, %s630
      %p632 = scmp.lt.s32.totalorder %s25, 1
      %s633 = scalar_select %p632, %s25, 1
      %s634 = smul.addr %s633, 4
      %s635 = smul.addr %s634, 8
      %s636 = scalar_lea.vmem %s10, %s635
      %p638 = scmp.eq.s32.totalorder %s26, 0
      // Predicated region
      $region61: #{mrbdta_forward.3} parent=59 // pred_check
        %p639 = pneg %p638
      $region62: #{mrbdta_forward.3} parent=59 // pred_check_branch
        %641 = sbr.rel (%p639) target = $region64
      $region63: #{mrbdta_forward.3} parent=59 // pred_region
        %v642 = vld [vmem:[%s563] sm:$0xff]
        %v643 = vld [vmem:[%s563 + $0x8] sm:$0xff]
        %v644 = vld [vmem:[%s563 + $0x10] sm:$0xff]
        %v645 = vld [vmem:[%s563 + $0x18] sm:$0xff]
        %vm646 = vcmask 261120
        %647 = vst.msk [vmem:[%s636] sm:$0xff] %vm646, %v642
        %648 = vst.msk [vmem:[%s636 + $0x8] sm:$0xff] %vm646, %v643
        %649 = vst.msk [vmem:[%s636 + $0x10] sm:$0xff] %vm646, %v644
        %650 = vst.msk [vmem:[%s636 + $0x18] sm:$0xff] %vm646, %v645
      $region64: #{mrbdta_forward.3} parent=59 // pred_fallthru
        _
      %v651 = vld [vmem:[%s636] sm:$0xff]
      %v652 = vld [vmem:[%s636 + $0x8] sm:$0xff]
      %v653 = vld [vmem:[%s636 + $0x10] sm:$0xff]
      %v654 = vld [vmem:[%s636 + $0x18] sm:$0xff]
      %v655 = vpack.c.bf16 %v652, %v651
      %v656 = vpack.c.bf16 %v654, %v653
      %v657 = vld [vmem:[%s576] sm:$0xf]
      %v658 = vld [vmem:[%s576 + $0x4] sm:$0xf]
      %v659 = vld [vmem:[%s576 + $0x8] sm:$0xf]
      %v660 = vld [vmem:[%s576 + $0xc] sm:$0xf]
      %v665 = vunpack.c.l.b16 %v657
      %v666 = vunpack.c.l.b16 %v658
      %v667 = vunpack.c.l.b16 %v659
      %v668 = vunpack.c.l.b16 %v660
      %v669 = vpack.c.b16 %v666, %v665
      %v670 = vpack.c.b16 %v668, %v667
      %vm673 = vcmask 261120
      %v675 = vsel %vm673, %v655, 0
      %v678 = vsel %vm673, %v656, 0
      %680 = vmatprep.subr.bf16.mxu0 0
      %681 = vmatpush1.bf16.msra.mxu0 0
      %682 = vmatprep.subr.bf16.mxu0 0
      %683 = vmatpush1.bf16.msra.mxu0 0
      %684 = vmatprep.subr.bf16.mxu0 0
      %685 = vmatpush1.bf16.msra.mxu0 0
      %686 = vmatprep.subr.bf16.mxu0 0
      %687 = vmatpush1.bf16.msra.mxu0 0
      %688 = vmatprep.subr.bf16.mxu0 0
      %689 = vmatpush1.bf16.msra.mxu0 0
      %690 = vmatprep.subr.bf16.mxu0 0
      %691 = vmatpush1.bf16.msra.mxu0 0
      %692 = vmatprep.subr.bf16.mxu0 0
      %693 = vmatpush1.bf16.msra.mxu0 %v670
      %694 = vmatprep.subr.bf16.mxu0 0
      %695 = vmatpush1.bf16.msra.mxu0 %v669
      %696 = vmatprep.subr.bf16.mxu0 0
      %697 = vmatpush2.bf16.msra.mxu0 0
      %698 = vmatprep.subr.bf16.mxu0 0
      %699 = vmatpush2.bf16.msra.mxu0 0
      %700 = vmatprep.subr.bf16.mxu0 0
      %701 = vmatpush2.bf16.msra.mxu0 0
      %702 = vmatprep.subr.bf16.mxu0 0
      %703 = vmatpush2.bf16.msra.mxu0 0
      %704 = vmatprep.subr.bf16.mxu0 0
      %705 = vmatpush2.bf16.msra.mxu0 0
      %706 = vmatprep.subr.bf16.mxu0 0
      %707 = vmatpush2.bf16.msra.mxu0 0
      %708 = vmatprep.subr.bf16.mxu0 0
      %709 = vmatpush2.bf16.msra.mxu0 0
      %710 = vmatprep.subr.bf16.mxu0 0
      %711 = vmatpush2.bf16.msra.mxu0 0
      %712 = vmatprep.mubr.bf16.mxu0 0
      %713 = vmatmul.mubr.bf16.gmra.mxu0 %v675
      %v714 = vpop.f32.mrf.mxu0
      %v715 = vadd.f32 0.0, %v714
      %v716 = vpop.f32.mrf.mxu0
      %v717 = vpop.f32.mrf.mxu0
      %v718 = vadd.f32 0.0, %v717
      %v719 = vpop.f32.mrf.mxu0
      %720 = vmatprep.mubr.bf16.mxu0 0
      %721 = vmatmul.mubr.bf16.gmra.mxu0 %v678
      %v722 = vpop.f32.mrf.mxu0
      %v723 = vadd.f32 0.0, %v722
      %v724 = vpop.f32.mrf.mxu0
      %v725 = vpop.f32.mrf.mxu0
      %v726 = vadd.f32 0.0, %v725
      %v727 = vpop.f32.mrf.mxu0
      %728 = vdwg.mxu0
      %v729 = vpack.c.bf16 %v718, %v715
      %v730 = vpack.c.bf16 %v726, %v723
      %v731 = vld [vmem:[%s567] sm:$0x3]
      %vm732 = vcmp.gt.f32.partialorder %v731, 0.5
      %734 = vrot.lane.b32.xlu0 %v729, 96
      %v735 = vpop.permute.xlu0 %734
      %736 = vrot.lane.b32.xlu0 %v729, 64
      %v737 = vpop.permute.xlu0 %736
      %vm738 = vcmask 130048
      %v740 = vsel %vm738, %v735, 0
      %v743 = vsel %vm738, %v737, 0
      %745 = vmatprep.subr.bf16.mxu0 0
      %746 = vmatpush1.bf16.xpose.msra.mxu0 0
      %747 = vmatprep.subr.bf16.mxu0 0
      %748 = vmatpush1.bf16.xpose.msra.mxu0 0
      %749 = vmatprep.subr.bf16.mxu0 0
      %750 = vmatpush1.bf16.xpose.msra.mxu0 0
      %751 = vmatprep.subr.bf16.mxu0 0
      %752 = vmatpush1.bf16.xpose.msra.mxu0 0
      %753 = vmatprep.subr.bf16.mxu0 0
      %754 = vmatpush1.bf16.xpose.msra.mxu0 0
      %755 = vmatprep.subr.bf16.mxu0 0
      %756 = vmatpush1.bf16.xpose.msra.mxu0 0
      %757 = vmatprep.subr.bf16.mxu0 0
      %758 = vmatpush1.bf16.xpose.msra.mxu0 0
      %759 = vmatprep.subr.bf16.mxu0 0
      %760 = vmatpush1.bf16.xpose.msra.mxu0 %v743
      %761 = vmatprep.subr.bf16.mxu0 0
      %762 = vmatpush2.bf16.xpose.msra.mxu0 0
      %763 = vmatprep.subr.bf16.mxu0 0
      %764 = vmatpush2.bf16.xpose.msra.mxu0 0
      %765 = vmatprep.subr.bf16.mxu0 0
      %766 = vmatpush2.bf16.xpose.msra.mxu0 0
      %767 = vmatprep.subr.bf16.mxu0 0
      %768 = vmatpush2.bf16.xpose.msra.mxu0 0
      %769 = vmatprep.subr.bf16.mxu0 0
      %770 = vmatpush2.bf16.xpose.msra.mxu0 0
      %771 = vmatprep.subr.bf16.mxu0 0
      %772 = vmatpush2.bf16.xpose.msra.mxu0 0
      %773 = vmatprep.subr.bf16.mxu0 0
      %774 = vmatpush2.bf16.xpose.msra.mxu0 0
      %775 = vmatprep.subr.bf16.mxu0 0
      %776 = vmatpush2.bf16.xpose.msra.mxu0 0
      %777 = vmatprep.mubr.bf16.mxu0 0
      %778 = vmatmul.mubr.bf16.gmra.mxu0 %v740
      %v779 = vpop.f32.mrf.mxu0
      %v780 = vadd.f32 0.0, %v779
      %v781 = vpop.f32.mrf.mxu0
      %v782 = vpop.f32.mrf.mxu0
      %v783 = vadd.f32 0.0, %v782
      %v784 = vpop.f32.mrf.mxu0
      %785 = vdwg.mxu0
      %v786 = vmul.f32 %v780, 0.25
      %v787 = vmul.f32 %v783, 0.25
      %v788 = vsel %vm732, 1, 0
      %v789 = vlaneseq
      %v790 = vshrl.u32 %v789, 7
      %v791 = vsub.s32 0, %v790
      %v792 = vrot.slane %v788, %v791
      %vm793 = vcmp.eq.s32.totalorder %v792, 1
      %v794 = vsel %vm793, -1e+09, %v786
      %v795 = vsel %vm793, -1e+09, %v787
      %v796 = vsel %vm738, %v794, -inf
      %797 = vmax.xlane.f32.xlu0 %v796
      %v798 = vpop.xlane.xlu0 %797
      %v799 = vsel %vm738, %v795, -inf
      %800 = vmax.xlane.f32.xlu0 %v799
      %v801 = vpop.xlane.xlu0 %800
      %v802 = vsub.f32 %v794, %v798
      %v803 = vsub.f32 %v795, %v801
      %v804 = vmul.f32 %v802, 1.442695
      %v805 = vpow.pop %v804
      %v806 = vmul.f32 %v803, 1.442695
      %v807 = vpow.pop %v806
      %v808 = vsel %vm738, %v805, 0.0
      %809 = vadd.xlane.f32.xlu0 %v808
      %v810 = vpop.xlane.xlu0 %809
      %v811 = vsel %vm738, %v807, 0.0
      %812 = vadd.xlane.f32.xlu0 %v811
      %v813 = vpop.xlane.xlu0 %812
      %v814 = vrcp.pop %v810
      %v815 = vrcp.pop %v813
      %v816 = vmul.f32 %v805, %v814
      %v817 = vmul.f32 %v807, %v815
      %v818 = vpack.c.bf16 %v817, %v816
      %819 = vrot.lane.b32.xlu0 %v729, 32
      %v820 = vpop.permute.xlu0 %819
      %v823 = vsel %vm738, %v818, 0
      %825 = vmatprep.subr.bf16.mxu0 0
      %826 = vmatpush1.bf16.msra.mxu0 0
      %827 = vmatprep.subr.bf16.mxu0 0
      %828 = vmatpush1.bf16.msra.mxu0 0
      %829 = vmatprep.subr.bf16.mxu0 0
      %830 = vmatpush1.bf16.msra.mxu0 0
      %831 = vmatprep.subr.bf16.mxu0 0
      %832 = vmatpush1.bf16.msra.mxu0 0
      %833 = vmatprep.subr.bf16.mxu0 0
      %834 = vmatpush1.bf16.msra.mxu0 0
      %835 = vmatprep.subr.bf16.mxu0 0
      %836 = vmatpush1.bf16.msra.mxu0 0
      %837 = vmatprep.subr.bf16.mxu0 0
      %838 = vmatpush1.bf16.msra.mxu0 0
      %839 = vmatprep.subr.bf16.mxu0 0
      %840 = vmatpush1.bf16.msra.mxu0 %v820
      %841 = vmatprep.subr.bf16.mxu0 0
      %842 = vmatpush2.bf16.msra.mxu0 0
      %843 = vmatprep.subr.bf16.mxu0 0
      %844 = vmatpush2.bf16.msra.mxu0 0
      %845 = vmatprep.subr.bf16.mxu0 0
      %846 = vmatpush2.bf16.msra.mxu0 0
      %847 = vmatprep.subr.bf16.mxu0 0
      %848 = vmatpush2.bf16.msra.mxu0 0
      %849 = vmatprep.subr.bf16.mxu0 0
      %850 = vmatpush2.bf16.msra.mxu0 0
      %851 = vmatprep.subr.bf16.mxu0 0
      %852 = vmatpush2.bf16.msra.mxu0 0
      %853 = vmatprep.subr.bf16.mxu0 0
      %854 = vmatpush2.bf16.msra.mxu0 0
      %855 = vmatprep.subr.bf16.mxu0 0
      %856 = vmatpush2.bf16.msra.mxu0 0
      %857 = vmatprep.mubr.bf16.mxu0 0
      %858 = vmatmul.mubr.bf16.gmra.mxu0 %v823
      %v859 = vpop.f32.mrf.mxu0
      %v860 = vadd.f32 0.0, %v859
      %v861 = vpop.f32.mrf.mxu0
      %v862 = vpop.f32.mrf.mxu0
      %v863 = vadd.f32 0.0, %v862
      %v864 = vpop.f32.mrf.mxu0
      %865 = vdwg.mxu0
      %866 = vst.msk [vmem:[#allocation2] sm:$0xff] %vm738, %v860
      %867 = vst.msk [vmem:[#allocation2 + $0x8] sm:$0xff] %vm738, %v863
      %868 = vrot.lane.b32.xlu0 %v729, 80
      %v869 = vpop.permute.xlu0 %868
      %870 = vrot.lane.b32.xlu0 %v729, 48
      %v871 = vpop.permute.xlu0 %870
      %v873 = vsel %vm738, %v869, 0
      %v876 = vsel %vm738, %v871, 0
      %878 = vmatprep.subr.bf16.mxu0 0
      %879 = vmatpush1.bf16.xpose.msra.mxu0 0
      %880 = vmatprep.subr.bf16.mxu0 0
      %881 = vmatpush1.bf16.xpose.msra.mxu0 0
      %882 = vmatprep.subr.bf16.mxu0 0
      %883 = vmatpush1.bf16.xpose.msra.mxu0 0
      %884 = vmatprep.subr.bf16.mxu0 0
      %885 = vmatpush1.bf16.xpose.msra.mxu0 0
      %886 = vmatprep.subr.bf16.mxu0 0
      %887 = vmatpush1.bf16.xpose.msra.mxu0 0
      %888 = vmatprep.subr.bf16.mxu0 0
      %889 = vmatpush1.bf16.xpose.msra.mxu0 0
      %890 = vmatprep.subr.bf16.mxu0 0
      %891 = vmatpush1.bf16.xpose.msra.mxu0 0
      %892 = vmatprep.subr.bf16.mxu0 0
      %893 = vmatpush1.bf16.xpose.msra.mxu0 %v876
      %894 = vmatprep.subr.bf16.mxu0 0
      %895 = vmatpush2.bf16.xpose.msra.mxu0 0
      %896 = vmatprep.subr.bf16.mxu0 0
      %897 = vmatpush2.bf16.xpose.msra.mxu0 0
      %898 = vmatprep.subr.bf16.mxu0 0
      %899 = vmatpush2.bf16.xpose.msra.mxu0 0
      %900 = vmatprep.subr.bf16.mxu0 0
      %901 = vmatpush2.bf16.xpose.msra.mxu0 0
      %902 = vmatprep.subr.bf16.mxu0 0
      %903 = vmatpush2.bf16.xpose.msra.mxu0 0
      %904 = vmatprep.subr.bf16.mxu0 0
      %905 = vmatpush2.bf16.xpose.msra.mxu0 0
      %906 = vmatprep.subr.bf16.mxu0 0
      %907 = vmatpush2.bf16.xpose.msra.mxu0 0
      %908 = vmatprep.subr.bf16.mxu0 0
      %909 = vmatpush2.bf16.xpose.msra.mxu0 0
      %910 = vmatprep.mubr.bf16.mxu0 0
      %911 = vmatmul.mubr.bf16.gmra.mxu0 %v873
      %v912 = vpop.f32.mrf.mxu0
      %v913 = vadd.f32 0.0, %v912
      %v914 = vpop.f32.mrf.mxu0
      %v915 = vpop.f32.mrf.mxu0
      %v916 = vadd.f32 0.0, %v915
      %v917 = vpop.f32.mrf.mxu0
      %918 = vdwg.mxu0
      %v919 = vmul.f32 %v913, 0.25
      %v920 = vmul.f32 %v916, 0.25
      %v921 = vsel %vm793, -1e+09, %v919
      %v922 = vsel %vm793, -1e+09, %v920
      %v923 = vsel %vm738, %v921, -inf
      %924 = vmax.xlane.f32.xlu0 %v923
      %v925 = vpop.xlane.xlu0 %924
      %v926 = vsel %vm738, %v922, -inf
      %927 = vmax.xlane.f32.xlu0 %v926
      %v928 = vpop.xlane.xlu0 %927
      %v929 = vsub.f32 %v921, %v925
      %v930 = vsub.f32 %v922, %v928
      %v931 = vmul.f32 %v929, 1.442695
      %v932 = vpow.pop %v931
      %v933 = vmul.f32 %v930, 1.442695
      %v934 = vpow.pop %v933
      %v935 = vsel %vm738, %v932, 0.0
      %936 = vadd.xlane.f32.xlu0 %v935
      %v937 = vpop.xlane.xlu0 %936
      %v938 = vsel %vm738, %v934, 0.0
      %939 = vadd.xlane.f32.xlu0 %v938
      %v940 = vpop.xlane.xlu0 %939
      %v941 = vrcp.pop %v937
      %v942 = vrcp.pop %v940
      %v943 = vmul.f32 %v932, %v941
      %v944 = vmul.f32 %v934, %v942
      %v945 = vpack.c.bf16 %v944, %v943
      %946 = vrot.lane.b32.xlu0 %v729, 16
      %v947 = vpop.permute.xlu0 %946
      %v950 = vsel %vm738, %v945, 0
      %952 = vmatprep.subr.bf16.mxu0 0
      %953 = vmatpush1.bf16.msra.mxu0 0
      %954 = vmatprep.subr.bf16.mxu0 0
      %955 = vmatpush1.bf16.msra.mxu0 0
      %956 = vmatprep.subr.bf16.mxu0 0
      %957 = vmatpush1.bf16.msra.mxu0 0
      %958 = vmatprep.subr.bf16.mxu0 0
      %959 = vmatpush1.bf16.msra.mxu0 0
      %960 = vmatprep.subr.bf16.mxu0 0
      %961 = vmatpush1.bf16.msra.mxu0 0
      %962 = vmatprep.subr.bf16.mxu0 0
      %963 = vmatpush1.bf16.msra.mxu0 0
      %964 = vmatprep.subr.bf16.mxu0 0
      %965 = vmatpush1.bf16.msra.mxu0 0
      %966 = vmatprep.subr.bf16.mxu0 0
      %967 = vmatpush1.bf16.msra.mxu0 %v947
      %968 = vmatprep.subr.bf16.mxu0 0
      %969 = vmatpush2.bf16.msra.mxu0 0
      %970 = vmatprep.subr.bf16.mxu0 0
      %971 = vmatpush2.bf16.msra.mxu0 0
      %972 = vmatprep.subr.bf16.mxu0 0
      %973 = vmatpush2.bf16.msra.mxu0 0
      %974 = vmatprep.subr.bf16.mxu0 0
      %975 = vmatpush2.bf16.msra.mxu0 0
      %976 = vmatprep.subr.bf16.mxu0 0
      %977 = vmatpush2.bf16.msra.mxu0 0
      %978 = vmatprep.subr.bf16.mxu0 0
      %979 = vmatpush2.bf16.msra.mxu0 0
      %980 = vmatprep.subr.bf16.mxu0 0
      %981 = vmatpush2.bf16.msra.mxu0 0
      %982 = vmatprep.subr.bf16.mxu0 0
      %983 = vmatpush2.bf16.msra.mxu0 0
      %984 = vmatprep.mubr.bf16.mxu0 0
      %985 = vmatmul.mubr.bf16.gmra.mxu0 %v950
      %v986 = vpop.f32.mrf.mxu0
      %v987 = vadd.f32 0.0, %v986
      %v988 = vpop.f32.mrf.mxu0
      %v989 = vpop.f32.mrf.mxu0
      %v990 = vadd.f32 0.0, %v989
      %v991 = vpop.f32.mrf.mxu0
      %992 = vdwg.mxu0
      %995 = vrot.lane.b32.xlu0 %v987, 16
      %v996 = vpop.permute.xlu0 %995
      %997 = vrot.lane.b32.xlu0 %v990, 16
      %v998 = vpop.permute.xlu0 %997
      %vm1001 = vcmask 261248
      %1002 = vst.msk [vmem:[#allocation2] sm:$0xff] %vm1001, %v996
      %1003 = vst.msk [vmem:[#allocation2 + $0x8] sm:$0xff] %vm1001, %v998
      %1005 = vrot.lane.b32.xlu0 %v730, 96
      %v1006 = vpop.permute.xlu0 %1005
      %1007 = vrot.lane.b32.xlu0 %v730, 64
      %v1008 = vpop.permute.xlu0 %1007
      %v1010 = vsel %vm738, %v1006, 0
      %v1013 = vsel %vm738, %v1008, 0
      %1015 = vmatprep.subr.bf16.mxu0 0
      %1016 = vmatpush1.bf16.xpose.msra.mxu0 0
      %1017 = vmatprep.subr.bf16.mxu0 0
      %1018 = vmatpush1.bf16.xpose.msra.mxu0 0
      %1019 = vmatprep.subr.bf16.mxu0 0
      %1020 = vmatpush1.bf16.xpose.msra.mxu0 0
      %1021 = vmatprep.subr.bf16.mxu0 0
      %1022 = vmatpush1.bf16.xpose.msra.mxu0 0
      %1023 = vmatprep.subr.bf16.mxu0 0
      %1024 = vmatpush1.bf16.xpose.msra.mxu0 0
      %1025 = vmatprep.subr.bf16.mxu0 0
      %1026 = vmatpush1.bf16.xpose.msra.mxu0 0
      %1027 = vmatprep.subr.bf16.mxu0 0
      %1028 = vmatpush1.bf16.xpose.msra.mxu0 0
      %1029 = vmatprep.subr.bf16.mxu0 0
      %1030 = vmatpush1.bf16.xpose.msra.mxu0 %v1013
      %1031 = vmatprep.subr.bf16.mxu0 0
      %1032 = vmatpush2.bf16.xpose.msra.mxu0 0
      %1033 = vmatprep.subr.bf16.mxu0 0
      %1034 = vmatpush2.bf16.xpose.msra.mxu0 0
      %1035 = vmatprep.subr.bf16.mxu0 0
      %1036 = vmatpush2.bf16.xpose.msra.mxu0 0
      %1037 = vmatprep.subr.bf16.mxu0 0
      %1038 = vmatpush2.bf16.xpose.msra.mxu0 0
      %1039 = vmatprep.subr.bf16.mxu0 0
      %1040 = vmatpush2.bf16.xpose.msra.mxu0 0
      %1041 = vmatprep.subr.bf16.mxu0 0
      %1042 = vmatpush2.bf16.xpose.msra.mxu0 0
      %1043 = vmatprep.subr.bf16.mxu0 0
      %1044 = vmatpush2.bf16.xpose.msra.mxu0 0
      %1045 = vmatprep.subr.bf16.mxu0 0
      %1046 = vmatpush2.bf16.xpose.msra.mxu0 0
      %1047 = vmatprep.mubr.bf16.mxu0 0
      %1048 = vmatmul.mubr.bf16.gmra.mxu0 %v1010
      %v1049 = vpop.f32.mrf.mxu0
      %v1050 = vadd.f32 0.0, %v1049
      %v1051 = vpop.f32.mrf.mxu0
      %v1052 = vpop.f32.mrf.mxu0
      %v1053 = vadd.f32 0.0, %v1052
      %v1054 = vpop.f32.mrf.mxu0
      %1055 = vdwg.mxu0
      %v1056 = vmul.f32 %v1050, 0.25
      %v1057 = vmul.f32 %v1053, 0.25
      %v1058 = vlaneseq
      %v1059 = vshrl.u32 %v1058, 7
      %v1060 = vsub.s32 1, %v1059
      %v1061 = vrot.slane %v788, %v1060
      %vm1062 = vcmp.eq.s32.totalorder %v1061, 1
      %v1063 = vsel %vm1062, -1e+09, %v1056
      %v1064 = vsel %vm1062, -1e+09, %v1057
      %v1065 = vsel %vm738, %v1063, -inf
      %1066 = vmax.xlane.f32.xlu0 %v1065
      %v1067 = vpop.xlane.xlu0 %1066
      %v1068 = vsel %vm738, %v1064, -inf
      %1069 = vmax.xlane.f32.xlu0 %v1068
      %v1070 = vpop.xlane.xlu0 %1069
      %v1071 = vsub.f32 %v1063, %v1067
      %v1072 = vsub.f32 %v1064, %v1070
      %v1073 = vmul.f32 %v1071, 1.442695
      %v1074 = vpow.pop %v1073
      %v1075 = vmul.f32 %v1072, 1.442695
      %v1076 = vpow.pop %v1075
      %v1077 = vsel %vm738, %v1074, 0.0
      %1078 = vadd.xlane.f32.xlu0 %v1077
      %v1079 = vpop.xlane.xlu0 %1078
      %v1080 = vsel %vm738, %v1076, 0.0
      %1081 = vadd.xlane.f32.xlu0 %v1080
      %v1082 = vpop.xlane.xlu0 %1081
      %v1083 = vrcp.pop %v1079
      %v1084 = vrcp.pop %v1082
      %v1085 = vmul.f32 %v1074, %v1083
      %v1086 = vmul.f32 %v1076, %v1084
      %v1087 = vpack.c.bf16 %v1086, %v1085
      %1088 = vrot.lane.b32.xlu0 %v730, 32
      %v1089 = vpop.permute.xlu0 %1088
      %v1092 = vsel %vm738, %v1087, 0
      %1094 = vmatprep.subr.bf16.mxu0 0
      %1095 = vmatpush1.bf16.msra.mxu0 0
      %1096 = vmatprep.subr.bf16.mxu0 0
      %1097 = vmatpush1.bf16.msra.mxu0 0
      %1098 = vmatprep.subr.bf16.mxu0 0
      %1099 = vmatpush1.bf16.msra.mxu0 0
      %1100 = vmatprep.subr.bf16.mxu0 0
      %1101 = vmatpush1.bf16.msra.mxu0 0
      %1102 = vmatprep.subr.bf16.mxu0 0
      %1103 = vmatpush1.bf16.msra.mxu0 0
      %1104 = vmatprep.subr.bf16.mxu0 0
      %1105 = vmatpush1.bf16.msra.mxu0 0
      %1106 = vmatprep.subr.bf16.mxu0 0
      %1107 = vmatpush1.bf16.msra.mxu0 0
      %1108 = vmatprep.subr.bf16.mxu0 0
      %1109 = vmatpush1.bf16.msra.mxu0 %v1089
      %1110 = vmatprep.subr.bf16.mxu0 0
      %1111 = vmatpush2.bf16.msra.mxu0 0
      %1112 = vmatprep.subr.bf16.mxu0 0
      %1113 = vmatpush2.bf16.msra.mxu0 0
      %1114 = vmatprep.subr.bf16.mxu0 0
      %1115 = vmatpush2.bf16.msra.mxu0 0
      %1116 = vmatprep.subr.bf16.mxu0 0
      %1117 = vmatpush2.bf16.msra.mxu0 0
      %1118 = vmatprep.subr.bf16.mxu0 0
      %1119 = vmatpush2.bf16.msra.mxu0 0
      %1120 = vmatprep.subr.bf16.mxu0 0
      %1121 = vmatpush2.bf16.msra.mxu0 0
      %1122 = vmatprep.subr.bf16.mxu0 0
      %1123 = vmatpush2.bf16.msra.mxu0 0
      %1124 = vmatprep.subr.bf16.mxu0 0
      %1125 = vmatpush2.bf16.msra.mxu0 0
      %1126 = vmatprep.mubr.bf16.mxu0 0
      %1127 = vmatmul.mubr.bf16.gmra.mxu0 %v1092
      %v1128 = vpop.f32.mrf.mxu0
      %v1129 = vadd.f32 0.0, %v1128
      %v1130 = vpop.f32.mrf.mxu0
      %v1131 = vpop.f32.mrf.mxu0
      %v1132 = vadd.f32 0.0, %v1131
      %v1133 = vpop.f32.mrf.mxu0
      %1134 = vdwg.mxu0
      %1135 = vst.msk [vmem:[#allocation2 + $0x10] sm:$0xff] %vm738, %v1129
      %1136 = vst.msk [vmem:[#allocation2 + $0x18] sm:$0xff] %vm738, %v1132
      %1137 = vrot.lane.b32.xlu0 %v730, 80
      %v1138 = vpop.permute.xlu0 %1137
      %1139 = vrot.lane.b32.xlu0 %v730, 48
      %v1140 = vpop.permute.xlu0 %1139
      %v1142 = vsel %vm738, %v1138, 0
      %v1145 = vsel %vm738, %v1140, 0
      %1147 = vmatprep.subr.bf16.mxu0 0
      %1148 = vmatpush1.bf16.xpose.msra.mxu0 0
      %1149 = vmatprep.subr.bf16.mxu0 0
      %1150 = vmatpush1.bf16.xpose.msra.mxu0 0
      %1151 = vmatprep.subr.bf16.mxu0 0
      %1152 = vmatpush1.bf16.xpose.msra.mxu0 0
      %1153 = vmatprep.subr.bf16.mxu0 0
      %1154 = vmatpush1.bf16.xpose.msra.mxu0 0
      %1155 = vmatprep.subr.bf16.mxu0 0
      %1156 = vmatpush1.bf16.xpose.msra.mxu0 0
      %1157 = vmatprep.subr.bf16.mxu0 0
      %1158 = vmatpush1.bf16.xpose.msra.mxu0 0
      %1159 = vmatprep.subr.bf16.mxu0 0
      %1160 = vmatpush1.bf16.xpose.msra.mxu0 0
      %1161 = vmatprep.subr.bf16.mxu0 0
      %1162 = vmatpush1.bf16.xpose.msra.mxu0 %v1145
      %1163 = vmatprep.subr.bf16.mxu0 0
      %1164 = vmatpush2.bf16.xpose.msra.mxu0 0
      %1165 = vmatprep.subr.bf16.mxu0 0
      %1166 = vmatpush2.bf16.xpose.msra.mxu0 0
      %1167 = vmatprep.subr.bf16.mxu0 0
      %1168 = vmatpush2.bf16.xpose.msra.mxu0 0
      %1169 = vmatprep.subr.bf16.mxu0 0
      %1170 = vmatpush2.bf16.xpose.msra.mxu0 0
      %1171 = vmatprep.subr.bf16.mxu0 0
      %1172 = vmatpush2.bf16.xpose.msra.mxu0 0
      %1173 = vmatprep.subr.bf16.mxu0 0
      %1174 = vmatpush2.bf16.xpose.msra.mxu0 0
      %1175 = vmatprep.subr.bf16.mxu0 0
      %1176 = vmatpush2.bf16.xpose.msra.mxu0 0
      %1177 = vmatprep.subr.bf16.mxu0 0
      %1178 = vmatpush2.bf16.xpose.msra.mxu0 0
      %1179 = vmatprep.mubr.bf16.mxu0 0
      %1180 = vmatmul.mubr.bf16.gmra.mxu0 %v1142
      %v1181 = vpop.f32.mrf.mxu0
      %v1182 = vadd.f32 0.0, %v1181
      %v1183 = vpop.f32.mrf.mxu0
      %v1184 = vpop.f32.mrf.mxu0
      %v1185 = vadd.f32 0.0, %v1184
      %v1186 = vpop.f32.mrf.mxu0
      %1187 = vdwg.mxu0
      %v1188 = vmul.f32 %v1182, 0.25
      %v1189 = vmul.f32 %v1185, 0.25
      %v1190 = vsel %vm1062, -1e+09, %v1188
      %v1191 = vsel %vm1062, -1e+09, %v1189
      %v1192 = vsel %vm738, %v1190, -inf
      %1193 = vmax.xlane.f32.xlu0 %v1192
      %v1194 = vpop.xlane.xlu0 %1193
      %v1195 = vsel %vm738, %v1191, -inf
      %1196 = vmax.xlane.f32.xlu0 %v1195
      %v1197 = vpop.xlane.xlu0 %1196
      %v1198 = vsub.f32 %v1190, %v1194
      %v1199 = vsub.f32 %v1191, %v1197
      %v1200 = vmul.f32 %v1198, 1.442695
      %v1201 = vpow.pop %v1200
      %v1202 = vmul.f32 %v1199, 1.442695
      %v1203 = vpow.pop %v1202
      %v1204 = vsel %vm738, %v1201, 0.0
      %1205 = vadd.xlane.f32.xlu0 %v1204
      %v1206 = vpop.xlane.xlu0 %1205
      %v1207 = vsel %vm738, %v1203, 0.0
      %1208 = vadd.xlane.f32.xlu0 %v1207
      %v1209 = vpop.xlane.xlu0 %1208
      %v1210 = vrcp.pop %v1206
      %v1211 = vrcp.pop %v1209
      %v1212 = vmul.f32 %v1201, %v1210
      %v1213 = vmul.f32 %v1203, %v1211
      %v1214 = vpack.c.bf16 %v1213, %v1212
      %1215 = vrot.lane.b32.xlu0 %v730, 16
      %v1216 = vpop.permute.xlu0 %1215
      %v1219 = vsel %vm738, %v1214, 0
      %1221 = vmatprep.subr.bf16.mxu0 0
      %1222 = vmatpush1.bf16.msra.mxu0 0
      %1223 = vmatprep.subr.bf16.mxu0 0
      %1224 = vmatpush1.bf16.msra.mxu0 0
      %1225 = vmatprep.subr.bf16.mxu0 0
      %1226 = vmatpush1.bf16.msra.mxu0 0
      %1227 = vmatprep.subr.bf16.mxu0 0
      %1228 = vmatpush1.bf16.msra.mxu0 0
      %1229 = vmatprep.subr.bf16.mxu0 0
      %1230 = vmatpush1.bf16.msra.mxu0 0
      %1231 = vmatprep.subr.bf16.mxu0 0
      %1232 = vmatpush1.bf16.msra.mxu0 0
      %1233 = vmatprep.subr.bf16.mxu0 0
      %1234 = vmatpush1.bf16.msra.mxu0 0
      %1235 = vmatprep.subr.bf16.mxu0 0
      %1236 = vmatpush1.bf16.msra.mxu0 %v1216
      %1237 = vmatprep.subr.bf16.mxu0 0
      %1238 = vmatpush2.bf16.msra.mxu0 0
      %1239 = vmatprep.subr.bf16.mxu0 0
      %1240 = vmatpush2.bf16.msra.mxu0 0
      %1241 = vmatprep.subr.bf16.mxu0 0
      %1242 = vmatpush2.bf16.msra.mxu0 0
      %1243 = vmatprep.subr.bf16.mxu0 0
      %1244 = vmatpush2.bf16.msra.mxu0 0
      %1245 = vmatprep.subr.bf16.mxu0 0
      %1246 = vmatpush2.bf16.msra.mxu0 0
      %1247 = vmatprep.subr.bf16.mxu0 0
      %1248 = vmatpush2.bf16.msra.mxu0 0
      %1249 = vmatprep.subr.bf16.mxu0 0
      %1250 = vmatpush2.bf16.msra.mxu0 0
      %1251 = vmatprep.subr.bf16.mxu0 0
      %1252 = vmatpush2.bf16.msra.mxu0 0
      %1253 = vmatprep.mubr.bf16.mxu0 0
      %1254 = vmatmul.mubr.bf16.gmra.mxu0 %v1219
      %v1255 = vpop.f32.mrf.mxu0
      %v1256 = vadd.f32 0.0, %v1255
      %v1257 = vpop.f32.mrf.mxu0
      %v1258 = vpop.f32.mrf.mxu0
      %v1259 = vadd.f32 0.0, %v1258
      %v1260 = vpop.f32.mrf.mxu0
      %1261 = vdwg.mxu0
      %1264 = vrot.lane.b32.xlu0 %v1256, 16
      %v1265 = vpop.permute.xlu0 %1264
      %1266 = vrot.lane.b32.xlu0 %v1259, 16
      %v1267 = vpop.permute.xlu0 %1266
      %1270 = vst.msk [vmem:[#allocation2 + $0x10] sm:$0xff] %vm1001, %v1265
      %1271 = vst.msk [vmem:[#allocation2 + $0x18] sm:$0xff] %vm1001, %v1267
      %v1272 = vld [vmem:[#allocation2] sm:$0xff]
      %v1273 = vld [vmem:[#allocation2 + $0x8] sm:$0xff]
      %v1274 = vld [vmem:[#allocation2 + $0x10] sm:$0xff]
      %v1275 = vld [vmem:[#allocation2 + $0x18] sm:$0xff]
      %v1276 = vpack.c.bf16 %v1273, %v1272
      %v1277 = vpack.c.bf16 %v1275, %v1274
      %v1278 = vld [vmem:[%s585] sm:$0xf]
      %v1279 = vld [vmem:[%s585 + $0x4] sm:$0xf]
      %v1280 = vld [vmem:[%s585 + $0x8] sm:$0xf]
      %v1281 = vld [vmem:[%s585 + $0xc] sm:$0xf]
      %v1286 = vunpack.c.l.b16 %v1278
      %v1287 = vunpack.c.l.b16 %v1279
      %v1288 = vunpack.c.l.b16 %v1280
      %v1289 = vunpack.c.l.b16 %v1281
      %v1290 = vpack.c.b16 %v1287, %v1286
      %v1291 = vpack.c.b16 %v1289, %v1288
      %v1295 = vsel %vm673, %v1276, 0
      %v1298 = vsel %vm673, %v1277, 0
      %1300 = vmatprep.subr.bf16.mxu0 0
      %1301 = vmatpush1.bf16.msra.mxu0 0
      %1302 = vmatprep.subr.bf16.mxu0 0
      %1303 = vmatpush1.bf16.msra.mxu0 0
      %1304 = vmatprep.subr.bf16.mxu0 0
      %1305 = vmatpush1.bf16.msra.mxu0 0
      %1306 = vmatprep.subr.bf16.mxu0 0
      %1307 = vmatpush1.bf16.msra.mxu0 0
      %1308 = vmatprep.subr.bf16.mxu0 0
      %1309 = vmatpush1.bf16.msra.mxu0 0
      %1310 = vmatprep.subr.bf16.mxu0 0
      %1311 = vmatpush1.bf16.msra.mxu0 0
      %1312 = vmatprep.subr.bf16.mxu0 0
      %1313 = vmatpush1.bf16.msra.mxu0 %v1291
      %1314 = vmatprep.subr.bf16.mxu0 0
      %1315 = vmatpush1.bf16.msra.mxu0 %v1290
      %1316 = vmatprep.subr.bf16.mxu0 0
      %1317 = vmatpush2.bf16.msra.mxu0 0
      %1318 = vmatprep.subr.bf16.mxu0 0
      %1319 = vmatpush2.bf16.msra.mxu0 0
      %1320 = vmatprep.subr.bf16.mxu0 0
      %1321 = vmatpush2.bf16.msra.mxu0 0
      %1322 = vmatprep.subr.bf16.mxu0 0
      %1323 = vmatpush2.bf16.msra.mxu0 0
      %1324 = vmatprep.subr.bf16.mxu0 0
      %1325 = vmatpush2.bf16.msra.mxu0 0
      %1326 = vmatprep.subr.bf16.mxu0 0
      %1327 = vmatpush2.bf16.msra.mxu0 0
      %1328 = vmatprep.subr.bf16.mxu0 0
      %1329 = vmatpush2.bf16.msra.mxu0 0
      %1330 = vmatprep.subr.bf16.mxu0 0
      %1331 = vmatpush2.bf16.msra.mxu0 0
      %1332 = vmatprep.mubr.bf16.mxu0 0
      %1333 = vmatmul.mubr.bf16.gmra.mxu0 %v1295
      %v1334 = vpop.f32.mrf.mxu0
      %v1335 = vadd.f32 0.0, %v1334
      %v1336 = vpop.f32.mrf.mxu0
      %v1337 = vpop.f32.mrf.mxu0
      %v1338 = vadd.f32 0.0, %v1337
      %v1339 = vpop.f32.mrf.mxu0
      %1340 = vmatprep.mubr.bf16.mxu0 0
      %1341 = vmatmul.mubr.bf16.gmra.mxu0 %v1298
      %v1342 = vpop.f32.mrf.mxu0
      %v1343 = vadd.f32 0.0, %v1342
      %v1344 = vpop.f32.mrf.mxu0
      %v1345 = vpop.f32.mrf.mxu0
      %v1346 = vadd.f32 0.0, %v1345
      %v1347 = vpop.f32.mrf.mxu0
      %1348 = vdwg.mxu0
      %v1349 = vadd.f32 %v715, %v1335
      %v1350 = vadd.f32 %v718, %v1338
      %v1351 = vadd.f32 %v723, %v1343
      %v1352 = vadd.f32 %v726, %v1346
      %v1353 = vld [vmem:[%s592] sm:$0x1]
      %v1354 = vld [vmem:[%s599] sm:$0x1]
      %v1355 = vsel %vm673, %v1349, 0.0
      %1356 = vadd.xlane.f32.xlu0 %v1355
      %v1357 = vpop.xlane.xlu0 %1356
      %v1358 = vsel %vm673, %v1350, 0.0
      %1359 = vadd.xlane.f32.xlu0 %v1358
      %v1360 = vpop.xlane.xlu0 %1359
      %v1361 = vsel %vm673, %v1351, 0.0
      %1362 = vadd.xlane.f32.xlu0 %v1361
      %v1363 = vpop.xlane.xlu0 %1362
      %v1364 = vsel %vm673, %v1352, 0.0
      %1365 = vadd.xlane.f32.xlu0 %v1364
      %v1366 = vpop.xlane.xlu0 %1365
      %v1367 = vrcp.pop 32.0
      %v1368 = vmul.f32 %v1357, %v1367
      %v1369 = vmul.f32 %v1360, %v1367
      %v1370 = vmul.f32 %v1363, %v1367
      %v1371 = vmul.f32 %v1366, %v1367
      %v1372 = vsub.f32 %v1349, %v1368
      %v1373 = vsub.f32 %v1350, %v1369
      %v1374 = vsub.f32 %v1351, %v1370
      %v1375 = vsub.f32 %v1352, %v1371
      %v1376 = vmul.f32 %v1372, %v1372
      %v1377 = vmul.f32 %v1373, %v1373
      %v1378 = vmul.f32 %v1374, %v1374
      %v1379 = vmul.f32 %v1375, %v1375
      %v1380 = vsel %vm673, %v1376, 0.0
      %1381 = vadd.xlane.f32.xlu0 %v1380
      %v1382 = vpop.xlane.xlu0 %1381
      %v1383 = vsel %vm673, %v1377, 0.0
      %1384 = vadd.xlane.f32.xlu0 %v1383
      %v1385 = vpop.xlane.xlu0 %1384
      %v1386 = vsel %vm673, %v1378, 0.0
      %1387 = vadd.xlane.f32.xlu0 %v1386
      %v1388 = vpop.xlane.xlu0 %1387
      %v1389 = vsel %vm673, %v1379, 0.0
      %1390 = vadd.xlane.f32.xlu0 %v1389
      %v1391 = vpop.xlane.xlu0 %1390
      %v1392 = vmul.f32 %v1382, %v1367
      %v1393 = vmul.f32 %v1385, %v1367
      %v1394 = vmul.f32 %v1388, %v1367
      %v1395 = vmul.f32 %v1391, %v1367
      %v1396 = vadd.f32 %v1392, 1e-05
      %v1397 = vadd.f32 %v1393, 1e-05
      %v1398 = vadd.f32 %v1394, 1e-05
      %v1399 = vadd.f32 %v1395, 1e-05
      %v1400 = vrsqrt.pop %v1396
      %v1401 = vrsqrt.pop %v1397
      %v1402 = vrsqrt.pop %v1398
      %v1403 = vrsqrt.pop %v1399
      %v1404 = vmul.f32 %v1372, %v1400
      %v1405 = vmul.f32 %v1373, %v1401
      %v1406 = vmul.f32 %v1374, %v1402
      %v1407 = vmul.f32 %v1375, %v1403
      %v1409 = vlaneseq
      %v1410 = vshrl.u32 %v1409, 7
      %v1411 = vsub.s32 0, %v1410
      %v1412 = vrot.slane %v1353, %v1411
      %v1414 = vmul.f32 %v1404, %v1412
      %v1415 = vmul.f32 %v1405, %v1412
      %v1416 = vmul.f32 %v1406, %v1412
      %v1417 = vmul.f32 %v1407, %v1412
      %v1419 = vlaneseq
      %v1420 = vshrl.u32 %v1419, 7
      %v1421 = vsub.s32 0, %v1420
      %v1422 = vrot.slane %v1354, %v1421
      %v1424 = vadd.f32 %v1414, %v1422
      %v1425 = vadd.f32 %v1415, %v1422
      %v1426 = vadd.f32 %v1416, %v1422
      %v1427 = vadd.f32 %v1417, %v1422
      %v1428 = vpack.c.bf16 %v1425, %v1424
      %v1429 = vpack.c.bf16 %v1427, %v1426
      %v1430 = vld [vmem:[%s608] sm:$0xf]
      %v1431 = vld [vmem:[%s608 + $0x4] sm:$0xf]
      %v1432 = vld [vmem:[%s608 + $0x8] sm:$0xf]
      %v1433 = vld [vmem:[%s608 + $0xc] sm:$0xf]
      %v1438 = vunpack.c.l.b16 %v1430
      %v1439 = vunpack.c.l.b16 %v1431
      %v1440 = vunpack.c.l.b16 %v1432
      %v1441 = vunpack.c.l.b16 %v1433
      %v1442 = vpack.c.b16 %v1439, %v1438
      %v1443 = vpack.c.b16 %v1441, %v1440
      %v1447 = vsel %vm673, %v1428, 0
      %v1450 = vsel %vm673, %v1429, 0
      %1452 = vmatprep.subr.bf16.mxu0 0
      %1453 = vmatpush1.bf16.msra.mxu0 0
      %1454 = vmatprep.subr.bf16.mxu0 0
      %1455 = vmatpush1.bf16.msra.mxu0 0
      %1456 = vmatprep.subr.bf16.mxu0 0
      %1457 = vmatpush1.bf16.msra.mxu0 0
      %1458 = vmatprep.subr.bf16.mxu0 0
      %1459 = vmatpush1.bf16.msra.mxu0 0
      %1460 = vmatprep.subr.bf16.mxu0 0
      %1461 = vmatpush1.bf16.msra.mxu0 0
      %1462 = vmatprep.subr.bf16.mxu0 0
      %1463 = vmatpush1.bf16.msra.mxu0 0
      %1464 = vmatprep.subr.bf16.mxu0 0
      %1465 = vmatpush1.bf16.msra.mxu0 %v1443
      %1466 = vmatprep.subr.bf16.mxu0 0
      %1467 = vmatpush1.bf16.msra.mxu0 %v1442
      %1468 = vmatprep.subr.bf16.mxu0 0
      %1469 = vmatpush2.bf16.msra.mxu0 0
      %1470 = vmatprep.subr.bf16.mxu0 0
      %1471 = vmatpush2.bf16.msra.mxu0 0
      %1472 = vmatprep.subr.bf16.mxu0 0
      %1473 = vmatpush2.bf16.msra.mxu0 0
      %1474 = vmatprep.subr.bf16.mxu0 0
      %1475 = vmatpush2.bf16.msra.mxu0 0
      %1476 = vmatprep.subr.bf16.mxu0 0
      %1477 = vmatpush2.bf16.msra.mxu0 0
      %1478 = vmatprep.subr.bf16.mxu0 0
      %1479 = vmatpush2.bf16.msra.mxu0 0
      %1480 = vmatprep.subr.bf16.mxu0 0
      %1481 = vmatpush2.bf16.msra.mxu0 0
      %1482 = vmatprep.subr.bf16.mxu0 0
      %1483 = vmatpush2.bf16.msra.mxu0 0
      %1484 = vmatprep.mubr.bf16.mxu0 0
      %1485 = vmatmul.mubr.bf16.gmra.mxu0 %v1447
      %v1486 = vpop.f32.mrf.mxu0
      %v1487 = vadd.f32 0.0, %v1486
      %v1488 = vpop.f32.mrf.mxu0
      %v1489 = vpop.f32.mrf.mxu0
      %v1490 = vadd.f32 0.0, %v1489
      %v1491 = vpop.f32.mrf.mxu0
      %1492 = vmatprep.mubr.bf16.mxu0 0
      %1493 = vmatmul.mubr.bf16.gmra.mxu0 %v1450
      %v1494 = vpop.f32.mrf.mxu0
      %v1495 = vadd.f32 0.0, %v1494
      %v1496 = vpop.f32.mrf.mxu0
      %v1497 = vpop.f32.mrf.mxu0
      %v1498 = vadd.f32 0.0, %v1497
      %v1499 = vpop.f32.mrf.mxu0
      %1500 = vdwg.mxu0
      %v1501 = vmax.f32 %v1487, 0.0
      %v1502 = vmax.f32 %v1490, 0.0
      %v1503 = vmax.f32 %v1495, 0.0
      %v1504 = vmax.f32 %v1498, 0.0
      %v1505 = vpack.c.bf16 %v1502, %v1501
      %v1506 = vpack.c.bf16 %v1504, %v1503
      %v1507 = vld [vmem:[%s617] sm:$0xf]
      %v1508 = vld [vmem:[%s617 + $0x4] sm:$0xf]
      %v1509 = vld [vmem:[%s617 + $0x8] sm:$0xf]
      %v1510 = vld [vmem:[%s617 + $0xc] sm:$0xf]
      %v1511 = vld [vmem:[%s617 + $0x10] sm:$0xf]
      %v1512 = vld [vmem:[%s617 + $0x14] sm:$0xf]
      %v1513 = vld [vmem:[%s617 + $0x18] sm:$0xf]
      %v1514 = vld [vmem:[%s617 + $0x1c] sm:$0xf]
      %v1523 = vunpack.c.l.b16 %v1507
      %v1524 = vunpack.c.l.b16 %v1508
      %v1525 = vunpack.c.l.b16 %v1509
      %v1526 = vunpack.c.l.b16 %v1510
      %v1527 = vunpack.c.l.b16 %v1511
      %v1528 = vunpack.c.l.b16 %v1512
      %v1529 = vunpack.c.l.b16 %v1513
      %v1530 = vunpack.c.l.b16 %v1514
      %v1531 = vpack.c.b16 %v1524, %v1523
      %v1532 = vpack.c.b16 %v1526, %v1525
      %v1533 = vpack.c.b16 %v1528, %v1527
      %v1534 = vpack.c.b16 %v1530, %v1529
      %vm1539 = vcmask 523264
      %v1541 = vsel %vm1539, %v1505, 0
      %v1544 = vsel %vm1539, %v1506, 0
      %1546 = vmatprep.subr.bf16.mxu0 0
      %1547 = vmatpush1.bf16.msra.mxu0 0
      %1548 = vmatprep.subr.bf16.mxu0 0
      %1549 = vmatpush1.bf16.msra.mxu0 0
      %1550 = vmatprep.subr.bf16.mxu0 0
      %1551 = vmatpush1.bf16.msra.mxu0 0
      %1552 = vmatprep.subr.bf16.mxu0 0
      %1553 = vmatpush1.bf16.msra.mxu0 0
      %1554 = vmatprep.subr.bf16.mxu0 0
      %1555 = vmatpush1.bf16.msra.mxu0 %v1534
      %1556 = vmatprep.subr.bf16.mxu0 0
      %1557 = vmatpush1.bf16.msra.mxu0 %v1533
      %1558 = vmatprep.subr.bf16.mxu0 0
      %1559 = vmatpush1.bf16.msra.mxu0 %v1532
      %1560 = vmatprep.subr.bf16.mxu0 0
      %1561 = vmatpush1.bf16.msra.mxu0 %v1531
      %1562 = vmatprep.subr.bf16.mxu0 0
      %1563 = vmatpush2.bf16.msra.mxu0 0
      %1564 = vmatprep.subr.bf16.mxu0 0
      %1565 = vmatpush2.bf16.msra.mxu0 0
      %1566 = vmatprep.subr.bf16.mxu0 0
      %1567 = vmatpush2.bf16.msra.mxu0 0
      %1568 = vmatprep.subr.bf16.mxu0 0
      %1569 = vmatpush2.bf16.msra.mxu0 0
      %1570 = vmatprep.subr.bf16.mxu0 0
      %1571 = vmatpush2.bf16.msra.mxu0 0
      %1572 = vmatprep.subr.bf16.mxu0 0
      %1573 = vmatpush2.bf16.msra.mxu0 0
      %1574 = vmatprep.subr.bf16.mxu0 0
      %1575 = vmatpush2.bf16.msra.mxu0 0
      %1576 = vmatprep.subr.bf16.mxu0 0
      %1577 = vmatpush2.bf16.msra.mxu0 0
      %1578 = vmatprep.mubr.bf16.mxu0 0
      %1579 = vmatmul.mubr.bf16.gmra.mxu0 %v1541
      %v1580 = vpop.f32.mrf.mxu0
      %v1581 = vadd.f32 %v1424, %v1580
      %v1582 = vpop.f32.mrf.mxu0
      %v1583 = vpop.f32.mrf.mxu0
      %v1584 = vadd.f32 %v1425, %v1583
      %v1585 = vpop.f32.mrf.mxu0
      %1586 = vmatprep.mubr.bf16.mxu0 0
      %1587 = vmatmul.mubr.bf16.gmra.mxu0 %v1544
      %v1588 = vpop.f32.mrf.mxu0
      %v1589 = vadd.f32 %v1426, %v1588
      %v1590 = vpop.f32.mrf.mxu0
      %v1591 = vpop.f32.mrf.mxu0
      %v1592 = vadd.f32 %v1427, %v1591
      %v1593 = vpop.f32.mrf.mxu0
      %1594 = vdwg.mxu0
      %v1595 = vld [vmem:[%s624] sm:$0x1]
      %v1596 = vld [vmem:[%s631] sm:$0x1]
      %v1597 = vsel %vm673, %v1581, 0.0
      %1598 = vadd.xlane.f32.xlu0 %v1597
      %v1599 = vpop.xlane.xlu0 %1598
      %v1600 = vsel %vm673, %v1584, 0.0
      %1601 = vadd.xlane.f32.xlu0 %v1600
      %v1602 = vpop.xlane.xlu0 %1601
      %v1603 = vsel %vm673, %v1589, 0.0
      %1604 = vadd.xlane.f32.xlu0 %v1603
      %v1605 = vpop.xlane.xlu0 %1604
      %v1606 = vsel %vm673, %v1592, 0.0
      %1607 = vadd.xlane.f32.xlu0 %v1606
      %v1608 = vpop.xlane.xlu0 %1607
      %v1609 = vmul.f32 %v1599, %v1367
      %v1610 = vmul.f32 %v1602, %v1367
      %v1611 = vmul.f32 %v1605, %v1367
      %v1612 = vmul.f32 %v1608, %v1367
      %v1613 = vsub.f32 %v1581, %v1609
      %v1614 = vsub.f32 %v1584, %v1610
      %v1615 = vsub.f32 %v1589, %v1611
      %v1616 = vsub.f32 %v1592, %v1612
      %v1617 = vmul.f32 %v1613, %v1613
      %v1618 = vmul.f32 %v1614, %v1614
      %v1619 = vmul.f32 %v1615, %v1615
      %v1620 = vmul.f32 %v1616, %v1616
      %v1621 = vsel %vm673, %v1617, 0.0
      %1622 = vadd.xlane.f32.xlu0 %v1621
      %v1623 = vpop.xlane.xlu0 %1622
      %v1624 = vsel %vm673, %v1618, 0.0
      %1625 = vadd.xlane.f32.xlu0 %v1624
      %v1626 = vpop.xlane.xlu0 %1625
      %v1627 = vsel %vm673, %v1619, 0.0
      %1628 = vadd.xlane.f32.xlu0 %v1627
      %v1629 = vpop.xlane.xlu0 %1628
      %v1630 = vsel %vm673, %v1620, 0.0
      %1631 = vadd.xlane.f32.xlu0 %v1630
      %v1632 = vpop.xlane.xlu0 %1631
      %v1633 = vmul.f32 %v1623, %v1367
      %v1634 = vmul.f32 %v1626, %v1367
      %v1635 = vmul.f32 %v1629, %v1367
      %v1636 = vmul.f32 %v1632, %v1367
      %v1637 = vadd.f32 %v1633, 1e-05
      %v1638 = vadd.f32 %v1634, 1e-05
      %v1639 = vadd.f32 %v1635, 1e-05
      %v1640 = vadd.f32 %v1636, 1e-05
      %v1641 = vrsqrt.pop %v1637
      %v1642 = vrsqrt.pop %v1638
      %v1643 = vrsqrt.pop %v1639
      %v1644 = vrsqrt.pop %v1640
      %v1645 = vmul.f32 %v1613, %v1641
      %v1646 = vmul.f32 %v1614, %v1642
      %v1647 = vmul.f32 %v1615, %v1643
      %v1648 = vmul.f32 %v1616, %v1644
      %v1650 = vlaneseq
      %v1651 = vshrl.u32 %v1650, 7
      %v1652 = vsub.s32 0, %v1651
      %v1653 = vrot.slane %v1595, %v1652
      %v1655 = vmul.f32 %v1645, %v1653
      %v1656 = vmul.f32 %v1646, %v1653
      %v1657 = vmul.f32 %v1647, %v1653
      %v1658 = vmul.f32 %v1648, %v1653
      %v1660 = vlaneseq
      %v1661 = vshrl.u32 %v1660, 7
      %v1662 = vsub.s32 0, %v1661
      %v1663 = vrot.slane %v1596, %v1662
      %v1665 = vadd.f32 %v1655, %v1663
      %v1666 = vadd.f32 %v1656, %v1663
      %v1667 = vadd.f32 %v1657, %v1663
      %v1668 = vadd.f32 %v1658, %v1663
      %1669 = vst.msk [vmem:[%s636] sm:$0xff] %vm673, %v1665
      %1670 = vst.msk [vmem:[%s636 + $0x8] sm:$0xff] %vm673, %v1666
      %1671 = vst.msk [vmem:[%s636 + $0x10] sm:$0xff] %vm673, %v1667
      %1672 = vst.msk [vmem:[%s636 + $0x18] sm:$0xff] %vm673, %v1668
      %p1673 = scmp.lt.s32.totalorder %s25, 1
      %s1674 = scalar_select %p1673, %s25, 1
      %s1675 = smul.addr %s1674, 4
      %s1676 = smul.addr %s1675, 8
      %s1677 = scalar_lea.vmem %s10, %s1676
      // Predicated region
      $region65: #{mrbdta_forward.3} parent=59 // pred_check
        %p1678 = pneg %p327
      $region66: #{mrbdta_forward.3} parent=59 // pred_check_branch
        %1680 = sbr.rel (%p1678) target = $region68
      $region67: #{mrbdta_forward.3} parent=59 // pred_region
        _
      $region68: #{mrbdta_forward.3} parent=59 // pred_fallthru
        _
    $region60: #{mrbdta_forward.3} parent=5 // pred_fallthru
      _
    %p1681 = scmp.le.s32.totalorder 2, %s16
    // Predicated region
    $region69: #{mrbdta_forward.3} parent=5 // pred_check
      %p1682 = pneg %p1681
    $region70: #{mrbdta_forward.3} parent=5 // pred_check_branch
      %1684 = sbr.rel (%p1682) target = $region72
    $region71: #{mrbdta_forward.3} parent=5 // pred_region
      %s1685 = ssub.s32 %s16, 2
      // Predicated region
      $region73: #{mrbdta_forward.3} parent=71 // pred_check
        %p1686 = pneg %p333
      $region74: #{mrbdta_forward.3} parent=71 // pred_check_branch
        %1688 = sbr.rel (%p1686) target = $region76
      $region75: #{mrbdta_forward.3} parent=71 // pred_region
        %p1689 = scmp.lt.s32.totalorder %s27, 1
        %s1690 = scalar_select %p1689, %s27, 1
        %s1691 = smul.addr %s1690, 4
        %s1692 = smul.addr %s1691, 8
        %s1693 = scalar_lea.vmem %s10, %s1692
      $region76: #{mrbdta_forward.3} parent=71 // pred_fallthru
        _
    $region72: #{mrbdta_forward.3} parent=5 // pred_fallthru
      _
  $region6: #{mrbdta_forward.3} parent=0 // loop_footer
    %s20 = sadd.s32 1, %s16
  $region7: #{mrbdta_forward.3} parent=0 // loop_footer_branch
    %15 = sbr.rel target = $region3
  $region8: #{mrbdta_forward.3} parent=0 // loop_exit
    _

// kernel: mrbdta_forward.4
$region0: #{mrbdta_forward.4}
  #allocation0 [shape = 'u32[]', space=smem, size = 0x4, offset = 0x4, fixed_abs, tag = 'smem constant byte address 0x4 - core index']
  #allocation1 [shape = 'u32[144,128]{1,0:T(1,128)}', space=vmem, size = 0x12000, scoped, tag = 'internal scratch']
  #allocation2 [shape = 'f32[32,32]{1,0:T(8,128)}', space=vmem, size = 0x4000, scoped, tag = 'scratch operand']
  %s0 = inlined_call_operand.vmem [shape: f32[4,32,32], index: 0, kind: input, shape index: {}]
  %s1 = inlined_call_operand.vmem [shape: f32[4,2,16], index: 1, kind: input, shape index: {}]
  %s2 = inlined_call_operand.vmem [shape: bf16[4,2,32,128], index: 2, kind: input, shape index: {}]
  %s3 = inlined_call_operand.vmem [shape: bf16[4,2,32,32], index: 3, kind: input, shape index: {}]
  %s4 = inlined_call_operand.vmem [shape: f32[4,2,1,32], index: 4, kind: input, shape index: {}]
  %s5 = inlined_call_operand.vmem [shape: f32[4,2,1,32], index: 5, kind: input, shape index: {}]
  %s6 = inlined_call_operand.vmem [shape: bf16[4,2,32,64], index: 6, kind: input, shape index: {}]
  %s7 = inlined_call_operand.vmem [shape: bf16[4,2,64,32], index: 7, kind: input, shape index: {}]
  %s8 = inlined_call_operand.vmem [shape: f32[4,2,1,32], index: 8, kind: input, shape index: {}]
  %s9 = inlined_call_operand.vmem [shape: f32[4,2,1,32], index: 9, kind: input, shape index: {}]
  %s10 = inlined_call_operand.vmem [shape: f32[4,32,32], index: 10, kind: output, shape index: {}]
  %s11 = sld [smem:[#allocation0]]
  $region77: #{mrbdta_forward.4} parent=0
    _
  %s13 = ssub.s32 1, %s11
  %s14 = scalar_select 0, %s13, %s11
  loop: start=0, step=1, limit=10
  $region2: #{mrbdta_forward.4} parent=0 // loop_pre_header
    _
  $region3: #{mrbdta_forward.4} parent=0 // loop_header
    %s16 = sphi 0, %s20
    %p17 = scmp.ge.s32.totalorder %s16, 10
    %s23 = sphi 0, %s35
    %s24 = sphi 0, %s31
    %s25 = sphi 0, %s23
    %s26 = sphi 0, %s24
    %s27 = sphi 0, %s25
    %s28 = sphi 0, %s26
    %s38 = sphi 0, %s40
    %s41 = sphi 0, %s38
    %s42 = sphi 0, %s41
    %s58 = sphi 0, %s42
    %s64 = sphi 0, %s66
    %s67 = sphi 0, %s64
    %s68 = sphi 0, %s67
    %s84 = sphi 0, %s68
    %s92 = sphi 0, %s94
    %s95 = sphi 0, %s92
    %s96 = sphi 0, %s95
    %s112 = sphi 0, %s96
    %s120 = sphi 0, %s122
    %s123 = sphi 0, %s120
    %s124 = sphi 0, %s123
    %s140 = sphi 0, %s124
    %s148 = sphi 0, %s150
    %s151 = sphi 0, %s148
    %s152 = sphi 0, %s151
    %s168 = sphi 0, %s152
    %s176 = sphi 0, %s178
    %s179 = sphi 0, %s176
    %s180 = sphi 0, %s179
    %s196 = sphi 0, %s180
    %s204 = sphi 0, %s206
    %s207 = sphi 0, %s204
    %s208 = sphi 0, %s207
    %s224 = sphi 0, %s208
    %s232 = sphi 0, %s234
    %s235 = sphi 0, %s232
    %s236 = sphi 0, %s235
    %s252 = sphi 0, %s236
    %s260 = sphi 0, %s262
    %s263 = sphi 0, %s260
    %s264 = sphi 0, %s263
    %s280 = sphi 0, %s264
    %s288 = sphi 0, %s290
    %s291 = sphi 0, %s288
    %s292 = sphi 0, %s291
    %s308 = sphi 0, %s292
    %s314 = sphi 0, %s316
    %s317 = sphi 0, %s314
    %s318 = sphi 0, %s317
    %s334 = sphi 0, %s318
  $region4: #{mrbdta_forward.4} parent=0 // loop_header_branch
    %19 = sbr.rel (%p17) target = $region8
  $region5: #{mrbdta_forward.4} parent=0 // loop_body
    %s21 = ssub.s32 %s16, 1
    %s22 = ssub.s32 %s16, 2
    %s29 = sadd.s32 1, %s24
    %p30 = scmp.ge.s32.totalorder %s29, 2
    %s31 = scalar_select %p30, 0, %s29
    %s32 = sadd.s32 1, %s23
    %s33 = scalar_select %p30, %s32, %s23
    %p34 = scmp.ge.s32.totalorder %s33, 4
    %s35 = scalar_select %p34, 0, %s33
    %s36 = ssub.s32 %s23, %s35
    %p37 = scmp.eq.s32.totalorder %s36, 0
    %s39 = sadd.s32 %s38, 1
    %s40 = scalar_select %p37, %s38, %s39
    %p43 = pneg %p37
    %p44 = scmp.eq.s32.totalorder %s16, 7
    %p45 = por %p43, %p44
    %p46 = scmp.ne.s32.totalorder %s38, %s41
    %p47 = scmp.eq.s32.totalorder %s16, 0
    %p48 = por %p46, %p47
    %p49 = scmp.ne.s32.totalorder %s38, %s41
    %p50 = scmp.eq.s32.totalorder %s21, 7
    %p51 = por %p49, %p50
    %p52 = scmp.ne.s32.totalorder %s41, %s42
    %p53 = scmp.eq.s32.totalorder %s21, 0
    %p54 = por %p52, %p53
    %p55 = scmp.ne.s32.totalorder %s41, %s42
    %p56 = scmp.eq.s32.totalorder %s22, 7
    %p57 = por %p55, %p56
    %p59 = scmp.ne.s32.totalorder %s42, %s58
    %p60 = scmp.eq.s32.totalorder %s22, 0
    %p61 = por %p59, %p60
    %s62 = ssub.s32 %s23, %s35
    %p63 = scmp.eq.s32.totalorder %s62, 0
    %s65 = sadd.s32 %s64, 1
    %s66 = scalar_select %p63, %s64, %s65
    %p69 = pneg %p63
    %p70 = scmp.eq.s32.totalorder %s16, 7
    %p71 = por %p69, %p70
    %p72 = scmp.ne.s32.totalorder %s64, %s67
    %p73 = scmp.eq.s32.totalorder %s16, 0
    %p74 = por %p72, %p73
    %p75 = scmp.ne.s32.totalorder %s64, %s67
    %p76 = scmp.eq.s32.totalorder %s21, 7
    %p77 = por %p75, %p76
    %p78 = scmp.ne.s32.totalorder %s67, %s68
    %p79 = scmp.eq.s32.totalorder %s21, 0
    %p80 = por %p78, %p79
    %p81 = scmp.ne.s32.totalorder %s67, %s68
    %p82 = scmp.eq.s32.totalorder %s22, 7
    %p83 = por %p81, %p82
    %p85 = scmp.ne.s32.totalorder %s68, %s84
    %p86 = scmp.eq.s32.totalorder %s22, 0
    %p87 = por %p85, %p86
    %s88 = ssub.s32 %s23, %s35
    %s89 = ssub.s32 %s24, %s31
    %s90 = sor.u32 %s88, %s89
    %p91 = scmp.eq.s32.totalorder %s90, 0
    %s93 = sadd.s32 %s92, 1
    %s94 = scalar_select %p91, %s92, %s93
    %p97 = pneg %p91
    %p98 = scmp.eq.s32.totalorder %s16, 7
    %p99 = por %p97, %p98
    %p100 = scmp.ne.s32.totalorder %s92, %s95
    %p101 = scmp.eq.s32.totalorder %s16, 0
    %p102 = por %p100, %p101
    %p103 = scmp.ne.s32.totalorder %s92, %s95
    %p104 = scmp.eq.s32.totalorder %s21, 7
    %p105 = por %p103, %p104
    %p106 = scmp.ne.s32.totalorder %s95, %s96
    %p107 = scmp.eq.s32.totalorder %s21, 0
    %p108 = por %p106, %p107
    %p109 = scmp.ne.s32.totalorder %s95, %s96
    %p110 = scmp.eq.s32.totalorder %s22, 7
    %p111 = por %p109, %p110
    %p113 = scmp.ne.s32.totalorder %s96, %s112
    %p114 = scmp.eq.s32.totalorder %s22, 0
    %p115 = por %p113, %p114
    %s116 = ssub.s32 %s23, %s35
    %s117 = ssub.s32 %s24, %s31
    %s118 = sor.u32 %s116, %s117
    %p119 = scmp.eq.s32.totalorder %s118, 0
    %s121 = sadd.s32 %s120, 1
    %s122 = scalar_select %p119, %s120, %s121
    %p125 = pneg %p119
    %p126 = scmp.eq.s32.totalorder %s16, 7
    %p127 = por %p125, %p126
    %p128 = scmp.ne.s32.totalorder %s120, %s123
    %p129 = scmp.eq.s32.totalorder %s16, 0
    %p130 = por %p128, %p129
    %p131 = scmp.ne.s32.totalorder %s120, %s123
    %p132 = scmp.eq.s32.totalorder %s21, 7
    %p133 = por %p131, %p132
    %p134 = scmp.ne.s32.totalorder %s123, %s124
    %p135 = scmp.eq.s32.totalorder %s21, 0
    %p136 = por %p134, %p135
    %p137 = scmp.ne.s32.totalorder %s123, %s124
    %p138 = scmp.eq.s32.totalorder %s22, 7
    %p139 = por %p137, %p138
    %p141 = scmp.ne.s32.totalorder %s124, %s140
    %p142 = scmp.eq.s32.totalorder %s22, 0
    %p143 = por %p141, %p142
    %s144 = ssub.s32 %s23, %s35
    %s145 = ssub.s32 %s24, %s31
    %s146 = sor.u32 %s144, %s145
    %p147 = scmp.eq.s32.totalorder %s146, 0
    %s149 = sadd.s32 %s148, 1
    %s150 = scalar_select %p147, %s148, %s149
    %p153 = pneg %p147
    %p154 = scmp.eq.s32.totalorder %s16, 7
    %p155 = por %p153, %p154
    %p156 = scmp.ne.s32.totalorder %s148, %s151
    %p157 = scmp.eq.s32.totalorder %s16, 0
    %p158 = por %p156, %p157
    %p159 = scmp.ne.s32.totalorder %s148, %s151
    %p160 = scmp.eq.s32.totalorder %s21, 7
    %p161 = por %p159, %p160
    %p162 = scmp.ne.s32.totalorder %s151, %s152
    %p163 = scmp.eq.s32.totalorder %s21, 0
    %p164 = por %p162, %p163
    %p165 = scmp.ne.s32.totalorder %s151, %s152
    %p166 = scmp.eq.s32.totalorder %s22, 7
    %p167 = por %p165, %p166
    %p169 = scmp.ne.s32.totalorder %s152, %s168
    %p170 = scmp.eq.s32.totalorder %s22, 0
    %p171 = por %p169, %p170
    %s172 = ssub.s32 %s23, %s35
    %s173 = ssub.s32 %s24, %s31
    %s174 = sor.u32 %s172, %s173
    %p175 = scmp.eq.s32.totalorder %s174, 0
    %s177 = sadd.s32 %s176, 1
    %s178 = scalar_select %p175, %s176, %s177
    %p181 = pneg %p175
    %p182 = scmp.eq.s32.totalorder %s16, 7
    %p183 = por %p181, %p182
    %p184 = scmp.ne.s32.totalorder %s176, %s179
    %p185 = scmp.eq.s32.totalorder %s16, 0
    %p186 = por %p184, %p185
    %p187 = scmp.ne.s32.totalorder %s176, %s179
    %p188 = scmp.eq.s32.totalorder %s21, 7
    %p189 = por %p187, %p188
    %p190 = scmp.ne.s32.totalorder %s179, %s180
    %p191 = scmp.eq.s32.totalorder %s21, 0
    %p192 = por %p190, %p191
    %p193 = scmp.ne.s32.totalorder %s179, %s180
    %p194 = scmp.eq.s32.totalorder %s22, 7
    %p195 = por %p193, %p194
    %p197 = scmp.ne.s32.totalorder %s180, %s196
    %p198 = scmp.eq.s32.totalorder %s22, 0
    %p199 = por %p197, %p198
    %s200 = ssub.s32 %s23, %s35
    %s201 = ssub.s32 %s24, %s31
    %s202 = sor.u32 %s200, %s201
    %p203 = scmp.eq.s32.totalorder %s202, 0
    %s205 = sadd.s32 %s204, 1
    %s206 = scalar_select %p203, %s204, %s205
    %p209 = pneg %p203
    %p210 = scmp.eq.s32.totalorder %s16, 7
    %p211 = por %p209, %p210
    %p212 = scmp.ne.s32.totalorder %s204, %s207
    %p213 = scmp.eq.s32.totalorder %s16, 0
    %p214 = por %p212, %p213
    %p215 = scmp.ne.s32.totalorder %s204, %s207
    %p216 = scmp.eq.s32.totalorder %s21, 7
    %p217 = por %p215, %p216
    %p218 = scmp.ne.s32.totalorder %s207, %s208
    %p219 = scmp.eq.s32.totalorder %s21, 0
    %p220 = por %p218, %p219
    %p221 = scmp.ne.s32.totalorder %s207, %s208
    %p222 = scmp.eq.s32.totalorder %s22, 7
    %p223 = por %p221, %p222
    %p225 = scmp.ne.s32.totalorder %s208, %s224
    %p226 = scmp.eq.s32.totalorder %s22, 0
    %p227 = por %p225, %p226
    %s228 = ssub.s32 %s23, %s35
    %s229 = ssub.s32 %s24, %s31
    %s230 = sor.u32 %s228, %s229
    %p231 = scmp.eq.s32.totalorder %s230, 0
    %s233 = sadd.s32 %s232, 1
    %s234 = scalar_select %p231, %s232, %s233
    %p237 = pneg %p231
    %p238 = scmp.eq.s32.totalorder %s16, 7
    %p239 = por %p237, %p238
    %p240 = scmp.ne.s32.totalorder %s232, %s235
    %p241 = scmp.eq.s32.totalorder %s16, 0
    %p242 = por %p240, %p241
    %p243 = scmp.ne.s32.totalorder %s232, %s235
    %p244 = scmp.eq.s32.totalorder %s21, 7
    %p245 = por %p243, %p244
    %p246 = scmp.ne.s32.totalorder %s235, %s236
    %p247 = scmp.eq.s32.totalorder %s21, 0
    %p248 = por %p246, %p247
    %p249 = scmp.ne.s32.totalorder %s235, %s236
    %p250 = scmp.eq.s32.totalorder %s22, 7
    %p251 = por %p249, %p250
    %p253 = scmp.ne.s32.totalorder %s236, %s252
    %p254 = scmp.eq.s32.totalorder %s22, 0
    %p255 = por %p253, %p254
    %s256 = ssub.s32 %s23, %s35
    %s257 = ssub.s32 %s24, %s31
    %s258 = sor.u32 %s256, %s257
    %p259 = scmp.eq.s32.totalorder %s258, 0
    %s261 = sadd.s32 %s260, 1
    %s262 = scalar_select %p259, %s260, %s261
    %p265 = pneg %p259
    %p266 = scmp.eq.s32.totalorder %s16, 7
    %p267 = por %p265, %p266
    %p268 = scmp.ne.s32.totalorder %s260, %s263
    %p269 = scmp.eq.s32.totalorder %s16, 0
    %p270 = por %p268, %p269
    %p271 = scmp.ne.s32.totalorder %s260, %s263
    %p272 = scmp.eq.s32.totalorder %s21, 7
    %p273 = por %p271, %p272
    %p274 = scmp.ne.s32.totalorder %s263, %s264
    %p275 = scmp.eq.s32.totalorder %s21, 0
    %p276 = por %p274, %p275
    %p277 = scmp.ne.s32.totalorder %s263, %s264
    %p278 = scmp.eq.s32.totalorder %s22, 7
    %p279 = por %p277, %p278
    %p281 = scmp.ne.s32.totalorder %s264, %s280
    %p282 = scmp.eq.s32.totalorder %s22, 0
    %p283 = por %p281, %p282
    %s284 = ssub.s32 %s23, %s35
    %s285 = ssub.s32 %s24, %s31
    %s286 = sor.u32 %s284, %s285
    %p287 = scmp.eq.s32.totalorder %s286, 0
    %s289 = sadd.s32 %s288, 1
    %s290 = scalar_select %p287, %s288, %s289
    %p293 = pneg %p287
    %p294 = scmp.eq.s32.totalorder %s16, 7
    %p295 = por %p293, %p294
    %p296 = scmp.ne.s32.totalorder %s288, %s291
    %p297 = scmp.eq.s32.totalorder %s16, 0
    %p298 = por %p296, %p297
    %p299 = scmp.ne.s32.totalorder %s288, %s291
    %p300 = scmp.eq.s32.totalorder %s21, 7
    %p301 = por %p299, %p300
    %p302 = scmp.ne.s32.totalorder %s291, %s292
    %p303 = scmp.eq.s32.totalorder %s21, 0
    %p304 = por %p302, %p303
    %p305 = scmp.ne.s32.totalorder %s291, %s292
    %p306 = scmp.eq.s32.totalorder %s22, 7
    %p307 = por %p305, %p306
    %p309 = scmp.ne.s32.totalorder %s292, %s308
    %p310 = scmp.eq.s32.totalorder %s22, 0
    %p311 = por %p309, %p310
    %s312 = ssub.s32 %s23, %s35
    %p313 = scmp.eq.s32.totalorder %s312, 0
    %s315 = sadd.s32 %s314, 1
    %s316 = scalar_select %p313, %s314, %s315
    %p319 = pneg %p313
    %p320 = scmp.eq.s32.totalorder %s16, 7
    %p321 = por %p319, %p320
    %p322 = scmp.ne.s32.totalorder %s314, %s317
    %p323 = scmp.eq.s32.totalorder %s16, 0
    %p324 = por %p322, %p323
    %p325 = scmp.ne.s32.totalorder %s314, %s317
    %p326 = scmp.eq.s32.totalorder %s21, 7
    %p327 = por %p325, %p326
    %p328 = scmp.ne.s32.totalorder %s317, %s318
    %p329 = scmp.eq.s32.totalorder %s21, 0
    %p330 = por %p328, %p329
    %p331 = scmp.ne.s32.totalorder %s317, %s318
    %p332 = scmp.eq.s32.totalorder %s22, 7
    %p333 = por %p331, %p332
    %p335 = scmp.ne.s32.totalorder %s318, %s334
    %p336 = scmp.eq.s32.totalorder %s22, 0
    %p337 = por %p335, %p336
    %p338 = scmp.le.s32.totalorder 1, %s16
    %p339 = scmp.lt.s32.totalorder %s16, 9
    %p340 = pnand %p338, %p339
    %p341 = pneg %p340
    // Predicated region
    $region9: #{mrbdta_forward.4} parent=5 // pred_check
      _
    $region10: #{mrbdta_forward.4} parent=5 // pred_check_branch
      %343 = sbr.rel (%p340) target = $region12
    $region11: #{mrbdta_forward.4} parent=5 // pred_region
      %s344 = ssub.s32 %s16, 1
    $region12: #{mrbdta_forward.4} parent=5 // pred_fallthru
      _
    %p345 = scmp.lt.s32.totalorder %s16, 8
    // Predicated region
    $region13: #{mrbdta_forward.4} parent=5 // pred_check
      %p346 = pneg %p345
    $region14: #{mrbdta_forward.4} parent=5 // pred_check_branch
      %348 = sbr.rel (%p346) target = $region16
    $region15: #{mrbdta_forward.4} parent=5 // pred_region
      // Predicated region
      $region17: #{mrbdta_forward.4} parent=15 // pred_check
        %p349 = pneg %p48
      $region18: #{mrbdta_forward.4} parent=15 // pred_check_branch
        %351 = sbr.rel (%p349) target = $region20
      $region19: #{mrbdta_forward.4} parent=15 // pred_region
        %p352 = scmp.lt.s32.totalorder %s23, 3
        %s353 = scalar_select %p352, %s23, 3
        %s354 = smul.addr %s353, 4
        %s355 = smul.addr %s354, 8
        %s356 = scalar_lea.vmem %s0, %s355
      $region20: #{mrbdta_forward.4} parent=15 // pred_fallthru
        _
      // Predicated region
      $region21: #{mrbdta_forward.4} parent=15 // pred_check
        %p357 = pneg %p74
      $region22: #{mrbdta_forward.4} parent=15 // pred_check_branch
        %359 = sbr.rel (%p357) target = $region24
      $region23: #{mrbdta_forward.4} parent=15 // pred_region
        %p360 = scmp.lt.s32.totalorder %s23, 3
        %s361 = scalar_select %p360, %s23, 3
        %s362 = smul.addr %s361, 2
        %s363 = scalar_lea.vmem %s1, %s362
      $region24: #{mrbdta_forward.4} parent=15 // pred_fallthru
        _
      // Predicated region
      $region25: #{mrbdta_forward.4} parent=15 // pred_check
        %p364 = pneg %p102
      $region26: #{mrbdta_forward.4} parent=15 // pred_check_branch
        %366 = sbr.rel (%p364) target = $region28
      $region27: #{mrbdta_forward.4} parent=15 // pred_region
        %p367 = scmp.lt.s32.totalorder %s23, 3
        %s368 = scalar_select %p367, %s23, 3
        %p369 = scmp.lt.s32.totalorder %s24, 1
        %s370 = scalar_select %p369, %s24, 1
        %s371 = smul.addr %s370, 4
        %s372 = smul.addr %s368, 8
        %s373 = sadd.s32 %s371, %s372
        %s374 = smul.addr %s373, 4
        %s375 = scalar_lea.vmem %s2, %s374
      $region28: #{mrbdta_forward.4} parent=15 // pred_fallthru
        _
      // Predicated region
      $region29: #{mrbdta_forward.4} parent=15 // pred_check
        %p376 = pneg %p130
      $region30: #{mrbdta_forward.4} parent=15 // pred_check_branch
        %378 = sbr.rel (%p376) target = $region32
      $region31: #{mrbdta_forward.4} parent=15 // pred_region
        %p379 = scmp.lt.s32.totalorder %s23, 3
        %s380 = scalar_select %p379, %s23, 3
        %p381 = scmp.lt.s32.totalorder %s24, 1
        %s382 = scalar_select %p381, %s24, 1
        %s383 = smul.addr %s382, 4
        %s384 = smul.addr %s380, 8
        %s385 = sadd.s32 %s383, %s384
        %s386 = smul.addr %s385, 4
        %s387 = scalar_lea.vmem %s3, %s386
      $region32: #{mrbdta_forward.4} parent=15 // pred_fallthru
        _
      // Predicated region
      $region33: #{mrbdta_forward.4} parent=15 // pred_check
        %p388 = pneg %p158
      $region34: #{mrbdta_forward.4} parent=15 // pred_check_branch
        %390 = sbr.rel (%p388) target = $region36
      $region35: #{mrbdta_forward.4} parent=15 // pred_region
        %p391 = scmp.lt.s32.totalorder %s23, 3
        %s392 = scalar_select %p391, %s23, 3
        %p393 = scmp.lt.s32.totalorder %s24, 1
        %s394 = scalar_select %p393, %s24, 1
        %s395 = smul.addr %s392, 2
        %s396 = sadd.s32 %s394, %s395
        %s397 = scalar_lea.vmem %s4, %s396
      $region36: #{mrbdta_forward.4} parent=15 // pred_fallthru
        _
      // Predicated region
      $region37: #{mrbdta_forward.4} parent=15 // pred_check
        %p398 = pneg %p186
      $region38: #{mrbdta_forward.4} parent=15 // pred_check_branch
        %400 = sbr.rel (%p398) target = $region40
      $region39: #{mrbdta_forward.4} parent=15 // pred_region
        %p401 = scmp.lt.s32.totalorder %s23, 3
        %s402 = scalar_select %p401, %s23, 3
        %p403 = scmp.lt.s32.totalorder %s24, 1
        %s404 = scalar_select %p403, %s24, 1
        %s405 = smul.addr %s402, 2
        %s406 = sadd.s32 %s404, %s405
        %s407 = scalar_lea.vmem %s5, %s406
      $region40: #{mrbdta_forward.4} parent=15 // pred_fallthru
        _
      // Predicated region
      $region41: #{mrbdta_forward.4} parent=15 // pred_check
        %p408 = pneg %p214
      $region42: #{mrbdta_forward.4} parent=15 // pred_check_branch
        %410 = sbr.rel (%p408) target = $region44
      $region43: #{mrbdta_forward.4} parent=15 // pred_region
        %p411 = scmp.lt.s32.totalorder %s23, 3
        %s412 = scalar_select %p411, %s23, 3
        %p413 = scmp.lt.s32.totalorder %s24, 1
        %s414 = scalar_select %p413, %s24, 1
        %s415 = smul.addr %s414, 4
        %s416 = smul.addr %s412, 8
        %s417 = sadd.s32 %s415, %s416
        %s418 = smul.addr %s417, 4
        %s419 = scalar_lea.vmem %s6, %s418
      $region44: #{mrbdta_forward.4} parent=15 // pred_fallthru
        _
      // Predicated region
      $region45: #{mrbdta_forward.4} parent=15 // pred_check
        %p420 = pneg %p242
      $region46: #{mrbdta_forward.4} parent=15 // pred_check_branch
        %422 = sbr.rel (%p420) target = $region48
      $region47: #{mrbdta_forward.4} parent=15 // pred_region
        %p423 = scmp.lt.s32.totalorder %s23, 3
        %s424 = scalar_select %p423, %s23, 3
        %p425 = scmp.lt.s32.totalorder %s24, 1
        %s426 = scalar_select %p425, %s24, 1
        %s427 = smul.addr %s426, 8
        %s428 = smul.addr %s424, 16
        %s429 = sadd.s32 %s427, %s428
        %s430 = smul.addr %s429, 4
        %s431 = scalar_lea.vmem %s7, %s430
      $region48: #{mrbdta_forward.4} parent=15 // pred_fallthru
        _
      // Predicated region
      $region49: #{mrbdta_forward.4} parent=15 // pred_check
        %p432 = pneg %p270
      $region50: #{mrbdta_forward.4} parent=15 // pred_check_branch
        %434 = sbr.rel (%p432) target = $region52
      $region51: #{mrbdta_forward.4} parent=15 // pred_region
        %p435 = scmp.lt.s32.totalorder %s23, 3
        %s436 = scalar_select %p435, %s23, 3
        %p437 = scmp.lt.s32.totalorder %s24, 1
        %s438 = scalar_select %p437, %s24, 1
        %s439 = smul.addr %s436, 2
        %s440 = sadd.s32 %s438, %s439
        %s441 = scalar_lea.vmem %s8, %s440
      $region52: #{mrbdta_forward.4} parent=15 // pred_fallthru
        _
      // Predicated region
      $region53: #{mrbdta_forward.4} parent=15 // pred_check
        %p442 = pneg %p298
      $region54: #{mrbdta_forward.4} parent=15 // pred_check_branch
        %444 = sbr.rel (%p442) target = $region56
      $region55: #{mrbdta_forward.4} parent=15 // pred_region
        %p445 = scmp.lt.s32.totalorder %s23, 3
        %s446 = scalar_select %p445, %s23, 3
        %p447 = scmp.lt.s32.totalorder %s24, 1
        %s448 = scalar_select %p447, %s24, 1
        %s449 = smul.addr %s446, 2
        %s450 = sadd.s32 %s448, %s449
        %s451 = scalar_lea.vmem %s9, %s450
      $region56: #{mrbdta_forward.4} parent=15 // pred_fallthru
        _
    $region16: #{mrbdta_forward.4} parent=5 // pred_fallthru
      _
    %p452 = scmp.le.s32.totalorder 1, %s16
    %p453 = scmp.lt.s32.totalorder %s16, 9
    %p454 = pnand %p452, %p453
    %p455 = pneg %p454
    // Predicated region
    $region57: #{mrbdta_forward.4} parent=5 // pred_check
      _
    $region58: #{mrbdta_forward.4} parent=5 // pred_check_branch
      %457 = sbr.rel (%p454) target = $region60
    $region59: #{mrbdta_forward.4} parent=5 // pred_region
      %s458 = ssub.s32 %s16, 1
      %p459 = scmp.lt.s32.totalorder %s25, 3
      %s460 = scalar_select %p459, %s25, 3
      %s461 = smul.addr %s460, 4
      %s462 = smul.addr %s461, 8
      %s463 = scalar_lea.vmem %s0, %s462
      %p464 = pneg %p54
      %p465 = pneg %p51
      %p466 = scmp.lt.s32.totalorder %s25, 3
      %s467 = scalar_select %p466, %s25, 3
      %s468 = smul.addr %s467, 2
      %s469 = scalar_lea.vmem %s1, %s468
      %p470 = pneg %p80
      %p471 = pneg %p77
      %p472 = scmp.lt.s32.totalorder %s25, 3
      %s473 = scalar_select %p472, %s25, 3
      %p474 = scmp.lt.s32.totalorder %s26, 1
      %s475 = scalar_select %p474, %s26, 1
      %s476 = smul.addr %s475, 4
      %s477 = smul.addr %s473, 8
      %s478 = sadd.s32 %s476, %s477
      %s479 = smul.addr %s478, 4
      %s480 = scalar_lea.vmem %s2, %s479
      %p481 = pneg %p108
      %p482 = pneg %p105
      %p483 = scmp.lt.s32.totalorder %s25, 3
      %s484 = scalar_select %p483, %s25, 3
      %p485 = scmp.lt.s32.totalorder %s26, 1
      %s486 = scalar_select %p485, %s26, 1
      %s487 = smul.addr %s486, 4
      %s488 = smul.addr %s484, 8
      %s489 = sadd.s32 %s487, %s488
      %s490 = smul.addr %s489, 4
      %s491 = scalar_lea.vmem %s3, %s490
      %p492 = pneg %p136
      %p493 = pneg %p133
      %p494 = scmp.lt.s32.totalorder %s25, 3
      %s495 = scalar_select %p494, %s25, 3
      %p496 = scmp.lt.s32.totalorder %s26, 1
      %s497 = scalar_select %p496, %s26, 1
      %s498 = smul.addr %s495, 2
      %s499 = sadd.s32 %s497, %s498
      %s500 = scalar_lea.vmem %s4, %s499
      %p501 = pneg %p164
      %p502 = pneg %p161
      %p503 = scmp.lt.s32.totalorder %s25, 3
      %s504 = scalar_select %p503, %s25, 3
      %p505 = scmp.lt.s32.totalorder %s26, 1
      %s506 = scalar_select %p505, %s26, 1
      %s507 = smul.addr %s504, 2
      %s508 = sadd.s32 %s506, %s507
      %s509 = scalar_lea.vmem %s5, %s508
      %p510 = pneg %p192
      %p511 = pneg %p189
      %p512 = scmp.lt.s32.totalorder %s25, 3
      %s513 = scalar_select %p512, %s25, 3
      %p514 = scmp.lt.s32.totalorder %s26, 1
      %s515 = scalar_select %p514, %s26, 1
      %s516 = smul.addr %s515, 4
      %s517 = smul.addr %s513, 8
      %s518 = sadd.s32 %s516, %s517
      %s519 = smul.addr %s518, 4
      %s520 = scalar_lea.vmem %s6, %s519
      %p521 = pneg %p220
      %p522 = pneg %p217
      %p523 = scmp.lt.s32.totalorder %s25, 3
      %s524 = scalar_select %p523, %s25, 3
      %p525 = scmp.lt.s32.totalorder %s26, 1
      %s526 = scalar_select %p525, %s26, 1
      %s527 = smul.addr %s526, 8
      %s528 = smul.addr %s524, 16
      %s529 = sadd.s32 %s527, %s528
      %s530 = smul.addr %s529, 4
      %s531 = scalar_lea.vmem %s7, %s530
      %p532 = pneg %p248
      %p533 = pneg %p245
      %p534 = scmp.lt.s32.totalorder %s25, 3
      %s535 = scalar_select %p534, %s25, 3
      %p536 = scmp.lt.s32.totalorder %s26, 1
      %s537 = scalar_select %p536, %s26, 1
      %s538 = smul.addr %s535, 2
      %s539 = sadd.s32 %s537, %s538
      %s540 = scalar_lea.vmem %s8, %s539
      %p541 = pneg %p276
      %p542 = pneg %p273
      %p543 = scmp.lt.s32.totalorder %s25, 3
      %s544 = scalar_select %p543, %s25, 3
      %p545 = scmp.lt.s32.totalorder %s26, 1
      %s546 = scalar_select %p545, %s26, 1
      %s547 = smul.addr %s544, 2
      %s548 = sadd.s32 %s546, %s547
      %s549 = scalar_lea.vmem %s9, %s548
      %p550 = pneg %p304
      %p551 = pneg %p301
      %p552 = pneg %p330
      %p553 = pneg %p327
      %p554 = scmp.lt.s32.totalorder %s25, 3
      %s555 = scalar_select %p554, %s25, 3
      %s556 = smul.addr %s555, 4
      %s557 = smul.addr %s556, 8
      %s558 = scalar_lea.vmem %s10, %s557
      %p559 = scmp.lt.s32.totalorder %s25, 3
      %s560 = scalar_select %p559, %s25, 3
      %s561 = smul.addr %s560, 4
      %s562 = smul.addr %s561, 8
      %s563 = scalar_lea.vmem %s0, %s562
      %p564 = scmp.lt.s32.totalorder %s25, 3
      %s565 = scalar_select %p564, %s25, 3
      %s566 = smul.addr %s565, 2
      %s567 = scalar_lea.vmem %s1, %s566
      %p568 = scmp.lt.s32.totalorder %s25, 3
      %s569 = scalar_select %p568, %s25, 3
      %p570 = scmp.lt.s32.totalorder %s26, 1
      %s571 = scalar_select %p570, %s26, 1
      %s572 = smul.addr %s571, 4
      %s573 = smul.addr %s569, 8
      %s574 = sadd.s32 %s572, %s573
      %s575 = smul.addr %s574, 4
      %s576 = scalar_lea.vmem %s2, %s575
      %p577 = scmp.lt.s32.totalorder %s25, 3
      %s578 = scalar_select %p577, %s25, 3
      %p579 = scmp.lt.s32.totalorder %s26, 1
      %s580 = scalar_select %p579, %s26, 1
      %s581 = smul.addr %s580, 4
      %s582 = smul.addr %s578, 8
      %s583 = sadd.s32 %s581, %s582
      %s584 = smul.addr %s583, 4
      %s585 = scalar_lea.vmem %s3, %s584
      %p586 = scmp.lt.s32.totalorder %s25, 3
      %s587 = scalar_select %p586, %s25, 3
      %p588 = scmp.lt.s32.totalorder %s26, 1
      %s589 = scalar_select %p588, %s26, 1
      %s590 = smul.addr %s587, 2
      %s591 = sadd.s32 %s589, %s590
      %s592 = scalar_lea.vmem %s4, %s591
      %p593 = scmp.lt.s32.totalorder %s25, 3
      %s594 = scalar_select %p593, %s25, 3
      %p595 = scmp.lt.s32.totalorder %s26, 1
      %s596 = scalar_select %p595, %s26, 1
      %s597 = smul.addr %s594, 2
      %s598 = sadd.s32 %s596, %s597
      %s599 = scalar_lea.vmem %s5, %s598
      %p600 = scmp.lt.s32.totalorder %s25, 3
      %s601 = scalar_select %p600, %s25, 3
      %p602 = scmp.lt.s32.totalorder %s26, 1
      %s603 = scalar_select %p602, %s26, 1
      %s604 = smul.addr %s603, 4
      %s605 = smul.addr %s601, 8
      %s606 = sadd.s32 %s604, %s605
      %s607 = smul.addr %s606, 4
      %s608 = scalar_lea.vmem %s6, %s607
      %p609 = scmp.lt.s32.totalorder %s25, 3
      %s610 = scalar_select %p609, %s25, 3
      %p611 = scmp.lt.s32.totalorder %s26, 1
      %s612 = scalar_select %p611, %s26, 1
      %s613 = smul.addr %s612, 8
      %s614 = smul.addr %s610, 16
      %s615 = sadd.s32 %s613, %s614
      %s616 = smul.addr %s615, 4
      %s617 = scalar_lea.vmem %s7, %s616
      %p618 = scmp.lt.s32.totalorder %s25, 3
      %s619 = scalar_select %p618, %s25, 3
      %p620 = scmp.lt.s32.totalorder %s26, 1
      %s621 = scalar_select %p620, %s26, 1
      %s622 = smul.addr %s619, 2
      %s623 = sadd.s32 %s621, %s622
      %s624 = scalar_lea.vmem %s8, %s623
      %p625 = scmp.lt.s32.totalorder %s25, 3
      %s626 = scalar_select %p625, %s25, 3
      %p627 = scmp.lt.s32.totalorder %s26, 1
      %s628 = scalar_select %p627, %s26, 1
      %s629 = smul.addr %s626, 2
      %s630 = sadd.s32 %s628, %s629
      %s631 = scalar_lea.vmem %s9, %s630
      %p632 = scmp.lt.s32.totalorder %s25, 3
      %s633 = scalar_select %p632, %s25, 3
      %s634 = smul.addr %s633, 4
      %s635 = smul.addr %s634, 8
      %s636 = scalar_lea.vmem %s10, %s635
      %p638 = scmp.eq.s32.totalorder %s26, 0
      // Predicated region
      $region61: #{mrbdta_forward.4} parent=59 // pred_check
        %p639 = pneg %p638
      $region62: #{mrbdta_forward.4} parent=59 // pred_check_branch
        %641 = sbr.rel (%p639) target = $region64
      $region63: #{mrbdta_forward.4} parent=59 // pred_region
        %v642 = vld [vmem:[%s563] sm:$0xff]
        %v643 = vld [vmem:[%s563 + $0x8] sm:$0xff]
        %v644 = vld [vmem:[%s563 + $0x10] sm:$0xff]
        %v645 = vld [vmem:[%s563 + $0x18] sm:$0xff]
        %vm646 = vcmask 261120
        %647 = vst.msk [vmem:[%s636] sm:$0xff] %vm646, %v642
        %648 = vst.msk [vmem:[%s636 + $0x8] sm:$0xff] %vm646, %v643
        %649 = vst.msk [vmem:[%s636 + $0x10] sm:$0xff] %vm646, %v644
        %650 = vst.msk [vmem:[%s636 + $0x18] sm:$0xff] %vm646, %v645
      $region64: #{mrbdta_forward.4} parent=59 // pred_fallthru
        _
      %v651 = vld [vmem:[%s636] sm:$0xff]
      %v652 = vld [vmem:[%s636 + $0x8] sm:$0xff]
      %v653 = vld [vmem:[%s636 + $0x10] sm:$0xff]
      %v654 = vld [vmem:[%s636 + $0x18] sm:$0xff]
      %v655 = vpack.c.bf16 %v652, %v651
      %v656 = vpack.c.bf16 %v654, %v653
      %v657 = vld [vmem:[%s576] sm:$0xf]
      %v658 = vld [vmem:[%s576 + $0x4] sm:$0xf]
      %v659 = vld [vmem:[%s576 + $0x8] sm:$0xf]
      %v660 = vld [vmem:[%s576 + $0xc] sm:$0xf]
      %v665 = vunpack.c.l.b16 %v657
      %v666 = vunpack.c.l.b16 %v658
      %v667 = vunpack.c.l.b16 %v659
      %v668 = vunpack.c.l.b16 %v660
      %v669 = vpack.c.b16 %v666, %v665
      %v670 = vpack.c.b16 %v668, %v667
      %vm673 = vcmask 261120
      %v675 = vsel %vm673, %v655, 0
      %v678 = vsel %vm673, %v656, 0
      %680 = vmatprep.subr.bf16.mxu0 0
      %681 = vmatpush1.bf16.msra.mxu0 0
      %682 = vmatprep.subr.bf16.mxu0 0
      %683 = vmatpush1.bf16.msra.mxu0 0
      %684 = vmatprep.subr.bf16.mxu0 0
      %685 = vmatpush1.bf16.msra.mxu0 0
      %686 = vmatprep.subr.bf16.mxu0 0
      %687 = vmatpush1.bf16.msra.mxu0 0
      %688 = vmatprep.subr.bf16.mxu0 0
      %689 = vmatpush1.bf16.msra.mxu0 0
      %690 = vmatprep.subr.bf16.mxu0 0
      %691 = vmatpush1.bf16.msra.mxu0 0
      %692 = vmatprep.subr.bf16.mxu0 0
      %693 = vmatpush1.bf16.msra.mxu0 %v670
      %694 = vmatprep.subr.bf16.mxu0 0
      %695 = vmatpush1.bf16.msra.mxu0 %v669
      %696 = vmatprep.subr.bf16.mxu0 0
      %697 = vmatpush2.bf16.msra.mxu0 0
      %698 = vmatprep.subr.bf16.mxu0 0
      %699 = vmatpush2.bf16.msra.mxu0 0
      %700 = vmatprep.subr.bf16.mxu0 0
      %701 = vmatpush2.bf16.msra.mxu0 0
      %702 = vmatprep.subr.bf16.mxu0 0
      %703 = vmatpush2.bf16.msra.mxu0 0
      %704 = vmatprep.subr.bf16.mxu0 0
      %705 = vmatpush2.bf16.msra.mxu0 0
      %706 = vmatprep.subr.bf16.mxu0 0
      %707 = vmatpush2.bf16.msra.mxu0 0
      %708 = vmatprep.subr.bf16.mxu0 0
      %709 = vmatpush2.bf16.msra.mxu0 0
      %710 = vmatprep.subr.bf16.mxu0 0
      %711 = vmatpush2.bf16.msra.mxu0 0
      %712 = vmatprep.mubr.bf16.mxu0 0
      %713 = vmatmul.mubr.bf16.gmra.mxu0 %v675
      %v714 = vpop.f32.mrf.mxu0
      %v715 = vadd.f32 0.0, %v714
      %v716 = vpop.f32.mrf.mxu0
      %v717 = vpop.f32.mrf.mxu0
      %v718 = vadd.f32 0.0, %v717
      %v719 = vpop.f32.mrf.mxu0
      %720 = vmatprep.mubr.bf16.mxu0 0
      %721 = vmatmul.mubr.bf16.gmra.mxu0 %v678
      %v722 = vpop.f32.mrf.mxu0
      %v723 = vadd.f32 0.0, %v722
      %v724 = vpop.f32.mrf.mxu0
      %v725 = vpop.f32.mrf.mxu0
      %v726 = vadd.f32 0.0, %v725
      %v727 = vpop.f32.mrf.mxu0
      %728 = vdwg.mxu0
      %v729 = vpack.c.bf16 %v718, %v715
      %v730 = vpack.c.bf16 %v726, %v723
      %v731 = vld [vmem:[%s567] sm:$0x3]
      %vm732 = vcmp.gt.f32.partialorder %v731, 0.5
      %734 = vrot.lane.b32.xlu0 %v729, 96
      %v735 = vpop.permute.xlu0 %734
      %736 = vrot.lane.b32.xlu0 %v729, 64
      %v737 = vpop.permute.xlu0 %736
      %vm738 = vcmask 130048
      %v740 = vsel %vm738, %v735, 0
      %v743 = vsel %vm738, %v737, 0
      %745 = vmatprep.subr.bf16.mxu0 0
      %746 = vmatpush1.bf16.xpose.msra.mxu0 0
      %747 = vmatprep.subr.bf16.mxu0 0
      %748 = vmatpush1.bf16.xpose.msra.mxu0 0
      %749 = vmatprep.subr.bf16.mxu0 0
      %750 = vmatpush1.bf16.xpose.msra.mxu0 0
      %751 = vmatprep.subr.bf16.mxu0 0
      %752 = vmatpush1.bf16.xpose.msra.mxu0 0
      %753 = vmatprep.subr.bf16.mxu0 0
      %754 = vmatpush1.bf16.xpose.msra.mxu0 0
      %755 = vmatprep.subr.bf16.mxu0 0
      %756 = vmatpush1.bf16.xpose.msra.mxu0 0
      %757 = vmatprep.subr.bf16.mxu0 0
      %758 = vmatpush1.bf16.xpose.msra.mxu0 0
      %759 = vmatprep.subr.bf16.mxu0 0
      %760 = vmatpush1.bf16.xpose.msra.mxu0 %v743
      %761 = vmatprep.subr.bf16.mxu0 0
      %762 = vmatpush2.bf16.xpose.msra.mxu0 0
      %763 = vmatprep.subr.bf16.mxu0 0
      %764 = vmatpush2.bf16.xpose.msra.mxu0 0
      %765 = vmatprep.subr.bf16.mxu0 0
      %766 = vmatpush2.bf16.xpose.msra.mxu0 0
      %767 = vmatprep.subr.bf16.mxu0 0
      %768 = vmatpush2.bf16.xpose.msra.mxu0 0
      %769 = vmatprep.subr.bf16.mxu0 0
      %770 = vmatpush2.bf16.xpose.msra.mxu0 0
      %771 = vmatprep.subr.bf16.mxu0 0
      %772 = vmatpush2.bf16.xpose.msra.mxu0 0
      %773 = vmatprep.subr.bf16.mxu0 0
      %774 = vmatpush2.bf16.xpose.msra.mxu0 0
      %775 = vmatprep.subr.bf16.mxu0 0
      %776 = vmatpush2.bf16.xpose.msra.mxu0 0
      %777 = vmatprep.mubr.bf16.mxu0 0
      %778 = vmatmul.mubr.bf16.gmra.mxu0 %v740
      %v779 = vpop.f32.mrf.mxu0
      %v780 = vadd.f32 0.0, %v779
      %v781 = vpop.f32.mrf.mxu0
      %v782 = vpop.f32.mrf.mxu0
      %v783 = vadd.f32 0.0, %v782
      %v784 = vpop.f32.mrf.mxu0
      %785 = vdwg.mxu0
      %v786 = vmul.f32 %v780, 0.25
      %v787 = vmul.f32 %v783, 0.25
      %v788 = vsel %vm732, 1, 0
      %v789 = vlaneseq
      %v790 = vshrl.u32 %v789, 7
      %v791 = vsub.s32 0, %v790
      %v792 = vrot.slane %v788, %v791
      %vm793 = vcmp.eq.s32.totalorder %v792, 1
      %v794 = vsel %vm793, -1e+09, %v786
      %v795 = vsel %vm793, -1e+09, %v787
      %v796 = vsel %vm738, %v794, -inf
      %797 = vmax.xlane.f32.xlu0 %v796
      %v798 = vpop.xlane.xlu0 %797
      %v799 = vsel %vm738, %v795, -inf
      %800 = vmax.xlane.f32.xlu0 %v799
      %v801 = vpop.xlane.xlu0 %800
      %v802 = vsub.f32 %v794, %v798
      %v803 = vsub.f32 %v795, %v801
      %v804 = vmul.f32 %v802, 1.442695
      %v805 = vpow.pop %v804
      %v806 = vmul.f32 %v803, 1.442695
      %v807 = vpow.pop %v806
      %v808 = vsel %vm738, %v805, 0.0
      %809 = vadd.xlane.f32.xlu0 %v808
      %v810 = vpop.xlane.xlu0 %809
      %v811 = vsel %vm738, %v807, 0.0
      %812 = vadd.xlane.f32.xlu0 %v811
      %v813 = vpop.xlane.xlu0 %812
      %v814 = vrcp.pop %v810
      %v815 = vrcp.pop %v813
      %v816 = vmul.f32 %v805, %v814
      %v817 = vmul.f32 %v807, %v815
      %v818 = vpack.c.bf16 %v817, %v816
      %819 = vrot.lane.b32.xlu0 %v729, 32
      %v820 = vpop.permute.xlu0 %819
      %v823 = vsel %vm738, %v818, 0
      %825 = vmatprep.subr.bf16.mxu0 0
      %826 = vmatpush1.bf16.msra.mxu0 0
      %827 = vmatprep.subr.bf16.mxu0 0
      %828 = vmatpush1.bf16.msra.mxu0 0
      %829 = vmatprep.subr.bf16.mxu0 0
      %830 = vmatpush1.bf16.msra.mxu0 0
      %831 = vmatprep.subr.bf16.mxu0 0
      %832 = vmatpush1.bf16.msra.mxu0 0
      %833 = vmatprep.subr.bf16.mxu0 0
      %834 = vmatpush1.bf16.msra.mxu0 0
      %835 = vmatprep.subr.bf16.mxu0 0
      %836 = vmatpush1.bf16.msra.mxu0 0
      %837 = vmatprep.subr.bf16.mxu0 0
      %838 = vmatpush1.bf16.msra.mxu0 0
      %839 = vmatprep.subr.bf16.mxu0 0
      %840 = vmatpush1.bf16.msra.mxu0 %v820
      %841 = vmatprep.subr.bf16.mxu0 0
      %842 = vmatpush2.bf16.msra.mxu0 0
      %843 = vmatprep.subr.bf16.mxu0 0
      %844 = vmatpush2.bf16.msra.mxu0 0
      %845 = vmatprep.subr.bf16.mxu0 0
      %846 = vmatpush2.bf16.msra.mxu0 0
      %847 = vmatprep.subr.bf16.mxu0 0
      %848 = vmatpush2.bf16.msra.mxu0 0
      %849 = vmatprep.subr.bf16.mxu0 0
      %850 = vmatpush2.bf16.msra.mxu0 0
      %851 = vmatprep.subr.bf16.mxu0 0
      %852 = vmatpush2.bf16.msra.mxu0 0
      %853 = vmatprep.subr.bf16.mxu0 0
      %854 = vmatpush2.bf16.msra.mxu0 0
      %855 = vmatprep.subr.bf16.mxu0 0
      %856 = vmatpush2.bf16.msra.mxu0 0
      %857 = vmatprep.mubr.bf16.mxu0 0
      %858 = vmatmul.mubr.bf16.gmra.mxu0 %v823
      %v859 = vpop.f32.mrf.mxu0
      %v860 = vadd.f32 0.0, %v859
      %v861 = vpop.f32.mrf.mxu0
      %v862 = vpop.f32.mrf.mxu0
      %v863 = vadd.f32 0.0, %v862
      %v864 = vpop.f32.mrf.mxu0
      %865 = vdwg.mxu0
      %866 = vst.msk [vmem:[#allocation2] sm:$0xff] %vm738, %v860
      %867 = vst.msk [vmem:[#allocation2 + $0x8] sm:$0xff] %vm738, %v863
      %868 = vrot.lane.b32.xlu0 %v729, 80
      %v869 = vpop.permute.xlu0 %868
      %870 = vrot.lane.b32.xlu0 %v729, 48
      %v871 = vpop.permute.xlu0 %870
      %v873 = vsel %vm738, %v869, 0
      %v876 = vsel %vm738, %v871, 0
      %878 = vmatprep.subr.bf16.mxu0 0
      %879 = vmatpush1.bf16.xpose.msra.mxu0 0
      %880 = vmatprep.subr.bf16.mxu0 0
      %881 = vmatpush1.bf16.xpose.msra.mxu0 0
      %882 = vmatprep.subr.bf16.mxu0 0
      %883 = vmatpush1.bf16.xpose.msra.mxu0 0
      %884 = vmatprep.subr.bf16.mxu0 0
      %885 = vmatpush1.bf16.xpose.msra.mxu0 0
      %886 = vmatprep.subr.bf16.mxu0 0
      %887 = vmatpush1.bf16.xpose.msra.mxu0 0
      %888 = vmatprep.subr.bf16.mxu0 0
      %889 = vmatpush1.bf16.xpose.msra.mxu0 0
      %890 = vmatprep.subr.bf16.mxu0 0
      %891 = vmatpush1.bf16.xpose.msra.mxu0 0
      %892 = vmatprep.subr.bf16.mxu0 0
      %893 = vmatpush1.bf16.xpose.msra.mxu0 %v876
      %894 = vmatprep.subr.bf16.mxu0 0
      %895 = vmatpush2.bf16.xpose.msra.mxu0 0
      %896 = vmatprep.subr.bf16.mxu0 0
      %897 = vmatpush2.bf16.xpose.msra.mxu0 0
      %898 = vmatprep.subr.bf16.mxu0 0
      %899 = vmatpush2.bf16.xpose.msra.mxu0 0
      %900 = vmatprep.subr.bf16.mxu0 0
      %901 = vmatpush2.bf16.xpose.msra.mxu0 0
      %902 = vmatprep.subr.bf16.mxu0 0
      %903 = vmatpush2.bf16.xpose.msra.mxu0 0
      %904 = vmatprep.subr.bf16.mxu0 0
      %905 = vmatpush2.bf16.xpose.msra.mxu0 0
      %906 = vmatprep.subr.bf16.mxu0 0
      %907 = vmatpush2.bf16.xpose.msra.mxu0 0
      %908 = vmatprep.subr.bf16.mxu0 0
      %909 = vmatpush2.bf16.xpose.msra.mxu0 0
      %910 = vmatprep.mubr.bf16.mxu0 0
      %911 = vmatmul.mubr.bf16.gmra.mxu0 %v873
      %v912 = vpop.f32.mrf.mxu0
      %v913 = vadd.f32 0.0, %v912
      %v914 = vpop.f32.mrf.mxu0
      %v915 = vpop.f32.mrf.mxu0
      %v916 = vadd.f32 0.0, %v915
      %v917 = vpop.f32.mrf.mxu0
      %918 = vdwg.mxu0
      %v919 = vmul.f32 %v913, 0.25
      %v920 = vmul.f32 %v916, 0.25
      %v921 = vsel %vm793, -1e+09, %v919
      %v922 = vsel %vm793, -1e+09, %v920
      %v923 = vsel %vm738, %v921, -inf
      %924 = vmax.xlane.f32.xlu0 %v923
      %v925 = vpop.xlane.xlu0 %924
      %v926 = vsel %vm738, %v922, -inf
      %927 = vmax.xlane.f32.xlu0 %v926
      %v928 = vpop.xlane.xlu0 %927
      %v929 = vsub.f32 %v921, %v925
      %v930 = vsub.f32 %v922, %v928
      %v931 = vmul.f32 %v929, 1.442695
      %v932 = vpow.pop %v931
      %v933 = vmul.f32 %v930, 1.442695
      %v934 = vpow.pop %v933
      %v935 = vsel %vm738, %v932, 0.0
      %936 = vadd.xlane.f32.xlu0 %v935
      %v937 = vpop.xlane.xlu0 %936
      %v938 = vsel %vm738, %v934, 0.0
      %939 = vadd.xlane.f32.xlu0 %v938
      %v940 = vpop.xlane.xlu0 %939
      %v941 = vrcp.pop %v937
      %v942 = vrcp.pop %v940
      %v943 = vmul.f32 %v932, %v941
      %v944 = vmul.f32 %v934, %v942
      %v945 = vpack.c.bf16 %v944, %v943
      %946 = vrot.lane.b32.xlu0 %v729, 16
      %v947 = vpop.permute.xlu0 %946
      %v950 = vsel %vm738, %v945, 0
      %952 = vmatprep.subr.bf16.mxu0 0
      %953 = vmatpush1.bf16.msra.mxu0 0
      %954 = vmatprep.subr.bf16.mxu0 0
      %955 = vmatpush1.bf16.msra.mxu0 0
      %956 = vmatprep.subr.bf16.mxu0 0
      %957 = vmatpush1.bf16.msra.mxu0 0
      %958 = vmatprep.subr.bf16.mxu0 0
      %959 = vmatpush1.bf16.msra.mxu0 0
      %960 = vmatprep.subr.bf16.mxu0 0
      %961 = vmatpush1.bf16.msra.mxu0 0
      %962 = vmatprep.subr.bf16.mxu0 0
      %963 = vmatpush1.bf16.msra.mxu0 0
      %964 = vmatprep.subr.bf16.mxu0 0
      %965 = vmatpush1.bf16.msra.mxu0 0
      %966 = vmatprep.subr.bf16.mxu0 0
      %967 = vmatpush1.bf16.msra.mxu0 %v947
      %968 = vmatprep.subr.bf16.mxu0 0
      %969 = vmatpush2.bf16.msra.mxu0 0
      %970 = vmatprep.subr.bf16.mxu0 0
      %971 = vmatpush2.bf16.msra.mxu0 0
      %972 = vmatprep.subr.bf16.mxu0 0
      %973 = vmatpush2.bf16.msra.mxu0 0
      %974 = vmatprep.subr.bf16.mxu0 0
      %975 = vmatpush2.bf16.msra.mxu0 0
      %976 = vmatprep.subr.bf16.mxu0 0
      %977 = vmatpush2.bf16.msra.mxu0 0
      %978 = vmatprep.subr.bf16.mxu0 0
      %979 = vmatpush2.bf16.msra.mxu0 0
      %980 = vmatprep.subr.bf16.mxu0 0
      %981 = vmatpush2.bf16.msra.mxu0 0
      %982 = vmatprep.subr.bf16.mxu0 0
      %983 = vmatpush2.bf16.msra.mxu0 0
      %984 = vmatprep.mubr.bf16.mxu0 0
      %985 = vmatmul.mubr.bf16.gmra.mxu0 %v950
      %v986 = vpop.f32.mrf.mxu0
      %v987 = vadd.f32 0.0, %v986
      %v988 = vpop.f32.mrf.mxu0
      %v989 = vpop.f32.mrf.mxu0
      %v990 = vadd.f32 0.0, %v989
      %v991 = vpop.f32.mrf.mxu0
      %992 = vdwg.mxu0
      %995 = vrot.lane.b32.xlu0 %v987, 16
      %v996 = vpop.permute.xlu0 %995
      %997 = vrot.lane.b32.xlu0 %v990, 16
      %v998 = vpop.permute.xlu0 %997
      %vm1001 = vcmask 261248
      %1002 = vst.msk [vmem:[#allocation2] sm:$0xff] %vm1001, %v996
      %1003 = vst.msk [vmem:[#allocation2 + $0x8] sm:$0xff] %vm1001, %v998
      %1005 = vrot.lane.b32.xlu0 %v730, 96
      %v1006 = vpop.permute.xlu0 %1005
      %1007 = vrot.lane.b32.xlu0 %v730, 64
      %v1008 = vpop.permute.xlu0 %1007
      %v1010 = vsel %vm738, %v1006, 0
      %v1013 = vsel %vm738, %v1008, 0
      %1015 = vmatprep.subr.bf16.mxu0 0
      %1016 = vmatpush1.bf16.xpose.msra.mxu0 0
      %1017 = vmatprep.subr.bf16.mxu0 0
      %1018 = vmatpush1.bf16.xpose.msra.mxu0 0
      %1019 = vmatprep.subr.bf16.mxu0 0
      %1020 = vmatpush1.bf16.xpose.msra.mxu0 0
      %1021 = vmatprep.subr.bf16.mxu0 0
      %1022 = vmatpush1.bf16.xpose.msra.mxu0 0
      %1023 = vmatprep.subr.bf16.mxu0 0
      %1024 = vmatpush1.bf16.xpose.msra.mxu0 0
      %1025 = vmatprep.subr.bf16.mxu0 0
      %1026 = vmatpush1.bf16.xpose.msra.mxu0 0
      %1027 = vmatprep.subr.bf16.mxu0 0
      %1028 = vmatpush1.bf16.xpose.msra.mxu0 0
      %1029 = vmatprep.subr.bf16.mxu0 0
      %1030 = vmatpush1.bf16.xpose.msra.mxu0 %v1013
      %1031 = vmatprep.subr.bf16.mxu0 0
      %1032 = vmatpush2.bf16.xpose.msra.mxu0 0
      %1033 = vmatprep.subr.bf16.mxu0 0
      %1034 = vmatpush2.bf16.xpose.msra.mxu0 0
      %1035 = vmatprep.subr.bf16.mxu0 0
      %1036 = vmatpush2.bf16.xpose.msra.mxu0 0
      %1037 = vmatprep.subr.bf16.mxu0 0
      %1038 = vmatpush2.bf16.xpose.msra.mxu0 0
      %1039 = vmatprep.subr.bf16.mxu0 0
      %1040 = vmatpush2.bf16.xpose.msra.mxu0 0
      %1041 = vmatprep.subr.bf16.mxu0 0
      %1042 = vmatpush2.bf16.xpose.msra.mxu0 0
      %1043 = vmatprep.subr.bf16.mxu0 0
      %1044 = vmatpush2.bf16.xpose.msra.mxu0 0
      %1045 = vmatprep.subr.bf16.mxu0 0
      %1046 = vmatpush2.bf16.xpose.msra.mxu0 0
      %1047 = vmatprep.mubr.bf16.mxu0 0
      %1048 = vmatmul.mubr.bf16.gmra.mxu0 %v1010
      %v1049 = vpop.f32.mrf.mxu0
      %v1050 = vadd.f32 0.0, %v1049
      %v1051 = vpop.f32.mrf.mxu0
      %v1052 = vpop.f32.mrf.mxu0
      %v1053 = vadd.f32 0.0, %v1052
      %v1054 = vpop.f32.mrf.mxu0
      %1055 = vdwg.mxu0
      %v1056 = vmul.f32 %v1050, 0.25
      %v1057 = vmul.f32 %v1053, 0.25
      %v1058 = vlaneseq
      %v1059 = vshrl.u32 %v1058, 7
      %v1060 = vsub.s32 1, %v1059
      %v1061 = vrot.slane %v788, %v1060
      %vm1062 = vcmp.eq.s32.totalorder %v1061, 1
      %v1063 = vsel %vm1062, -1e+09, %v1056
      %v1064 = vsel %vm1062, -1e+09, %v1057
      %v1065 = vsel %vm738, %v1063, -inf
      %1066 = vmax.xlane.f32.xlu0 %v1065
      %v1067 = vpop.xlane.xlu0 %1066
      %v1068 = vsel %vm738, %v1064, -inf
      %1069 = vmax.xlane.f32.xlu0 %v1068
      %v1070 = vpop.xlane.xlu0 %1069
      %v1071 = vsub.f32 %v1063, %v1067
      %v1072 = vsub.f32 %v1064, %v1070
      %v1073 = vmul.f32 %v1071, 1.442695
      %v1074 = vpow.pop %v1073
      %v1075 = vmul.f32 %v1072, 1.442695
      %v1076 = vpow.pop %v1075
      %v1077 = vsel %vm738, %v1074, 0.0
      %1078 = vadd.xlane.f32.xlu0 %v1077
      %v1079 = vpop.xlane.xlu0 %1078
      %v1080 = vsel %vm738, %v1076, 0.0
      %1081 = vadd.xlane.f32.xlu0 %v1080
      %v1082 = vpop.xlane.xlu0 %1081
      %v1083 = vrcp.pop %v1079
      %v1084 = vrcp.pop %v1082
      %v1085 = vmul.f32 %v1074, %v1083
      %v1086 = vmul.f32 %v1076, %v1084
      %v1087 = vpack.c.bf16 %v1086, %v1085
      %1088 = vrot.lane.b32.xlu0 %v730, 32
      %v1089 = vpop.permute.xlu0 %1088
      %v1092 = vsel %vm738, %v1087, 0
      %1094 = vmatprep.subr.bf16.mxu0 0
      %1095 = vmatpush1.bf16.msra.mxu0 0
      %1096 = vmatprep.subr.bf16.mxu0 0
      %1097 = vmatpush1.bf16.msra.mxu0 0
      %1098 = vmatprep.subr.bf16.mxu0 0
      %1099 = vmatpush1.bf16.msra.mxu0 0
      %1100 = vmatprep.subr.bf16.mxu0 0
      %1101 = vmatpush1.bf16.msra.mxu0 0
      %1102 = vmatprep.subr.bf16.mxu0 0
      %1103 = vmatpush1.bf16.msra.mxu0 0
      %1104 = vmatprep.subr.bf16.mxu0 0
      %1105 = vmatpush1.bf16.msra.mxu0 0
      %1106 = vmatprep.subr.bf16.mxu0 0
      %1107 = vmatpush1.bf16.msra.mxu0 0
      %1108 = vmatprep.subr.bf16.mxu0 0
      %1109 = vmatpush1.bf16.msra.mxu0 %v1089
      %1110 = vmatprep.subr.bf16.mxu0 0
      %1111 = vmatpush2.bf16.msra.mxu0 0
      %1112 = vmatprep.subr.bf16.mxu0 0
      %1113 = vmatpush2.bf16.msra.mxu0 0
      %1114 = vmatprep.subr.bf16.mxu0 0
      %1115 = vmatpush2.bf16.msra.mxu0 0
      %1116 = vmatprep.subr.bf16.mxu0 0
      %1117 = vmatpush2.bf16.msra.mxu0 0
      %1118 = vmatprep.subr.bf16.mxu0 0
      %1119 = vmatpush2.bf16.msra.mxu0 0
      %1120 = vmatprep.subr.bf16.mxu0 0
      %1121 = vmatpush2.bf16.msra.mxu0 0
      %1122 = vmatprep.subr.bf16.mxu0 0
      %1123 = vmatpush2.bf16.msra.mxu0 0
      %1124 = vmatprep.subr.bf16.mxu0 0
      %1125 = vmatpush2.bf16.msra.mxu0 0
      %1126 = vmatprep.mubr.bf16.mxu0 0
      %1127 = vmatmul.mubr.bf16.gmra.mxu0 %v1092
      %v1128 = vpop.f32.mrf.mxu0
      %v1129 = vadd.f32 0.0, %v1128
      %v1130 = vpop.f32.mrf.mxu0
      %v1131 = vpop.f32.mrf.mxu0
      %v1132 = vadd.f32 0.0, %v1131
      %v1133 = vpop.f32.mrf.mxu0
      %1134 = vdwg.mxu0
      %1135 = vst.msk [vmem:[#allocation2 + $0x10] sm:$0xff] %vm738, %v1129
      %1136 = vst.msk [vmem:[#allocation2 + $0x18] sm:$0xff] %vm738, %v1132
      %1137 = vrot.lane.b32.xlu0 %v730, 80
      %v1138 = vpop.permute.xlu0 %1137
      %1139 = vrot.lane.b32.xlu0 %v730, 48
      %v1140 = vpop.permute.xlu0 %1139
      %v1142 = vsel %vm738, %v1138, 0
      %v1145 = vsel %vm738, %v1140, 0
      %1147 = vmatprep.subr.bf16.mxu0 0
      %1148 = vmatpush1.bf16.xpose.msra.mxu0 0
      %1149 = vmatprep.subr.bf16.mxu0 0
      %1150 = vmatpush1.bf16.xpose.msra.mxu0 0
      %1151 = vmatprep.subr.bf16.mxu0 0
      %1152 = vmatpush1.bf16.xpose.msra.mxu0 0
      %1153 = vmatprep.subr.bf16.mxu0 0
      %1154 = vmatpush1.bf16.xpose.msra.mxu0 0
      %1155 = vmatprep.subr.bf16.mxu0 0
      %1156 = vmatpush1.bf16.xpose.msra.mxu0 0
      %1157 = vmatprep.subr.bf16.mxu0 0
      %1158 = vmatpush1.bf16.xpose.msra.mxu0 0
      %1159 = vmatprep.subr.bf16.mxu0 0
      %1160 = vmatpush1.bf16.xpose.msra.mxu0 0
      %1161 = vmatprep.subr.bf16.mxu0 0
      %1162 = vmatpush1.bf16.xpose.msra.mxu0 %v1145
      %1163 = vmatprep.subr.bf16.mxu0 0
      %1164 = vmatpush2.bf16.xpose.msra.mxu0 0
      %1165 = vmatprep.subr.bf16.mxu0 0
      %1166 = vmatpush2.bf16.xpose.msra.mxu0 0
      %1167 = vmatprep.subr.bf16.mxu0 0
      %1168 = vmatpush2.bf16.xpose.msra.mxu0 0
      %1169 = vmatprep.subr.bf16.mxu0 0
      %1170 = vmatpush2.bf16.xpose.msra.mxu0 0
      %1171 = vmatprep.subr.bf16.mxu0 0
      %1172 = vmatpush2.bf16.xpose.msra.mxu0 0
      %1173 = vmatprep.subr.bf16.mxu0 0
      %1174 = vmatpush2.bf16.xpose.msra.mxu0 0
      %1175 = vmatprep.subr.bf16.mxu0 0
      %1176 = vmatpush2.bf16.xpose.msra.mxu0 0
      %1177 = vmatprep.subr.bf16.mxu0 0
      %1178 = vmatpush2.bf16.xpose.msra.mxu0 0
      %1179 = vmatprep.mubr.bf16.mxu0 0
      %1180 = vmatmul.mubr.bf16.gmra.mxu0 %v1142
      %v1181 = vpop.f32.mrf.mxu0
      %v1182 = vadd.f32 0.0, %v1181
      %v1183 = vpop.f32.mrf.mxu0
      %v1184 = vpop.f32.mrf.mxu0
      %v1185 = vadd.f32 0.0, %v1184
      %v1186 = vpop.f32.mrf.mxu0
      %1187 = vdwg.mxu0
      %v1188 = vmul.f32 %v1182, 0.25
      %v1189 = vmul.f32 %v1185, 0.25
      %v1190 = vsel %vm1062, -1e+09, %v1188
      %v1191 = vsel %vm1062, -1e+09, %v1189
      %v1192 = vsel %vm738, %v1190, -inf
      %1193 = vmax.xlane.f32.xlu0 %v1192
      %v1194 = vpop.xlane.xlu0 %1193
      %v1195 = vsel %vm738, %v1191, -inf
      %1196 = vmax.xlane.f32.xlu0 %v1195
      %v1197 = vpop.xlane.xlu0 %1196
      %v1198 = vsub.f32 %v1190, %v1194
      %v1199 = vsub.f32 %v1191, %v1197
      %v1200 = vmul.f32 %v1198, 1.442695
      %v1201 = vpow.pop %v1200
      %v1202 = vmul.f32 %v1199, 1.442695
      %v1203 = vpow.pop %v1202
      %v1204 = vsel %vm738, %v1201, 0.0
      %1205 = vadd.xlane.f32.xlu0 %v1204
      %v1206 = vpop.xlane.xlu0 %1205
      %v1207 = vsel %vm738, %v1203, 0.0
      %1208 = vadd.xlane.f32.xlu0 %v1207
      %v1209 = vpop.xlane.xlu0 %1208
      %v1210 = vrcp.pop %v1206
      %v1211 = vrcp.pop %v1209
      %v1212 = vmul.f32 %v1201, %v1210
      %v1213 = vmul.f32 %v1203, %v1211
      %v1214 = vpack.c.bf16 %v1213, %v1212
      %1215 = vrot.lane.b32.xlu0 %v730, 16
      %v1216 = vpop.permute.xlu0 %1215
      %v1219 = vsel %vm738, %v1214, 0
      %1221 = vmatprep.subr.bf16.mxu0 0
      %1222 = vmatpush1.bf16.msra.mxu0 0
      %1223 = vmatprep.subr.bf16.mxu0 0
      %1224 = vmatpush1.bf16.msra.mxu0 0
      %1225 = vmatprep.subr.bf16.mxu0 0
      %1226 = vmatpush1.bf16.msra.mxu0 0
      %1227 = vmatprep.subr.bf16.mxu0 0
      %1228 = vmatpush1.bf16.msra.mxu0 0
      %1229 = vmatprep.subr.bf16.mxu0 0
      %1230 = vmatpush1.bf16.msra.mxu0 0
      %1231 = vmatprep.subr.bf16.mxu0 0
      %1232 = vmatpush1.bf16.msra.mxu0 0
      %1233 = vmatprep.subr.bf16.mxu0 0
      %1234 = vmatpush1.bf16.msra.mxu0 0
      %1235 = vmatprep.subr.bf16.mxu0 0
      %1236 = vmatpush1.bf16.msra.mxu0 %v1216
      %1237 = vmatprep.subr.bf16.mxu0 0
      %1238 = vmatpush2.bf16.msra.mxu0 0
      %1239 = vmatprep.subr.bf16.mxu0 0
      %1240 = vmatpush2.bf16.msra.mxu0 0
      %1241 = vmatprep.subr.bf16.mxu0 0
      %1242 = vmatpush2.bf16.msra.mxu0 0
      %1243 = vmatprep.subr.bf16.mxu0 0
      %1244 = vmatpush2.bf16.msra.mxu0 0
      %1245 = vmatprep.subr.bf16.mxu0 0
      %1246 = vmatpush2.bf16.msra.mxu0 0
      %1247 = vmatprep.subr.bf16.mxu0 0
      %1248 = vmatpush2.bf16.msra.mxu0 0
      %1249 = vmatprep.subr.bf16.mxu0 0
      %1250 = vmatpush2.bf16.msra.mxu0 0
      %1251 = vmatprep.subr.bf16.mxu0 0
      %1252 = vmatpush2.bf16.msra.mxu0 0
      %1253 = vmatprep.mubr.bf16.mxu0 0
      %1254 = vmatmul.mubr.bf16.gmra.mxu0 %v1219
      %v1255 = vpop.f32.mrf.mxu0
      %v1256 = vadd.f32 0.0, %v1255
      %v1257 = vpop.f32.mrf.mxu0
      %v1258 = vpop.f32.mrf.mxu0
      %v1259 = vadd.f32 0.0, %v1258
      %v1260 = vpop.f32.mrf.mxu0
      %1261 = vdwg.mxu0
      %1264 = vrot.lane.b32.xlu0 %v1256, 16
      %v1265 = vpop.permute.xlu0 %1264
      %1266 = vrot.lane.b32.xlu0 %v1259, 16
      %v1267 = vpop.permute.xlu0 %1266
      %1270 = vst.msk [vmem:[#allocation2 + $0x10] sm:$0xff] %vm1001, %v1265
      %1271 = vst.msk [vmem:[#allocation2 + $0x18] sm:$0xff] %vm1001, %v1267
      %v1272 = vld [vmem:[#allocation2] sm:$0xff]
      %v1273 = vld [vmem:[#allocation2 + $0x8] sm:$0xff]
      %v1274 = vld [vmem:[#allocation2 + $0x10] sm:$0xff]
      %v1275 = vld [vmem:[#allocation2 + $0x18] sm:$0xff]
      %v1276 = vpack.c.bf16 %v1273, %v1272
      %v1277 = vpack.c.bf16 %v1275, %v1274
      %v1278 = vld [vmem:[%s585] sm:$0xf]
      %v1279 = vld [vmem:[%s585 + $0x4] sm:$0xf]
      %v1280 = vld [vmem:[%s585 + $0x8] sm:$0xf]
      %v1281 = vld [vmem:[%s585 + $0xc] sm:$0xf]
      %v1286 = vunpack.c.l.b16 %v1278
      %v1287 = vunpack.c.l.b16 %v1279
      %v1288 = vunpack.c.l.b16 %v1280
      %v1289 = vunpack.c.l.b16 %v1281
      %v1290 = vpack.c.b16 %v1287, %v1286
      %v1291 = vpack.c.b16 %v1289, %v1288
      %v1295 = vsel %vm673, %v1276, 0
      %v1298 = vsel %vm673, %v1277, 0
      %1300 = vmatprep.subr.bf16.mxu0 0
      %1301 = vmatpush1.bf16.msra.mxu0 0
      %1302 = vmatprep.subr.bf16.mxu0 0
      %1303 = vmatpush1.bf16.msra.mxu0 0
      %1304 = vmatprep.subr.bf16.mxu0 0
      %1305 = vmatpush1.bf16.msra.mxu0 0
      %1306 = vmatprep.subr.bf16.mxu0 0
      %1307 = vmatpush1.bf16.msra.mxu0 0
      %1308 = vmatprep.subr.bf16.mxu0 0
      %1309 = vmatpush1.bf16.msra.mxu0 0
      %1310 = vmatprep.subr.bf16.mxu0 0
      %1311 = vmatpush1.bf16.msra.mxu0 0
      %1312 = vmatprep.subr.bf16.mxu0 0
      %1313 = vmatpush1.bf16.msra.mxu0 %v1291
      %1314 = vmatprep.subr.bf16.mxu0 0
      %1315 = vmatpush1.bf16.msra.mxu0 %v1290
      %1316 = vmatprep.subr.bf16.mxu0 0
      %1317 = vmatpush2.bf16.msra.mxu0 0
      %1318 = vmatprep.subr.bf16.mxu0 0
      %1319 = vmatpush2.bf16.msra.mxu0 0
      %1320 = vmatprep.subr.bf16.mxu0 0
      %1321 = vmatpush2.bf16.msra.mxu0 0
      %1322 = vmatprep.subr.bf16.mxu0 0
      %1323 = vmatpush2.bf16.msra.mxu0 0
      %1324 = vmatprep.subr.bf16.mxu0 0
      %1325 = vmatpush2.bf16.msra.mxu0 0
      %1326 = vmatprep.subr.bf16.mxu0 0
      %1327 = vmatpush2.bf16.msra.mxu0 0
      %1328 = vmatprep.subr.bf16.mxu0 0
      %1329 = vmatpush2.bf16.msra.mxu0 0
      %1330 = vmatprep.subr.bf16.mxu0 0
      %1331 = vmatpush2.bf16.msra.mxu0 0
      %1332 = vmatprep.mubr.bf16.mxu0 0
      %1333 = vmatmul.mubr.bf16.gmra.mxu0 %v1295
      %v1334 = vpop.f32.mrf.mxu0
      %v1335 = vadd.f32 0.0, %v1334
      %v1336 = vpop.f32.mrf.mxu0
      %v1337 = vpop.f32.mrf.mxu0
      %v1338 = vadd.f32 0.0, %v1337
      %v1339 = vpop.f32.mrf.mxu0
      %1340 = vmatprep.mubr.bf16.mxu0 0
      %1341 = vmatmul.mubr.bf16.gmra.mxu0 %v1298
      %v1342 = vpop.f32.mrf.mxu0
      %v1343 = vadd.f32 0.0, %v1342
      %v1344 = vpop.f32.mrf.mxu0
      %v1345 = vpop.f32.mrf.mxu0
      %v1346 = vadd.f32 0.0, %v1345
      %v1347 = vpop.f32.mrf.mxu0
      %1348 = vdwg.mxu0
      %v1349 = vadd.f32 %v715, %v1335
      %v1350 = vadd.f32 %v718, %v1338
      %v1351 = vadd.f32 %v723, %v1343
      %v1352 = vadd.f32 %v726, %v1346
      %v1353 = vld [vmem:[%s592] sm:$0x1]
      %v1354 = vld [vmem:[%s599] sm:$0x1]
      %v1355 = vsel %vm673, %v1349, 0.0
      %1356 = vadd.xlane.f32.xlu0 %v1355
      %v1357 = vpop.xlane.xlu0 %1356
      %v1358 = vsel %vm673, %v1350, 0.0
      %1359 = vadd.xlane.f32.xlu0 %v1358
      %v1360 = vpop.xlane.xlu0 %1359
      %v1361 = vsel %vm673, %v1351, 0.0
      %1362 = vadd.xlane.f32.xlu0 %v1361
      %v1363 = vpop.xlane.xlu0 %1362
      %v1364 = vsel %vm673, %v1352, 0.0
      %1365 = vadd.xlane.f32.xlu0 %v1364
      %v1366 = vpop.xlane.xlu0 %1365
      %v1367 = vrcp.pop 32.0
      %v1368 = vmul.f32 %v1357, %v1367
      %v1369 = vmul.f32 %v1360, %v1367
      %v1370 = vmul.f32 %v1363, %v1367
      %v1371 = vmul.f32 %v1366, %v1367
      %v1372 = vsub.f32 %v1349, %v1368
      %v1373 = vsub.f32 %v1350, %v1369
      %v1374 = vsub.f32 %v1351, %v1370
      %v1375 = vsub.f32 %v1352, %v1371
      %v1376 = vmul.f32 %v1372, %v1372
      %v1377 = vmul.f32 %v1373, %v1373
      %v1378 = vmul.f32 %v1374, %v1374
      %v1379 = vmul.f32 %v1375, %v1375
      %v1380 = vsel %vm673, %v1376, 0.0
      %1381 = vadd.xlane.f32.xlu0 %v1380
      %v1382 = vpop.xlane.xlu0 %1381
      %v1383 = vsel %vm673, %v1377, 0.0
      %1384 = vadd.xlane.f32.xlu0 %v1383
      %v1385 = vpop.xlane.xlu0 %1384
      %v1386 = vsel %vm673, %v1378, 0.0
      %1387 = vadd.xlane.f32.xlu0 %v1386
      %v1388 = vpop.xlane.xlu0 %1387
      %v1389 = vsel %vm673, %v1379, 0.0
      %1390 = vadd.xlane.f32.xlu0 %v1389
      %v1391 = vpop.xlane.xlu0 %1390
      %v1392 = vmul.f32 %v1382, %v1367
      %v1393 = vmul.f32 %v1385, %v1367
      %v1394 = vmul.f32 %v1388, %v1367
      %v1395 = vmul.f32 %v1391, %v1367
      %v1396 = vadd.f32 %v1392, 1e-05
      %v1397 = vadd.f32 %v1393, 1e-05
      %v1398 = vadd.f32 %v1394, 1e-05
      %v1399 = vadd.f32 %v1395, 1e-05
      %v1400 = vrsqrt.pop %v1396
      %v1401 = vrsqrt.pop %v1397
      %v1402 = vrsqrt.pop %v1398
      %v1403 = vrsqrt.pop %v1399
      %v1404 = vmul.f32 %v1372, %v1400
      %v1405 = vmul.f32 %v1373, %v1401
      %v1406 = vmul.f32 %v1374, %v1402
      %v1407 = vmul.f32 %v1375, %v1403
      %v1409 = vlaneseq
      %v1410 = vshrl.u32 %v1409, 7
      %v1411 = vsub.s32 0, %v1410
      %v1412 = vrot.slane %v1353, %v1411
      %v1414 = vmul.f32 %v1404, %v1412
      %v1415 = vmul.f32 %v1405, %v1412
      %v1416 = vmul.f32 %v1406, %v1412
      %v1417 = vmul.f32 %v1407, %v1412
      %v1419 = vlaneseq
      %v1420 = vshrl.u32 %v1419, 7
      %v1421 = vsub.s32 0, %v1420
      %v1422 = vrot.slane %v1354, %v1421
      %v1424 = vadd.f32 %v1414, %v1422
      %v1425 = vadd.f32 %v1415, %v1422
      %v1426 = vadd.f32 %v1416, %v1422
      %v1427 = vadd.f32 %v1417, %v1422
      %v1428 = vpack.c.bf16 %v1425, %v1424
      %v1429 = vpack.c.bf16 %v1427, %v1426
      %v1430 = vld [vmem:[%s608] sm:$0xf]
      %v1431 = vld [vmem:[%s608 + $0x4] sm:$0xf]
      %v1432 = vld [vmem:[%s608 + $0x8] sm:$0xf]
      %v1433 = vld [vmem:[%s608 + $0xc] sm:$0xf]
      %v1438 = vunpack.c.l.b16 %v1430
      %v1439 = vunpack.c.l.b16 %v1431
      %v1440 = vunpack.c.l.b16 %v1432
      %v1441 = vunpack.c.l.b16 %v1433
      %v1442 = vpack.c.b16 %v1439, %v1438
      %v1443 = vpack.c.b16 %v1441, %v1440
      %v1447 = vsel %vm673, %v1428, 0
      %v1450 = vsel %vm673, %v1429, 0
      %1452 = vmatprep.subr.bf16.mxu0 0
      %1453 = vmatpush1.bf16.msra.mxu0 0
      %1454 = vmatprep.subr.bf16.mxu0 0
      %1455 = vmatpush1.bf16.msra.mxu0 0
      %1456 = vmatprep.subr.bf16.mxu0 0
      %1457 = vmatpush1.bf16.msra.mxu0 0
      %1458 = vmatprep.subr.bf16.mxu0 0
      %1459 = vmatpush1.bf16.msra.mxu0 0
      %1460 = vmatprep.subr.bf16.mxu0 0
      %1461 = vmatpush1.bf16.msra.mxu0 0
      %1462 = vmatprep.subr.bf16.mxu0 0
      %1463 = vmatpush1.bf16.msra.mxu0 0
      %1464 = vmatprep.subr.bf16.mxu0 0
      %1465 = vmatpush1.bf16.msra.mxu0 %v1443
      %1466 = vmatprep.subr.bf16.mxu0 0
      %1467 = vmatpush1.bf16.msra.mxu0 %v1442
      %1468 = vmatprep.subr.bf16.mxu0 0
      %1469 = vmatpush2.bf16.msra.mxu0 0
      %1470 = vmatprep.subr.bf16.mxu0 0
      %1471 = vmatpush2.bf16.msra.mxu0 0
      %1472 = vmatprep.subr.bf16.mxu0 0
      %1473 = vmatpush2.bf16.msra.mxu0 0
      %1474 = vmatprep.subr.bf16.mxu0 0
      %1475 = vmatpush2.bf16.msra.mxu0 0
      %1476 = vmatprep.subr.bf16.mxu0 0
      %1477 = vmatpush2.bf16.msra.mxu0 0
      %1478 = vmatprep.subr.bf16.mxu0 0
      %1479 = vmatpush2.bf16.msra.mxu0 0
      %1480 = vmatprep.subr.bf16.mxu0 0
      %1481 = vmatpush2.bf16.msra.mxu0 0
      %1482 = vmatprep.subr.bf16.mxu0 0
      %1483 = vmatpush2.bf16.msra.mxu0 0
      %1484 = vmatprep.mubr.bf16.mxu0 0
      %1485 = vmatmul.mubr.bf16.gmra.mxu0 %v1447
      %v1486 = vpop.f32.mrf.mxu0
      %v1487 = vadd.f32 0.0, %v1486
      %v1488 = vpop.f32.mrf.mxu0
      %v1489 = vpop.f32.mrf.mxu0
      %v1490 = vadd.f32 0.0, %v1489
      %v1491 = vpop.f32.mrf.mxu0
      %1492 = vmatprep.mubr.bf16.mxu0 0
      %1493 = vmatmul.mubr.bf16.gmra.mxu0 %v1450
      %v1494 = vpop.f32.mrf.mxu0
      %v1495 = vadd.f32 0.0, %v1494
      %v1496 = vpop.f32.mrf.mxu0
      %v1497 = vpop.f32.mrf.mxu0
      %v1498 = vadd.f32 0.0, %v1497
      %v1499 = vpop.f32.mrf.mxu0
      %1500 = vdwg.mxu0
      %v1501 = vmax.f32 %v1487, 0.0
      %v1502 = vmax.f32 %v1490, 0.0
      %v1503 = vmax.f32 %v1495, 0.0
      %v1504 = vmax.f32 %v1498, 0.0
      %v1505 = vpack.c.bf16 %v1502, %v1501
      %v1506 = vpack.c.bf16 %v1504, %v1503
      %v1507 = vld [vmem:[%s617] sm:$0xf]
      %v1508 = vld [vmem:[%s617 + $0x4] sm:$0xf]
      %v1509 = vld [vmem:[%s617 + $0x8] sm:$0xf]
      %v1510 = vld [vmem:[%s617 + $0xc] sm:$0xf]
      %v1511 = vld [vmem:[%s617 + $0x10] sm:$0xf]
      %v1512 = vld [vmem:[%s617 + $0x14] sm:$0xf]
      %v1513 = vld [vmem:[%s617 + $0x18] sm:$0xf]
      %v1514 = vld [vmem:[%s617 + $0x1c] sm:$0xf]
      %v1523 = vunpack.c.l.b16 %v1507
      %v1524 = vunpack.c.l.b16 %v1508
      %v1525 = vunpack.c.l.b16 %v1509
      %v1526 = vunpack.c.l.b16 %v1510
      %v1527 = vunpack.c.l.b16 %v1511
      %v1528 = vunpack.c.l.b16 %v1512
      %v1529 = vunpack.c.l.b16 %v1513
      %v1530 = vunpack.c.l.b16 %v1514
      %v1531 = vpack.c.b16 %v1524, %v1523
      %v1532 = vpack.c.b16 %v1526, %v1525
      %v1533 = vpack.c.b16 %v1528, %v1527
      %v1534 = vpack.c.b16 %v1530, %v1529
      %vm1539 = vcmask 523264
      %v1541 = vsel %vm1539, %v1505, 0
      %v1544 = vsel %vm1539, %v1506, 0
      %1546 = vmatprep.subr.bf16.mxu0 0
      %1547 = vmatpush1.bf16.msra.mxu0 0
      %1548 = vmatprep.subr.bf16.mxu0 0
      %1549 = vmatpush1.bf16.msra.mxu0 0
      %1550 = vmatprep.subr.bf16.mxu0 0
      %1551 = vmatpush1.bf16.msra.mxu0 0
      %1552 = vmatprep.subr.bf16.mxu0 0
      %1553 = vmatpush1.bf16.msra.mxu0 0
      %1554 = vmatprep.subr.bf16.mxu0 0
      %1555 = vmatpush1.bf16.msra.mxu0 %v1534
      %1556 = vmatprep.subr.bf16.mxu0 0
      %1557 = vmatpush1.bf16.msra.mxu0 %v1533
      %1558 = vmatprep.subr.bf16.mxu0 0
      %1559 = vmatpush1.bf16.msra.mxu0 %v1532
      %1560 = vmatprep.subr.bf16.mxu0 0
      %1561 = vmatpush1.bf16.msra.mxu0 %v1531
      %1562 = vmatprep.subr.bf16.mxu0 0
      %1563 = vmatpush2.bf16.msra.mxu0 0
      %1564 = vmatprep.subr.bf16.mxu0 0
      %1565 = vmatpush2.bf16.msra.mxu0 0
      %1566 = vmatprep.subr.bf16.mxu0 0
      %1567 = vmatpush2.bf16.msra.mxu0 0
      %1568 = vmatprep.subr.bf16.mxu0 0
      %1569 = vmatpush2.bf16.msra.mxu0 0
      %1570 = vmatprep.subr.bf16.mxu0 0
      %1571 = vmatpush2.bf16.msra.mxu0 0
      %1572 = vmatprep.subr.bf16.mxu0 0
      %1573 = vmatpush2.bf16.msra.mxu0 0
      %1574 = vmatprep.subr.bf16.mxu0 0
      %1575 = vmatpush2.bf16.msra.mxu0 0
      %1576 = vmatprep.subr.bf16.mxu0 0
      %1577 = vmatpush2.bf16.msra.mxu0 0
      %1578 = vmatprep.mubr.bf16.mxu0 0
      %1579 = vmatmul.mubr.bf16.gmra.mxu0 %v1541
      %v1580 = vpop.f32.mrf.mxu0
      %v1581 = vadd.f32 %v1424, %v1580
      %v1582 = vpop.f32.mrf.mxu0
      %v1583 = vpop.f32.mrf.mxu0
      %v1584 = vadd.f32 %v1425, %v1583
      %v1585 = vpop.f32.mrf.mxu0
      %1586 = vmatprep.mubr.bf16.mxu0 0
      %1587 = vmatmul.mubr.bf16.gmra.mxu0 %v1544
      %v1588 = vpop.f32.mrf.mxu0
      %v1589 = vadd.f32 %v1426, %v1588
      %v1590 = vpop.f32.mrf.mxu0
      %v1591 = vpop.f32.mrf.mxu0
      %v1592 = vadd.f32 %v1427, %v1591
      %v1593 = vpop.f32.mrf.mxu0
      %1594 = vdwg.mxu0
      %v1595 = vld [vmem:[%s624] sm:$0x1]
      %v1596 = vld [vmem:[%s631] sm:$0x1]
      %v1597 = vsel %vm673, %v1581, 0.0
      %1598 = vadd.xlane.f32.xlu0 %v1597
      %v1599 = vpop.xlane.xlu0 %1598
      %v1600 = vsel %vm673, %v1584, 0.0
      %1601 = vadd.xlane.f32.xlu0 %v1600
      %v1602 = vpop.xlane.xlu0 %1601
      %v1603 = vsel %vm673, %v1589, 0.0
      %1604 = vadd.xlane.f32.xlu0 %v1603
      %v1605 = vpop.xlane.xlu0 %1604
      %v1606 = vsel %vm673, %v1592, 0.0
      %1607 = vadd.xlane.f32.xlu0 %v1606
      %v1608 = vpop.xlane.xlu0 %1607
      %v1609 = vmul.f32 %v1599, %v1367
      %v1610 = vmul.f32 %v1602, %v1367
      %v1611 = vmul.f32 %v1605, %v1367
      %v1612 = vmul.f32 %v1608, %v1367
      %v1613 = vsub.f32 %v1581, %v1609
      %v1614 = vsub.f32 %v1584, %v1610
      %v1615 = vsub.f32 %v1589, %v1611
      %v1616 = vsub.f32 %v1592, %v1612
      %v1617 = vmul.f32 %v1613, %v1613
      %v1618 = vmul.f32 %v1614, %v1614
      %v1619 = vmul.f32 %v1615, %v1615
      %v1620 = vmul.f32 %v1616, %v1616
      %v1621 = vsel %vm673, %v1617, 0.0
      %1622 = vadd.xlane.f32.xlu0 %v1621
      %v1623 = vpop.xlane.xlu0 %1622
      %v1624 = vsel %vm673, %v1618, 0.0
      %1625 = vadd.xlane.f32.xlu0 %v1624
      %v1626 = vpop.xlane.xlu0 %1625
      %v1627 = vsel %vm673, %v1619, 0.0
      %1628 = vadd.xlane.f32.xlu0 %v1627
      %v1629 = vpop.xlane.xlu0 %1628
      %v1630 = vsel %vm673, %v1620, 0.0
      %1631 = vadd.xlane.f32.xlu0 %v1630
      %v1632 = vpop.xlane.xlu0 %1631
      %v1633 = vmul.f32 %v1623, %v1367
      %v1634 = vmul.f32 %v1626, %v1367
      %v1635 = vmul.f32 %v1629, %v1367
      %v1636 = vmul.f32 %v1632, %v1367
      %v1637 = vadd.f32 %v1633, 1e-05
      %v1638 = vadd.f32 %v1634, 1e-05
      %v1639 = vadd.f32 %v1635, 1e-05
      %v1640 = vadd.f32 %v1636, 1e-05
      %v1641 = vrsqrt.pop %v1637
      %v1642 = vrsqrt.pop %v1638
      %v1643 = vrsqrt.pop %v1639
      %v1644 = vrsqrt.pop %v1640
      %v1645 = vmul.f32 %v1613, %v1641
      %v1646 = vmul.f32 %v1614, %v1642
      %v1647 = vmul.f32 %v1615, %v1643
      %v1648 = vmul.f32 %v1616, %v1644
      %v1650 = vlaneseq
      %v1651 = vshrl.u32 %v1650, 7
      %v1652 = vsub.s32 0, %v1651
      %v1653 = vrot.slane %v1595, %v1652
      %v1655 = vmul.f32 %v1645, %v1653
      %v1656 = vmul.f32 %v1646, %v1653
      %v1657 = vmul.f32 %v1647, %v1653
      %v1658 = vmul.f32 %v1648, %v1653
      %v1660 = vlaneseq
      %v1661 = vshrl.u32 %v1660, 7
      %v1662 = vsub.s32 0, %v1661
      %v1663 = vrot.slane %v1596, %v1662
      %v1665 = vadd.f32 %v1655, %v1663
      %v1666 = vadd.f32 %v1656, %v1663
      %v1667 = vadd.f32 %v1657, %v1663
      %v1668 = vadd.f32 %v1658, %v1663
      %1669 = vst.msk [vmem:[%s636] sm:$0xff] %vm673, %v1665
      %1670 = vst.msk [vmem:[%s636 + $0x8] sm:$0xff] %vm673, %v1666
      %1671 = vst.msk [vmem:[%s636 + $0x10] sm:$0xff] %vm673, %v1667
      %1672 = vst.msk [vmem:[%s636 + $0x18] sm:$0xff] %vm673, %v1668
      %p1673 = scmp.lt.s32.totalorder %s25, 3
      %s1674 = scalar_select %p1673, %s25, 3
      %s1675 = smul.addr %s1674, 4
      %s1676 = smul.addr %s1675, 8
      %s1677 = scalar_lea.vmem %s10, %s1676
      // Predicated region
      $region65: #{mrbdta_forward.4} parent=59 // pred_check
        %p1678 = pneg %p327
      $region66: #{mrbdta_forward.4} parent=59 // pred_check_branch
        %1680 = sbr.rel (%p1678) target = $region68
      $region67: #{mrbdta_forward.4} parent=59 // pred_region
        _
      $region68: #{mrbdta_forward.4} parent=59 // pred_fallthru
        _
    $region60: #{mrbdta_forward.4} parent=5 // pred_fallthru
      _
    %p1681 = scmp.le.s32.totalorder 2, %s16
    // Predicated region
    $region69: #{mrbdta_forward.4} parent=5 // pred_check
      %p1682 = pneg %p1681
    $region70: #{mrbdta_forward.4} parent=5 // pred_check_branch
      %1684 = sbr.rel (%p1682) target = $region72
    $region71: #{mrbdta_forward.4} parent=5 // pred_region
      %s1685 = ssub.s32 %s16, 2
      // Predicated region
      $region73: #{mrbdta_forward.4} parent=71 // pred_check
        %p1686 = pneg %p333
      $region74: #{mrbdta_forward.4} parent=71 // pred_check_branch
        %1688 = sbr.rel (%p1686) target = $region76
      $region75: #{mrbdta_forward.4} parent=71 // pred_region
        %p1689 = scmp.lt.s32.totalorder %s27, 3
        %s1690 = scalar_select %p1689, %s27, 3
        %s1691 = smul.addr %s1690, 4
        %s1692 = smul.addr %s1691, 8
        %s1693 = scalar_lea.vmem %s10, %s1692
      $region76: #{mrbdta_forward.4} parent=71 // pred_fallthru
        _
    $region72: #{mrbdta_forward.4} parent=5 // pred_fallthru
      _
  $region6: #{mrbdta_forward.4} parent=0 // loop_footer
    %s20 = sadd.s32 1, %s16
  $region7: #{mrbdta_forward.4} parent=0 // loop_footer_branch
    %15 = sbr.rel target = $region3
  $region8: #{mrbdta_forward.4} parent=0 // loop_exit
    _

// kernel: mrbdta_forward.5
$region0: #{mrbdta_forward.5}
  #allocation0 [shape = 'u32[]', space=smem, size = 0x4, offset = 0x4, fixed_abs, tag = 'smem constant byte address 0x4 - core index']
  #allocation1 [shape = 'u32[144,128]{1,0:T(1,128)}', space=vmem, size = 0x12000, scoped, tag = 'internal scratch']
  %s0 = inlined_call_operand.vmem [shape: f32[4,2,16,32], index: 0, kind: input, shape index: {}]
  %s1 = inlined_call_operand.vmem [shape: bf16[128,512], index: 1, kind: input, shape index: {}]
  %s2 = inlined_call_operand.vmem [shape: f32[1,512], index: 2, kind: input, shape index: {}]
  %s3 = inlined_call_operand.vmem [shape: f32[1,512], index: 3, kind: input, shape index: {}]
  %s4 = inlined_call_operand.vmem [shape: bf16[512,128], index: 4, kind: input, shape index: {}]
  %s5 = inlined_call_operand.vmem [shape: f32[1,128], index: 5, kind: input, shape index: {}]
  %s6 = inlined_call_operand.vmem [shape: f32[1,128], index: 6, kind: input, shape index: {}]
  %s7 = inlined_call_operand.vmem [shape: f32[128,1], index: 7, kind: input, shape index: {}]
  %s8 = inlined_call_operand.vmem [shape: f32[2,1], index: 8, kind: output, shape index: {}]
  %s9 = sld [smem:[#allocation0]]
  $region42: #{mrbdta_forward.5} parent=0
    _
  %s11 = ssub.s32 1, %s9
  %s12 = scalar_select 0, %s11, %s9
  // Predicated region
  $region2: #{mrbdta_forward.5} parent=0 // pred_check
    _
  $region3: #{mrbdta_forward.5} parent=0 // pred_check_branch
    %14 = sbr.rel (0) target = $region5
  $region4: #{mrbdta_forward.5} parent=0 // pred_region
    _
  $region5: #{mrbdta_forward.5} parent=0 // pred_fallthru
    _
  // Predicated region
  $region6: #{mrbdta_forward.5} parent=0 // pred_check
    _
  $region7: #{mrbdta_forward.5} parent=0 // pred_check_branch
    %16 = sbr.rel (0) target = $region9
  $region8: #{mrbdta_forward.5} parent=0 // pred_region
    _
  $region9: #{mrbdta_forward.5} parent=0 // pred_fallthru
    _
  // Predicated region
  $region10: #{mrbdta_forward.5} parent=0 // pred_check
    _
  $region11: #{mrbdta_forward.5} parent=0 // pred_check_branch
    %18 = sbr.rel (0) target = $region13
  $region12: #{mrbdta_forward.5} parent=0 // pred_region
    _
  $region13: #{mrbdta_forward.5} parent=0 // pred_fallthru
    _
  // Predicated region
  $region14: #{mrbdta_forward.5} parent=0 // pred_check
    _
  $region15: #{mrbdta_forward.5} parent=0 // pred_check_branch
    %20 = sbr.rel (0) target = $region17
  $region16: #{mrbdta_forward.5} parent=0 // pred_region
    _
  $region17: #{mrbdta_forward.5} parent=0 // pred_fallthru
    _
  // Predicated region
  $region18: #{mrbdta_forward.5} parent=0 // pred_check
    _
  $region19: #{mrbdta_forward.5} parent=0 // pred_check_branch
    %22 = sbr.rel (0) target = $region21
  $region20: #{mrbdta_forward.5} parent=0 // pred_region
    _
  $region21: #{mrbdta_forward.5} parent=0 // pred_fallthru
    _
  // Predicated region
  $region22: #{mrbdta_forward.5} parent=0 // pred_check
    _
  $region23: #{mrbdta_forward.5} parent=0 // pred_check_branch
    %24 = sbr.rel (0) target = $region25
  $region24: #{mrbdta_forward.5} parent=0 // pred_region
    _
  $region25: #{mrbdta_forward.5} parent=0 // pred_fallthru
    _
  // Predicated region
  $region26: #{mrbdta_forward.5} parent=0 // pred_check
    _
  $region27: #{mrbdta_forward.5} parent=0 // pred_check_branch
    %26 = sbr.rel (0) target = $region29
  $region28: #{mrbdta_forward.5} parent=0 // pred_region
    _
  $region29: #{mrbdta_forward.5} parent=0 // pred_fallthru
    _
  // Predicated region
  $region30: #{mrbdta_forward.5} parent=0 // pred_check
    _
  $region31: #{mrbdta_forward.5} parent=0 // pred_check_branch
    %28 = sbr.rel (0) target = $region33
  $region32: #{mrbdta_forward.5} parent=0 // pred_region
    _
  $region33: #{mrbdta_forward.5} parent=0 // pred_fallthru
    _
  %v30 = vld [vmem:[%s0] sm:$0xff]
  %v31 = vld [vmem:[%s0 + $0x10] sm:$0xff]
  %vm32 = vcmask 261120
  %v33 = vsel %vm32, %v30, 0.0
  %v34 = vrot.slane %v33, 4
  %v35 = vadd.f32 %v33, %v34
  %v36 = vrot.slane %v35, 2
  %v37 = vadd.f32 %v35, %v36
  %v38 = vrot.slane %v37, 1
  %v39 = vadd.f32 %v37, %v38
  %v40 = vsel %vm32, %v31, 0.0
  %v41 = vrot.slane %v40, 4
  %v42 = vadd.f32 %v40, %v41
  %v43 = vrot.slane %v42, 2
  %v44 = vadd.f32 %v42, %v43
  %v45 = vrot.slane %v44, 1
  %v46 = vadd.f32 %v44, %v45
  %v47 = vpack.c.bf16 %v39, %v39
  %v48 = vpack.c.bf16 %v46, %v46
  %v49 = vld [vmem:[%s1] sm:$0xff]
  %v50 = vld [vmem:[%s1 + $0x8] sm:$0xff]
  %v51 = vld [vmem:[%s1 + $0x10] sm:$0xff]
  %v52 = vld [vmem:[%s1 + $0x18] sm:$0xff]
  %v53 = vld [vmem:[%s1 + $0x20] sm:$0xff]
  %v54 = vld [vmem:[%s1 + $0x28] sm:$0xff]
  %v55 = vld [vmem:[%s1 + $0x30] sm:$0xff]
  %v56 = vld [vmem:[%s1 + $0x38] sm:$0xff]
  %s57 = scalar_lea.vmem %s0, 32
  %v58 = vld [vmem:[%s57] sm:$0xff]
  %v59 = vld [vmem:[%s57 + $0x10] sm:$0xff]
  %v60 = vsel %vm32, %v58, 0.0
  %v61 = vrot.slane %v60, 4
  %v62 = vadd.f32 %v60, %v61
  %v63 = vrot.slane %v62, 2
  %v64 = vadd.f32 %v62, %v63
  %v65 = vrot.slane %v64, 1
  %v66 = vadd.f32 %v64, %v65
  %v67 = vsel %vm32, %v59, 0.0
  %v68 = vrot.slane %v67, 4
  %v69 = vadd.f32 %v67, %v68
  %v70 = vrot.slane %v69, 2
  %v71 = vadd.f32 %v69, %v70
  %v72 = vrot.slane %v71, 1
  %v73 = vadd.f32 %v71, %v72
  %v74 = vpack.c.bf16 %v66, %v66
  %v75 = vpack.c.bf16 %v73, %v73
  %v76 = vld [vmem:[%s1 + $0x40] sm:$0xff]
  %v77 = vld [vmem:[%s1 + $0x48] sm:$0xff]
  %v78 = vld [vmem:[%s1 + $0x50] sm:$0xff]
  %v79 = vld [vmem:[%s1 + $0x58] sm:$0xff]
  %v80 = vld [vmem:[%s1 + $0x60] sm:$0xff]
  %v81 = vld [vmem:[%s1 + $0x68] sm:$0xff]
  %v82 = vld [vmem:[%s1 + $0x70] sm:$0xff]
  %v83 = vld [vmem:[%s1 + $0x78] sm:$0xff]
  %v86 = vunpack.c.l.b16 %v74
  %v87 = vunpack.c.l.b16 %v75
  %vm88 = vcmask 1041409
  %v89 = vsel %vm88, %v87, %v86
  %v90 = vpack.c.b16 %v89, %v89
  %v99 = vunpack.c.l.b16 %v76
  %v100 = vunpack.c.h.b16 %v76
  %v101 = vunpack.c.l.b16 %v77
  %v102 = vunpack.c.h.b16 %v77
  %v103 = vunpack.c.l.b16 %v78
  %v104 = vunpack.c.h.b16 %v78
  %v105 = vunpack.c.l.b16 %v79
  %v106 = vunpack.c.h.b16 %v79
  %v107 = vunpack.c.l.b16 %v80
  %v108 = vunpack.c.h.b16 %v80
  %v109 = vunpack.c.l.b16 %v81
  %v110 = vunpack.c.h.b16 %v81
  %v111 = vunpack.c.l.b16 %v82
  %v112 = vunpack.c.h.b16 %v82
  %v113 = vunpack.c.l.b16 %v83
  %v114 = vunpack.c.h.b16 %v83
  %v115 = vpack.c.b16 %v103, %v99
  %v116 = vpack.c.b16 %v104, %v100
  %v117 = vpack.c.b16 %v105, %v101
  %v118 = vpack.c.b16 %v106, %v102
  %v119 = vpack.c.b16 %v111, %v107
  %v120 = vpack.c.b16 %v112, %v108
  %v121 = vpack.c.b16 %v113, %v109
  %v122 = vpack.c.b16 %v114, %v110
  %v132 = vsel %vm32, %v90, 0
  %134 = vmatprep.subr.bf16.mxu0 0
  %135 = vmatpush1.bf16.msra.mxu0 0
  %136 = vmatprep.subr.bf16.mxu0 0
  %137 = vmatpush1.bf16.msra.mxu0 0
  %138 = vmatprep.subr.bf16.mxu0 0
  %139 = vmatpush1.bf16.msra.mxu0 0
  %140 = vmatprep.subr.bf16.mxu0 0
  %141 = vmatpush1.bf16.msra.mxu0 0
  %142 = vmatprep.subr.bf16.mxu0 0
  %143 = vmatpush1.bf16.msra.mxu0 0
  %144 = vmatprep.subr.bf16.mxu0 0
  %145 = vmatpush1.bf16.msra.mxu0 0
  %146 = vmatprep.subr.bf16.mxu0 %v120
  %147 = vmatpush1.bf16.msra.mxu0 %v119
  %148 = vmatprep.subr.bf16.mxu0 %v116
  %149 = vmatpush1.bf16.msra.mxu0 %v115
  %150 = vmatprep.subr.bf16.mxu0 0
  %151 = vmatpush2.bf16.msra.mxu0 0
  %152 = vmatprep.subr.bf16.mxu0 0
  %153 = vmatpush2.bf16.msra.mxu0 0
  %154 = vmatprep.subr.bf16.mxu0 0
  %155 = vmatpush2.bf16.msra.mxu0 0
  %156 = vmatprep.subr.bf16.mxu0 0
  %157 = vmatpush2.bf16.msra.mxu0 0
  %158 = vmatprep.subr.bf16.mxu0 0
  %159 = vmatpush2.bf16.msra.mxu0 0
  %160 = vmatprep.subr.bf16.mxu0 0
  %161 = vmatpush2.bf16.msra.mxu0 0
  %162 = vmatprep.subr.bf16.mxu0 0
  %163 = vmatpush2.bf16.msra.mxu0 0
  %164 = vmatprep.subr.bf16.mxu0 0
  %165 = vmatpush2.bf16.msra.mxu0 0
  %166 = vmatprep.mubr.bf16.mxu0 0
  %167 = vmatmul.mubr.bf16.gmra.mxu0 %v132
  %v168 = vpop.f32.mrf.mxu0
  %v169 = vadd.f32 0.0, %v168
  %v170 = vpop.f32.mrf.mxu0
  %v171 = vadd.f32 0.0, %v170
  %v172 = vpop.f32.mrf.mxu0
  %v173 = vpop.f32.mrf.mxu0
  %174 = vdwg.mxu0
  %175 = vmatprep.subr.bf16.mxu0 0
  %176 = vmatpush1.bf16.msra.mxu0 0
  %177 = vmatprep.subr.bf16.mxu0 0
  %178 = vmatpush1.bf16.msra.mxu0 0
  %179 = vmatprep.subr.bf16.mxu0 0
  %180 = vmatpush1.bf16.msra.mxu0 0
  %181 = vmatprep.subr.bf16.mxu0 0
  %182 = vmatpush1.bf16.msra.mxu0 0
  %183 = vmatprep.subr.bf16.mxu0 0
  %184 = vmatpush1.bf16.msra.mxu0 0
  %185 = vmatprep.subr.bf16.mxu0 0
  %186 = vmatpush1.bf16.msra.mxu0 0
  %187 = vmatprep.subr.bf16.mxu0 %v122
  %188 = vmatpush1.bf16.msra.mxu0 %v121
  %189 = vmatprep.subr.bf16.mxu0 %v118
  %190 = vmatpush1.bf16.msra.mxu0 %v117
  %191 = vmatprep.subr.bf16.mxu0 0
  %192 = vmatpush2.bf16.msra.mxu0 0
  %193 = vmatprep.subr.bf16.mxu0 0
  %194 = vmatpush2.bf16.msra.mxu0 0
  %195 = vmatprep.subr.bf16.mxu0 0
  %196 = vmatpush2.bf16.msra.mxu0 0
  %197 = vmatprep.subr.bf16.mxu0 0
  %198 = vmatpush2.bf16.msra.mxu0 0
  %199 = vmatprep.subr.bf16.mxu0 0
  %200 = vmatpush2.bf16.msra.mxu0 0
  %201 = vmatprep.subr.bf16.mxu0 0
  %202 = vmatpush2.bf16.msra.mxu0 0
  %203 = vmatprep.subr.bf16.mxu0 0
  %204 = vmatpush2.bf16.msra.mxu0 0
  %205 = vmatprep.subr.bf16.mxu0 0
  %206 = vmatpush2.bf16.msra.mxu0 0
  %207 = vmatprep.mubr.bf16.mxu0 0
  %208 = vmatmul.mubr.bf16.gmra.mxu0 %v132
  %v209 = vpop.f32.mrf.mxu0
  %v210 = vadd.f32 0.0, %v209
  %v211 = vpop.f32.mrf.mxu0
  %v212 = vadd.f32 0.0, %v211
  %v213 = vpop.f32.mrf.mxu0
  %v214 = vpop.f32.mrf.mxu0
  %215 = vdwg.mxu0
  %v218 = vunpack.c.l.b16 %v47
  %v219 = vunpack.c.l.b16 %v48
  %v220 = vsel %vm88, %v219, %v218
  %v221 = vpack.c.b16 %v220, %v220
  %v230 = vunpack.c.l.b16 %v49
  %v231 = vunpack.c.h.b16 %v49
  %v232 = vunpack.c.l.b16 %v50
  %v233 = vunpack.c.h.b16 %v50
  %v234 = vunpack.c.l.b16 %v51
  %v235 = vunpack.c.h.b16 %v51
  %v236 = vunpack.c.l.b16 %v52
  %v237 = vunpack.c.h.b16 %v52
  %v238 = vunpack.c.l.b16 %v53
  %v239 = vunpack.c.h.b16 %v53
  %v240 = vunpack.c.l.b16 %v54
  %v241 = vunpack.c.h.b16 %v54
  %v242 = vunpack.c.l.b16 %v55
  %v243 = vunpack.c.h.b16 %v55
  %v244 = vunpack.c.l.b16 %v56
  %v245 = vunpack.c.h.b16 %v56
  %v246 = vpack.c.b16 %v234, %v230
  %v247 = vpack.c.b16 %v235, %v231
  %v248 = vpack.c.b16 %v236, %v232
  %v249 = vpack.c.b16 %v237, %v233
  %v250 = vpack.c.b16 %v242, %v238
  %v251 = vpack.c.b16 %v243, %v239
  %v252 = vpack.c.b16 %v244, %v240
  %v253 = vpack.c.b16 %v245, %v241
  %v263 = vsel %vm32, %v221, 0
  %265 = vmatprep.subr.bf16.mxu0 0
  %266 = vmatpush1.bf16.msra.mxu0 0
  %267 = vmatprep.subr.bf16.mxu0 0
  %268 = vmatpush1.bf16.msra.mxu0 0
  %269 = vmatprep.subr.bf16.mxu0 0
  %270 = vmatpush1.bf16.msra.mxu0 0
  %271 = vmatprep.subr.bf16.mxu0 0
  %272 = vmatpush1.bf16.msra.mxu0 0
  %273 = vmatprep.subr.bf16.mxu0 0
  %274 = vmatpush1.bf16.msra.mxu0 0
  %275 = vmatprep.subr.bf16.mxu0 0
  %276 = vmatpush1.bf16.msra.mxu0 0
  %277 = vmatprep.subr.bf16.mxu0 %v251
  %278 = vmatpush1.bf16.msra.mxu0 %v250
  %279 = vmatprep.subr.bf16.mxu0 %v247
  %280 = vmatpush1.bf16.msra.mxu0 %v246
  %281 = vmatprep.subr.bf16.mxu0 0
  %282 = vmatpush2.bf16.msra.mxu0 0
  %283 = vmatprep.subr.bf16.mxu0 0
  %284 = vmatpush2.bf16.msra.mxu0 0
  %285 = vmatprep.subr.bf16.mxu0 0
  %286 = vmatpush2.bf16.msra.mxu0 0
  %287 = vmatprep.subr.bf16.mxu0 0
  %288 = vmatpush2.bf16.msra.mxu0 0
  %289 = vmatprep.subr.bf16.mxu0 0
  %290 = vmatpush2.bf16.msra.mxu0 0
  %291 = vmatprep.subr.bf16.mxu0 0
  %292 = vmatpush2.bf16.msra.mxu0 0
  %293 = vmatprep.subr.bf16.mxu0 0
  %294 = vmatpush2.bf16.msra.mxu0 0
  %295 = vmatprep.subr.bf16.mxu0 0
  %296 = vmatpush2.bf16.msra.mxu0 0
  %297 = vmatprep.mubr.bf16.mxu0 0
  %298 = vmatmul.mubr.bf16.gmra.mxu0 %v263
  %v299 = vpop.f32.mrf.mxu0
  %v300 = vadd.f32 %v169, %v299
  %v301 = vpop.f32.mrf.mxu0
  %v302 = vadd.f32 %v171, %v301
  %v303 = vpop.f32.mrf.mxu0
  %v304 = vpop.f32.mrf.mxu0
  %305 = vdwg.mxu0
  %306 = vmatprep.subr.bf16.mxu0 0
  %307 = vmatpush1.bf16.msra.mxu0 0
  %308 = vmatprep.subr.bf16.mxu0 0
  %309 = vmatpush1.bf16.msra.mxu0 0
  %310 = vmatprep.subr.bf16.mxu0 0
  %311 = vmatpush1.bf16.msra.mxu0 0
  %312 = vmatprep.subr.bf16.mxu0 0
  %313 = vmatpush1.bf16.msra.mxu0 0
  %314 = vmatprep.subr.bf16.mxu0 0
  %315 = vmatpush1.bf16.msra.mxu0 0
  %316 = vmatprep.subr.bf16.mxu0 0
  %317 = vmatpush1.bf16.msra.mxu0 0
  %318 = vmatprep.subr.bf16.mxu0 %v253
  %319 = vmatpush1.bf16.msra.mxu0 %v252
  %320 = vmatprep.subr.bf16.mxu0 %v249
  %321 = vmatpush1.bf16.msra.mxu0 %v248
  %322 = vmatprep.subr.bf16.mxu0 0
  %323 = vmatpush2.bf16.msra.mxu0 0
  %324 = vmatprep.subr.bf16.mxu0 0
  %325 = vmatpush2.bf16.msra.mxu0 0
  %326 = vmatprep.subr.bf16.mxu0 0
  %327 = vmatpush2.bf16.msra.mxu0 0
  %328 = vmatprep.subr.bf16.mxu0 0
  %329 = vmatpush2.bf16.msra.mxu0 0
  %330 = vmatprep.subr.bf16.mxu0 0
  %331 = vmatpush2.bf16.msra.mxu0 0
  %332 = vmatprep.subr.bf16.mxu0 0
  %333 = vmatpush2.bf16.msra.mxu0 0
  %334 = vmatprep.subr.bf16.mxu0 0
  %335 = vmatpush2.bf16.msra.mxu0 0
  %336 = vmatprep.subr.bf16.mxu0 0
  %337 = vmatpush2.bf16.msra.mxu0 0
  %338 = vmatprep.mubr.bf16.mxu0 0
  %339 = vmatmul.mubr.bf16.gmra.mxu0 %v263
  %v340 = vpop.f32.mrf.mxu0
  %v341 = vadd.f32 %v210, %v340
  %v342 = vpop.f32.mrf.mxu0
  %v343 = vadd.f32 %v212, %v342
  %v344 = vpop.f32.mrf.mxu0
  %v345 = vpop.f32.mrf.mxu0
  %346 = vdwg.mxu0
  %s347 = scalar_lea.vmem %s0, 64
  %v348 = vld [vmem:[%s347] sm:$0xff]
  %v349 = vld [vmem:[%s347 + $0x8] sm:$0xff]
  %v350 = vld [vmem:[%s347 + $0x10] sm:$0xff]
  %v351 = vld [vmem:[%s347 + $0x18] sm:$0xff]
  %v352 = vsel %vm32, %v348, 0.0
  %v353 = vsel %vm32, %v349, 0.0
  %v354 = vadd.f32 %v352, %v353
  %v355 = vrot.slane %v354, 4
  %v356 = vadd.f32 %v354, %v355
  %v357 = vrot.slane %v356, 2
  %v358 = vadd.f32 %v356, %v357
  %v359 = vrot.slane %v358, 1
  %v360 = vadd.f32 %v358, %v359
  %v361 = vsel %vm32, %v350, 0.0
  %v362 = vsel %vm32, %v351, 0.0
  %v363 = vadd.f32 %v361, %v362
  %v364 = vrot.slane %v363, 4
  %v365 = vadd.f32 %v363, %v364
  %v366 = vrot.slane %v365, 2
  %v367 = vadd.f32 %v365, %v366
  %v368 = vrot.slane %v367, 1
  %v369 = vadd.f32 %v367, %v368
  %v370 = vpack.c.bf16 %v360, %v360
  %v371 = vpack.c.bf16 %v369, %v369
  %v372 = vld [vmem:[%s1 + $0x80] sm:$0xff]
  %v373 = vld [vmem:[%s1 + $0x88] sm:$0xff]
  %v374 = vld [vmem:[%s1 + $0x90] sm:$0xff]
  %v375 = vld [vmem:[%s1 + $0x98] sm:$0xff]
  %v376 = vld [vmem:[%s1 + $0xa0] sm:$0xff]
  %v377 = vld [vmem:[%s1 + $0xa8] sm:$0xff]
  %v378 = vld [vmem:[%s1 + $0xb0] sm:$0xff]
  %v379 = vld [vmem:[%s1 + $0xb8] sm:$0xff]
  %v382 = vunpack.c.l.b16 %v370
  %v383 = vunpack.c.l.b16 %v371
  %v384 = vsel %vm88, %v383, %v382
  %v385 = vpack.c.b16 %v384, %v384
  %v394 = vunpack.c.l.b16 %v372
  %v395 = vunpack.c.h.b16 %v372
  %v396 = vunpack.c.l.b16 %v373
  %v397 = vunpack.c.h.b16 %v373
  %v398 = vunpack.c.l.b16 %v374
  %v399 = vunpack.c.h.b16 %v374
  %v400 = vunpack.c.l.b16 %v375
  %v401 = vunpack.c.h.b16 %v375
  %v402 = vunpack.c.l.b16 %v376
  %v403 = vunpack.c.h.b16 %v376
  %v404 = vunpack.c.l.b16 %v377
  %v405 = vunpack.c.h.b16 %v377
  %v406 = vunpack.c.l.b16 %v378
  %v407 = vunpack.c.h.b16 %v378
  %v408 = vunpack.c.l.b16 %v379
  %v409 = vunpack.c.h.b16 %v379
  %v410 = vpack.c.b16 %v398, %v394
  %v411 = vpack.c.b16 %v399, %v395
  %v412 = vpack.c.b16 %v400, %v396
  %v413 = vpack.c.b16 %v401, %v397
  %v414 = vpack.c.b16 %v406, %v402
  %v415 = vpack.c.b16 %v407, %v403
  %v416 = vpack.c.b16 %v408, %v404
  %v417 = vpack.c.b16 %v409, %v405
  %v427 = vsel %vm32, %v385, 0
  %429 = vmatprep.subr.bf16.mxu0 0
  %430 = vmatpush1.bf16.msra.mxu0 0
  %431 = vmatprep.subr.bf16.mxu0 0
  %432 = vmatpush1.bf16.msra.mxu0 0
  %433 = vmatprep.subr.bf16.mxu0 0
  %434 = vmatpush1.bf16.msra.mxu0 0
  %435 = vmatprep.subr.bf16.mxu0 0
  %436 = vmatpush1.bf16.msra.mxu0 0
  %437 = vmatprep.subr.bf16.mxu0 0
  %438 = vmatpush1.bf16.msra.mxu0 0
  %439 = vmatprep.subr.bf16.mxu0 0
  %440 = vmatpush1.bf16.msra.mxu0 0
  %441 = vmatprep.subr.bf16.mxu0 %v415
  %442 = vmatpush1.bf16.msra.mxu0 %v414
  %443 = vmatprep.subr.bf16.mxu0 %v411
  %444 = vmatpush1.bf16.msra.mxu0 %v410
  %445 = vmatprep.subr.bf16.mxu0 0
  %446 = vmatpush2.bf16.msra.mxu0 0
  %447 = vmatprep.subr.bf16.mxu0 0
  %448 = vmatpush2.bf16.msra.mxu0 0
  %449 = vmatprep.subr.bf16.mxu0 0
  %450 = vmatpush2.bf16.msra.mxu0 0
  %451 = vmatprep.subr.bf16.mxu0 0
  %452 = vmatpush2.bf16.msra.mxu0 0
  %453 = vmatprep.subr.bf16.mxu0 0
  %454 = vmatpush2.bf16.msra.mxu0 0
  %455 = vmatprep.subr.bf16.mxu0 0
  %456 = vmatpush2.bf16.msra.mxu0 0
  %457 = vmatprep.subr.bf16.mxu0 0
  %458 = vmatpush2.bf16.msra.mxu0 0
  %459 = vmatprep.subr.bf16.mxu0 0
  %460 = vmatpush2.bf16.msra.mxu0 0
  %461 = vmatprep.mubr.bf16.mxu0 0
  %462 = vmatmul.mubr.bf16.gmra.mxu0 %v427
  %v463 = vpop.f32.mrf.mxu0
  %v464 = vadd.f32 0.0, %v463
  %v465 = vpop.f32.mrf.mxu0
  %v466 = vadd.f32 0.0, %v465
  %v467 = vpop.f32.mrf.mxu0
  %v468 = vpop.f32.mrf.mxu0
  %469 = vdwg.mxu0
  %470 = vmatprep.subr.bf16.mxu0 0
  %471 = vmatpush1.bf16.msra.mxu0 0
  %472 = vmatprep.subr.bf16.mxu0 0
  %473 = vmatpush1.bf16.msra.mxu0 0
  %474 = vmatprep.subr.bf16.mxu0 0
  %475 = vmatpush1.bf16.msra.mxu0 0
  %476 = vmatprep.subr.bf16.mxu0 0
  %477 = vmatpush1.bf16.msra.mxu0 0
  %478 = vmatprep.subr.bf16.mxu0 0
  %479 = vmatpush1.bf16.msra.mxu0 0
  %480 = vmatprep.subr.bf16.mxu0 0
  %481 = vmatpush1.bf16.msra.mxu0 0
  %482 = vmatprep.subr.bf16.mxu0 %v417
  %483 = vmatpush1.bf16.msra.mxu0 %v416
  %484 = vmatprep.subr.bf16.mxu0 %v413
  %485 = vmatpush1.bf16.msra.mxu0 %v412
  %486 = vmatprep.subr.bf16.mxu0 0
  %487 = vmatpush2.bf16.msra.mxu0 0
  %488 = vmatprep.subr.bf16.mxu0 0
  %489 = vmatpush2.bf16.msra.mxu0 0
  %490 = vmatprep.subr.bf16.mxu0 0
  %491 = vmatpush2.bf16.msra.mxu0 0
  %492 = vmatprep.subr.bf16.mxu0 0
  %493 = vmatpush2.bf16.msra.mxu0 0
  %494 = vmatprep.subr.bf16.mxu0 0
  %495 = vmatpush2.bf16.msra.mxu0 0
  %496 = vmatprep.subr.bf16.mxu0 0
  %497 = vmatpush2.bf16.msra.mxu0 0
  %498 = vmatprep.subr.bf16.mxu0 0
  %499 = vmatpush2.bf16.msra.mxu0 0
  %500 = vmatprep.subr.bf16.mxu0 0
  %501 = vmatpush2.bf16.msra.mxu0 0
  %502 = vmatprep.mubr.bf16.mxu0 0
  %503 = vmatmul.mubr.bf16.gmra.mxu0 %v427
  %v504 = vpop.f32.mrf.mxu0
  %v505 = vadd.f32 0.0, %v504
  %v506 = vpop.f32.mrf.mxu0
  %v507 = vadd.f32 0.0, %v506
  %v508 = vpop.f32.mrf.mxu0
  %v509 = vpop.f32.mrf.mxu0
  %510 = vdwg.mxu0
  %v511 = vadd.f32 %v300, %v464
  %v512 = vadd.f32 %v302, %v466
  %v513 = vadd.f32 %v341, %v505
  %v514 = vadd.f32 %v343, %v507
  %s515 = scalar_lea.vmem %s0, 96
  %v516 = vld [vmem:[%s515] sm:$0xff]
  %v517 = vld [vmem:[%s515 + $0x8] sm:$0xff]
  %v518 = vld [vmem:[%s515 + $0x10] sm:$0xff]
  %v519 = vld [vmem:[%s515 + $0x18] sm:$0xff]
  %v520 = vsel %vm32, %v516, 0.0
  %v521 = vsel %vm32, %v517, 0.0
  %v522 = vadd.f32 %v520, %v521
  %v523 = vrot.slane %v522, 4
  %v524 = vadd.f32 %v522, %v523
  %v525 = vrot.slane %v524, 2
  %v526 = vadd.f32 %v524, %v525
  %v527 = vrot.slane %v526, 1
  %v528 = vadd.f32 %v526, %v527
  %v529 = vsel %vm32, %v518, 0.0
  %v530 = vsel %vm32, %v519, 0.0
  %v531 = vadd.f32 %v529, %v530
  %v532 = vrot.slane %v531, 4
  %v533 = vadd.f32 %v531, %v532
  %v534 = vrot.slane %v533, 2
  %v535 = vadd.f32 %v533, %v534
  %v536 = vrot.slane %v535, 1
  %v537 = vadd.f32 %v535, %v536
  %v538 = vpack.c.bf16 %v528, %v528
  %v539 = vpack.c.bf16 %v537, %v537
  %v540 = vld [vmem:[%s1 + $0xc0] sm:$0xff]
  %v541 = vld [vmem:[%s1 + $0xc8] sm:$0xff]
  %v542 = vld [vmem:[%s1 + $0xd0] sm:$0xff]
  %v543 = vld [vmem:[%s1 + $0xd8] sm:$0xff]
  %v544 = vld [vmem:[%s1 + $0xe0] sm:$0xff]
  %v545 = vld [vmem:[%s1 + $0xe8] sm:$0xff]
  %v546 = vld [vmem:[%s1 + $0xf0] sm:$0xff]
  %v547 = vld [vmem:[%s1 + $0xf8] sm:$0xff]
  %v550 = vunpack.c.l.b16 %v538
  %v551 = vunpack.c.l.b16 %v539
  %v552 = vsel %vm88, %v551, %v550
  %v553 = vpack.c.b16 %v552, %v552
  %v562 = vunpack.c.l.b16 %v540
  %v563 = vunpack.c.h.b16 %v540
  %v564 = vunpack.c.l.b16 %v541
  %v565 = vunpack.c.h.b16 %v541
  %v566 = vunpack.c.l.b16 %v542
  %v567 = vunpack.c.h.b16 %v542
  %v568 = vunpack.c.l.b16 %v543
  %v569 = vunpack.c.h.b16 %v543
  %v570 = vunpack.c.l.b16 %v544
  %v571 = vunpack.c.h.b16 %v544
  %v572 = vunpack.c.l.b16 %v545
  %v573 = vunpack.c.h.b16 %v545
  %v574 = vunpack.c.l.b16 %v546
  %v575 = vunpack.c.h.b16 %v546
  %v576 = vunpack.c.l.b16 %v547
  %v577 = vunpack.c.h.b16 %v547
  %v578 = vpack.c.b16 %v566, %v562
  %v579 = vpack.c.b16 %v567, %v563
  %v580 = vpack.c.b16 %v568, %v564
  %v581 = vpack.c.b16 %v569, %v565
  %v582 = vpack.c.b16 %v574, %v570
  %v583 = vpack.c.b16 %v575, %v571
  %v584 = vpack.c.b16 %v576, %v572
  %v585 = vpack.c.b16 %v577, %v573
  %v595 = vsel %vm32, %v553, 0
  %597 = vmatprep.subr.bf16.mxu0 0
  %598 = vmatpush1.bf16.msra.mxu0 0
  %599 = vmatprep.subr.bf16.mxu0 0
  %600 = vmatpush1.bf16.msra.mxu0 0
  %601 = vmatprep.subr.bf16.mxu0 0
  %602 = vmatpush1.bf16.msra.mxu0 0
  %603 = vmatprep.subr.bf16.mxu0 0
  %604 = vmatpush1.bf16.msra.mxu0 0
  %605 = vmatprep.subr.bf16.mxu0 0
  %606 = vmatpush1.bf16.msra.mxu0 0
  %607 = vmatprep.subr.bf16.mxu0 0
  %608 = vmatpush1.bf16.msra.mxu0 0
  %609 = vmatprep.subr.bf16.mxu0 %v583
  %610 = vmatpush1.bf16.msra.mxu0 %v582
  %611 = vmatprep.subr.bf16.mxu0 %v579
  %612 = vmatpush1.bf16.msra.mxu0 %v578
  %613 = vmatprep.subr.bf16.mxu0 0
  %614 = vmatpush2.bf16.msra.mxu0 0
  %615 = vmatprep.subr.bf16.mxu0 0
  %616 = vmatpush2.bf16.msra.mxu0 0
  %617 = vmatprep.subr.bf16.mxu0 0
  %618 = vmatpush2.bf16.msra.mxu0 0
  %619 = vmatprep.subr.bf16.mxu0 0
  %620 = vmatpush2.bf16.msra.mxu0 0
  %621 = vmatprep.subr.bf16.mxu0 0
  %622 = vmatpush2.bf16.msra.mxu0 0
  %623 = vmatprep.subr.bf16.mxu0 0
  %624 = vmatpush2.bf16.msra.mxu0 0
  %625 = vmatprep.subr.bf16.mxu0 0
  %626 = vmatpush2.bf16.msra.mxu0 0
  %627 = vmatprep.subr.bf16.mxu0 0
  %628 = vmatpush2.bf16.msra.mxu0 0
  %629 = vmatprep.mubr.bf16.mxu0 0
  %630 = vmatmul.mubr.bf16.gmra.mxu0 %v595
  %v631 = vpop.f32.mrf.mxu0
  %v632 = vadd.f32 0.0, %v631
  %v633 = vpop.f32.mrf.mxu0
  %v634 = vadd.f32 0.0, %v633
  %v635 = vpop.f32.mrf.mxu0
  %v636 = vpop.f32.mrf.mxu0
  %637 = vdwg.mxu0
  %638 = vmatprep.subr.bf16.mxu0 0
  %639 = vmatpush1.bf16.msra.mxu0 0
  %640 = vmatprep.subr.bf16.mxu0 0
  %641 = vmatpush1.bf16.msra.mxu0 0
  %642 = vmatprep.subr.bf16.mxu0 0
  %643 = vmatpush1.bf16.msra.mxu0 0
  %644 = vmatprep.subr.bf16.mxu0 0
  %645 = vmatpush1.bf16.msra.mxu0 0
  %646 = vmatprep.subr.bf16.mxu0 0
  %647 = vmatpush1.bf16.msra.mxu0 0
  %648 = vmatprep.subr.bf16.mxu0 0
  %649 = vmatpush1.bf16.msra.mxu0 0
  %650 = vmatprep.subr.bf16.mxu0 %v585
  %651 = vmatpush1.bf16.msra.mxu0 %v584
  %652 = vmatprep.subr.bf16.mxu0 %v581
  %653 = vmatpush1.bf16.msra.mxu0 %v580
  %654 = vmatprep.subr.bf16.mxu0 0
  %655 = vmatpush2.bf16.msra.mxu0 0
  %656 = vmatprep.subr.bf16.mxu0 0
  %657 = vmatpush2.bf16.msra.mxu0 0
  %658 = vmatprep.subr.bf16.mxu0 0
  %659 = vmatpush2.bf16.msra.mxu0 0
  %660 = vmatprep.subr.bf16.mxu0 0
  %661 = vmatpush2.bf16.msra.mxu0 0
  %662 = vmatprep.subr.bf16.mxu0 0
  %663 = vmatpush2.bf16.msra.mxu0 0
  %664 = vmatprep.subr.bf16.mxu0 0
  %665 = vmatpush2.bf16.msra.mxu0 0
  %666 = vmatprep.subr.bf16.mxu0 0
  %667 = vmatpush2.bf16.msra.mxu0 0
  %668 = vmatprep.subr.bf16.mxu0 0
  %669 = vmatpush2.bf16.msra.mxu0 0
  %670 = vmatprep.mubr.bf16.mxu0 0
  %671 = vmatmul.mubr.bf16.gmra.mxu0 %v595
  %v672 = vpop.f32.mrf.mxu0
  %v673 = vadd.f32 0.0, %v672
  %v674 = vpop.f32.mrf.mxu0
  %v675 = vadd.f32 0.0, %v674
  %v676 = vpop.f32.mrf.mxu0
  %v677 = vpop.f32.mrf.mxu0
  %678 = vdwg.mxu0
  %v679 = vadd.f32 %v511, %v632
  %v680 = vadd.f32 %v512, %v634
  %v681 = vadd.f32 %v513, %v673
  %v682 = vadd.f32 %v514, %v675
  %v683 = vld [vmem:[%s2] sm:$0xf]
  %v684 = vld [vmem:[%s3] sm:$0xf]
  %vm685 = vcmask 1041408
  %v686 = vsel %vm685, %v679, 0.0
  %v687 = vsel %vm685, %v680, 0.0
  %v688 = vadd.f32 %v686, %v687
  %v689 = vsel %vm685, %v681, 0.0
  %v690 = vadd.f32 %v688, %v689
  %v691 = vsel %vm685, %v682, 0.0
  %v692 = vadd.f32 %v690, %v691
  %693 = vadd.xlane.f32.xlu0 %v692
  %v694 = vpop.xlane.xlu0 %693
  %v695 = vrcp.pop 512.0
  %v696 = vmul.f32 %v694, %v695
  %v697 = vsub.f32 %v679, %v696
  %v698 = vsub.f32 %v680, %v696
  %v699 = vsub.f32 %v681, %v696
  %v700 = vsub.f32 %v682, %v696
  %v701 = vmul.f32 %v697, %v697
  %v702 = vmul.f32 %v698, %v698
  %v703 = vmul.f32 %v699, %v699
  %v704 = vmul.f32 %v700, %v700
  %v705 = vsel %vm685, %v701, 0.0
  %v706 = vsel %vm685, %v702, 0.0
  %v707 = vadd.f32 %v705, %v706
  %v708 = vsel %vm685, %v703, 0.0
  %v709 = vadd.f32 %v707, %v708
  %v710 = vsel %vm685, %v704, 0.0
  %v711 = vadd.f32 %v709, %v710
  %712 = vadd.xlane.f32.xlu0 %v711
  %v713 = vpop.xlane.xlu0 %712
  %v714 = vmul.f32 %v713, %v695
  %v715 = vadd.f32 %v714, 1e-05
  %v716 = vrsqrt.pop %v715
  %v717 = vmul.f32 %v697, %v716
  %v718 = vmul.f32 %v698, %v716
  %v719 = vmul.f32 %v699, %v716
  %v720 = vmul.f32 %v700, %v716
  %v722 = vlaneseq
  %v723 = vshrl.u32 %v722, 7
  %v724 = vsub.s32 0, %v723
  %v725 = vrot.slane %v683, %v724
  %v726 = vlaneseq
  %v727 = vshrl.u32 %v726, 7
  %v728 = vsub.s32 1, %v727
  %v729 = vrot.slane %v683, %v728
  %v730 = vlaneseq
  %v731 = vshrl.u32 %v730, 7
  %v732 = vsub.s32 2, %v731
  %v733 = vrot.slane %v683, %v732
  %v734 = vlaneseq
  %v735 = vshrl.u32 %v734, 7
  %v736 = vsub.s32 3, %v735
  %v737 = vrot.slane %v683, %v736
  %v742 = vmul.f32 %v717, %v725
  %v743 = vmul.f32 %v718, %v729
  %v744 = vmul.f32 %v719, %v733
  %v745 = vmul.f32 %v720, %v737
  %v747 = vlaneseq
  %v748 = vshrl.u32 %v747, 7
  %v749 = vsub.s32 0, %v748
  %v750 = vrot.slane %v684, %v749
  %v751 = vlaneseq
  %v752 = vshrl.u32 %v751, 7
  %v753 = vsub.s32 1, %v752
  %v754 = vrot.slane %v684, %v753
  %v755 = vlaneseq
  %v756 = vshrl.u32 %v755, 7
  %v757 = vsub.s32 2, %v756
  %v758 = vrot.slane %v684, %v757
  %v759 = vlaneseq
  %v760 = vshrl.u32 %v759, 7
  %v761 = vsub.s32 3, %v760
  %v762 = vrot.slane %v684, %v761
  %v767 = vadd.f32 %v742, %v750
  %v768 = vadd.f32 %v743, %v754
  %v769 = vadd.f32 %v744, %v758
  %v770 = vadd.f32 %v745, %v762
  %v771 = vmax.f32 %v767, 0.0
  %v772 = vmax.f32 %v768, 0.0
  %v773 = vmax.f32 %v769, 0.0
  %v774 = vmax.f32 %v770, 0.0
  %v775 = vpack.c.bf16 %v771, %v771
  %v776 = vpack.c.bf16 %v772, %v772
  %v777 = vpack.c.bf16 %v773, %v773
  %v778 = vpack.c.bf16 %v774, %v774
  %v779 = vld [vmem:[%s4] sm:$0xf]
  %v780 = vld [vmem:[%s4 + $0x4] sm:$0xf]
  %v781 = vld [vmem:[%s4 + $0x8] sm:$0xf]
  %v782 = vld [vmem:[%s4 + $0xc] sm:$0xf]
  %v783 = vld [vmem:[%s4 + $0x10] sm:$0xf]
  %v784 = vld [vmem:[%s4 + $0x14] sm:$0xf]
  %v785 = vld [vmem:[%s4 + $0x18] sm:$0xf]
  %v786 = vld [vmem:[%s4 + $0x1c] sm:$0xf]
  %v787 = vld [vmem:[%s4 + $0x20] sm:$0xf]
  %v788 = vld [vmem:[%s4 + $0x24] sm:$0xf]
  %v789 = vld [vmem:[%s4 + $0x28] sm:$0xf]
  %v790 = vld [vmem:[%s4 + $0x2c] sm:$0xf]
  %v791 = vld [vmem:[%s4 + $0x30] sm:$0xf]
  %v792 = vld [vmem:[%s4 + $0x34] sm:$0xf]
  %v793 = vld [vmem:[%s4 + $0x38] sm:$0xf]
  %v794 = vld [vmem:[%s4 + $0x3c] sm:$0xf]
  %v795 = vld [vmem:[%s4 + $0x40] sm:$0xf]
  %v796 = vld [vmem:[%s4 + $0x44] sm:$0xf]
  %v797 = vld [vmem:[%s4 + $0x48] sm:$0xf]
  %v798 = vld [vmem:[%s4 + $0x4c] sm:$0xf]
  %v799 = vld [vmem:[%s4 + $0x50] sm:$0xf]
  %v800 = vld [vmem:[%s4 + $0x54] sm:$0xf]
  %v801 = vld [vmem:[%s4 + $0x58] sm:$0xf]
  %v802 = vld [vmem:[%s4 + $0x5c] sm:$0xf]
  %v803 = vld [vmem:[%s4 + $0x60] sm:$0xf]
  %v804 = vld [vmem:[%s4 + $0x64] sm:$0xf]
  %v805 = vld [vmem:[%s4 + $0x68] sm:$0xf]
  %v806 = vld [vmem:[%s4 + $0x6c] sm:$0xf]
  %v807 = vld [vmem:[%s4 + $0x70] sm:$0xf]
  %v808 = vld [vmem:[%s4 + $0x74] sm:$0xf]
  %v809 = vld [vmem:[%s4 + $0x78] sm:$0xf]
  %v810 = vld [vmem:[%s4 + $0x7c] sm:$0xf]
  %v811 = vld [vmem:[%s4 + $0x80] sm:$0xf]
  %v812 = vld [vmem:[%s4 + $0x84] sm:$0xf]
  %v813 = vld [vmem:[%s4 + $0x88] sm:$0xf]
  %v814 = vld [vmem:[%s4 + $0x8c] sm:$0xf]
  %v815 = vld [vmem:[%s4 + $0x90] sm:$0xf]
  %v816 = vld [vmem:[%s4 + $0x94] sm:$0xf]
  %v817 = vld [vmem:[%s4 + $0x98] sm:$0xf]
  %v818 = vld [vmem:[%s4 + $0x9c] sm:$0xf]
  %v819 = vld [vmem:[%s4 + $0xa0] sm:$0xf]
  %v820 = vld [vmem:[%s4 + $0xa4] sm:$0xf]
  %v821 = vld [vmem:[%s4 + $0xa8] sm:$0xf]
  %v822 = vld [vmem:[%s4 + $0xac] sm:$0xf]
  %v823 = vld [vmem:[%s4 + $0xb0] sm:$0xf]
  %v824 = vld [vmem:[%s4 + $0xb4] sm:$0xf]
  %v825 = vld [vmem:[%s4 + $0xb8] sm:$0xf]
  %v826 = vld [vmem:[%s4 + $0xbc] sm:$0xf]
  %v827 = vld [vmem:[%s4 + $0xc0] sm:$0xf]
  %v828 = vld [vmem:[%s4 + $0xc4] sm:$0xf]
  %v829 = vld [vmem:[%s4 + $0xc8] sm:$0xf]
  %v830 = vld [vmem:[%s4 + $0xcc] sm:$0xf]
  %v831 = vld [vmem:[%s4 + $0xd0] sm:$0xf]
  %v832 = vld [vmem:[%s4 + $0xd4] sm:$0xf]
  %v833 = vld [vmem:[%s4 + $0xd8] sm:$0xf]
  %v834 = vld [vmem:[%s4 + $0xdc] sm:$0xf]
  %v835 = vld [vmem:[%s4 + $0xe0] sm:$0xf]
  %v836 = vld [vmem:[%s4 + $0xe4] sm:$0xf]
  %v837 = vld [vmem:[%s4 + $0xe8] sm:$0xf]
  %v838 = vld [vmem:[%s4 + $0xec] sm:$0xf]
  %v839 = vld [vmem:[%s4 + $0xf0] sm:$0xf]
  %v840 = vld [vmem:[%s4 + $0xf4] sm:$0xf]
  %v841 = vld [vmem:[%s4 + $0xf8] sm:$0xf]
  %v842 = vld [vmem:[%s4 + $0xfc] sm:$0xf]
  %v907 = vunpack.c.l.b16 %v779
  %v908 = vunpack.c.l.b16 %v780
  %v909 = vunpack.c.l.b16 %v781
  %v910 = vunpack.c.l.b16 %v782
  %v911 = vunpack.c.l.b16 %v783
  %v912 = vunpack.c.l.b16 %v784
  %v913 = vunpack.c.l.b16 %v785
  %v914 = vunpack.c.l.b16 %v786
  %v915 = vunpack.c.l.b16 %v787
  %v916 = vunpack.c.l.b16 %v788
  %v917 = vunpack.c.l.b16 %v789
  %v918 = vunpack.c.l.b16 %v790
  %v919 = vunpack.c.l.b16 %v791
  %v920 = vunpack.c.l.b16 %v792
  %v921 = vunpack.c.l.b16 %v793
  %v922 = vunpack.c.l.b16 %v794
  %v923 = vunpack.c.l.b16 %v795
  %v924 = vunpack.c.l.b16 %v796
  %v925 = vunpack.c.l.b16 %v797
  %v926 = vunpack.c.l.b16 %v798
  %v927 = vunpack.c.l.b16 %v799
  %v928 = vunpack.c.l.b16 %v800
  %v929 = vunpack.c.l.b16 %v801
  %v930 = vunpack.c.l.b16 %v802
  %v931 = vunpack.c.l.b16 %v803
  %v932 = vunpack.c.l.b16 %v804
  %v933 = vunpack.c.l.b16 %v805
  %v934 = vunpack.c.l.b16 %v806
  %v935 = vunpack.c.l.b16 %v807
  %v936 = vunpack.c.l.b16 %v808
  %v937 = vunpack.c.l.b16 %v809
  %v938 = vunpack.c.l.b16 %v810
  %v939 = vunpack.c.l.b16 %v811
  %v940 = vunpack.c.l.b16 %v812
  %v941 = vunpack.c.l.b16 %v813
  %v942 = vunpack.c.l.b16 %v814
  %v943 = vunpack.c.l.b16 %v815
  %v944 = vunpack.c.l.b16 %v816
  %v945 = vunpack.c.l.b16 %v817
  %v946 = vunpack.c.l.b16 %v818
  %v947 = vunpack.c.l.b16 %v819
  %v948 = vunpack.c.l.b16 %v820
  %v949 = vunpack.c.l.b16 %v821
  %v950 = vunpack.c.l.b16 %v822
  %v951 = vunpack.c.l.b16 %v823
  %v952 = vunpack.c.l.b16 %v824
  %v953 = vunpack.c.l.b16 %v825
  %v954 = vunpack.c.l.b16 %v826
  %v955 = vunpack.c.l.b16 %v827
  %v956 = vunpack.c.l.b16 %v828
  %v957 = vunpack.c.l.b16 %v829
  %v958 = vunpack.c.l.b16 %v830
  %v959 = vunpack.c.l.b16 %v831
  %v960 = vunpack.c.l.b16 %v832
  %v961 = vunpack.c.l.b16 %v833
  %v962 = vunpack.c.l.b16 %v834
  %v963 = vunpack.c.l.b16 %v835
  %v964 = vunpack.c.l.b16 %v836
  %v965 = vunpack.c.l.b16 %v837
  %v966 = vunpack.c.l.b16 %v838
  %v967 = vunpack.c.l.b16 %v839
  %v968 = vunpack.c.l.b16 %v840
  %v969 = vunpack.c.l.b16 %v841
  %v970 = vunpack.c.l.b16 %v842
  %v971 = vpack.c.b16 %v908, %v907
  %v972 = vpack.c.b16 %v910, %v909
  %v973 = vpack.c.b16 %v912, %v911
  %v974 = vpack.c.b16 %v914, %v913
  %v975 = vpack.c.b16 %v916, %v915
  %v976 = vpack.c.b16 %v918, %v917
  %v977 = vpack.c.b16 %v920, %v919
  %v978 = vpack.c.b16 %v922, %v921
  %v979 = vpack.c.b16 %v924, %v923
  %v980 = vpack.c.b16 %v926, %v925
  %v981 = vpack.c.b16 %v928, %v927
  %v982 = vpack.c.b16 %v930, %v929
  %v983 = vpack.c.b16 %v932, %v931
  %v984 = vpack.c.b16 %v934, %v933
  %v985 = vpack.c.b16 %v936, %v935
  %v986 = vpack.c.b16 %v938, %v937
  %v987 = vpack.c.b16 %v940, %v939
  %v988 = vpack.c.b16 %v942, %v941
  %v989 = vpack.c.b16 %v944, %v943
  %v990 = vpack.c.b16 %v946, %v945
  %v991 = vpack.c.b16 %v948, %v947
  %v992 = vpack.c.b16 %v950, %v949
  %v993 = vpack.c.b16 %v952, %v951
  %v994 = vpack.c.b16 %v954, %v953
  %v995 = vpack.c.b16 %v956, %v955
  %v996 = vpack.c.b16 %v958, %v957
  %v997 = vpack.c.b16 %v960, %v959
  %v998 = vpack.c.b16 %v962, %v961
  %v999 = vpack.c.b16 %v964, %v963
  %v1000 = vpack.c.b16 %v966, %v965
  %v1001 = vpack.c.b16 %v968, %v967
  %v1002 = vpack.c.b16 %v970, %v969
  %1035 = vmatprep.subr.bf16.mxu0 0
  %1036 = vmatpush1.bf16.msra.mxu0 %v978
  %1037 = vmatprep.subr.bf16.mxu0 0
  %1038 = vmatpush1.bf16.msra.mxu0 %v977
  %1039 = vmatprep.subr.bf16.mxu0 0
  %1040 = vmatpush1.bf16.msra.mxu0 %v976
  %1041 = vmatprep.subr.bf16.mxu0 0
  %1042 = vmatpush1.bf16.msra.mxu0 %v975
  %1043 = vmatprep.subr.bf16.mxu0 0
  %1044 = vmatpush1.bf16.msra.mxu0 %v974
  %1045 = vmatprep.subr.bf16.mxu0 0
  %1046 = vmatpush1.bf16.msra.mxu0 %v973
  %1047 = vmatprep.subr.bf16.mxu0 0
  %1048 = vmatpush1.bf16.msra.mxu0 %v972
  %1049 = vmatprep.subr.bf16.mxu0 0
  %1050 = vmatpush1.bf16.msra.mxu0 %v971
  %1051 = vmatprep.subr.bf16.mxu0 0
  %1052 = vmatpush2.bf16.msra.mxu0 %v986
  %1053 = vmatprep.subr.bf16.mxu0 0
  %1054 = vmatpush2.bf16.msra.mxu0 %v985
  %1055 = vmatprep.subr.bf16.mxu0 0
  %1056 = vmatpush2.bf16.msra.mxu0 %v984
  %1057 = vmatprep.subr.bf16.mxu0 0
  %1058 = vmatpush2.bf16.msra.mxu0 %v983
  %1059 = vmatprep.subr.bf16.mxu0 0
  %1060 = vmatpush2.bf16.msra.mxu0 %v982
  %1061 = vmatprep.subr.bf16.mxu0 0
  %1062 = vmatpush2.bf16.msra.mxu0 %v981
  %1063 = vmatprep.subr.bf16.mxu0 0
  %1064 = vmatpush2.bf16.msra.mxu0 %v980
  %1065 = vmatprep.subr.bf16.mxu0 0
  %1066 = vmatpush2.bf16.msra.mxu0 %v979
  %1067 = vmatprep.mubr.bf16.mxu0 %v776
  %1068 = vmatmul.mubr.bf16.gmra.mxu0 %v775
  %v1069 = vpop.f32.mrf.mxu0
  %v1070 = vadd.f32 0.0, %v1069
  %v1071 = vpop.f32.mrf.mxu0
  %v1072 = vpop.f32.mrf.mxu0
  %v1073 = vpop.f32.mrf.mxu0
  %1074 = vdwg.mxu0
  %1075 = vmatprep.subr.bf16.mxu0 0
  %1076 = vmatpush1.bf16.msra.mxu0 %v994
  %1077 = vmatprep.subr.bf16.mxu0 0
  %1078 = vmatpush1.bf16.msra.mxu0 %v993
  %1079 = vmatprep.subr.bf16.mxu0 0
  %1080 = vmatpush1.bf16.msra.mxu0 %v992
  %1081 = vmatprep.subr.bf16.mxu0 0
  %1082 = vmatpush1.bf16.msra.mxu0 %v991
  %1083 = vmatprep.subr.bf16.mxu0 0
  %1084 = vmatpush1.bf16.msra.mxu0 %v990
  %1085 = vmatprep.subr.bf16.mxu0 0
  %1086 = vmatpush1.bf16.msra.mxu0 %v989
  %1087 = vmatprep.subr.bf16.mxu0 0
  %1088 = vmatpush1.bf16.msra.mxu0 %v988
  %1089 = vmatprep.subr.bf16.mxu0 0
  %1090 = vmatpush1.bf16.msra.mxu0 %v987
  %1091 = vmatprep.subr.bf16.mxu0 0
  %1092 = vmatpush2.bf16.msra.mxu0 %v1002
  %1093 = vmatprep.subr.bf16.mxu0 0
  %1094 = vmatpush2.bf16.msra.mxu0 %v1001
  %1095 = vmatprep.subr.bf16.mxu0 0
  %1096 = vmatpush2.bf16.msra.mxu0 %v1000
  %1097 = vmatprep.subr.bf16.mxu0 0
  %1098 = vmatpush2.bf16.msra.mxu0 %v999
  %1099 = vmatprep.subr.bf16.mxu0 0
  %1100 = vmatpush2.bf16.msra.mxu0 %v998
  %1101 = vmatprep.subr.bf16.mxu0 0
  %1102 = vmatpush2.bf16.msra.mxu0 %v997
  %1103 = vmatprep.subr.bf16.mxu0 0
  %1104 = vmatpush2.bf16.msra.mxu0 %v996
  %1105 = vmatprep.subr.bf16.mxu0 0
  %1106 = vmatpush2.bf16.msra.mxu0 %v995
  %1107 = vmatprep.mubr.bf16.mxu0 %v778
  %1108 = vmatmul.mubr.bf16.gmra.mxu0 %v777
  %v1109 = vpop.f32.mrf.mxu0
  %v1110 = vadd.f32 %v1070, %v1109
  %v1111 = vpop.f32.mrf.mxu0
  %v1112 = vpop.f32.mrf.mxu0
  %v1113 = vpop.f32.mrf.mxu0
  %1114 = vdwg.mxu0
  %v1115 = vld [vmem:[%s5] sm:$0x1]
  %v1116 = vld [vmem:[%s6] sm:$0x1]
  %v1117 = vsel %vm685, %v1110, 0.0
  %1118 = vadd.xlane.f32.xlu0 %v1117
  %v1119 = vpop.xlane.xlu0 %1118
  %v1120 = vrcp.pop 128.0
  %v1121 = vmul.f32 %v1119, %v1120
  %v1122 = vsub.f32 %v1110, %v1121
  %v1123 = vmul.f32 %v1122, %v1122
  %v1124 = vsel %vm685, %v1123, 0.0
  %1125 = vadd.xlane.f32.xlu0 %v1124
  %v1126 = vpop.xlane.xlu0 %1125
  %v1127 = vmul.f32 %v1126, %v1120
  %v1128 = vadd.f32 %v1127, 1e-05
  %v1129 = vrsqrt.pop %v1128
  %v1130 = vmul.f32 %v1122, %v1129
  %v1132 = vlaneseq
  %v1133 = vshrl.u32 %v1132, 7
  %v1134 = vsub.s32 0, %v1133
  %v1135 = vrot.slane %v1115, %v1134
  %v1137 = vmul.f32 %v1130, %v1135
  %v1139 = vlaneseq
  %v1140 = vshrl.u32 %v1139, 7
  %v1141 = vsub.s32 0, %v1140
  %v1142 = vrot.slane %v1116, %v1141
  %v1144 = vadd.f32 %v1137, %v1142
  %v1145 = vmax.f32 %v1144, 0.0
  %v1146 = vld [vmem:[%s7] sm:$0xff]
  %v1147 = vld [vmem:[%s7 + $0x8] sm:$0xff]
  %v1148 = vld [vmem:[%s7 + $0x10] sm:$0xff]
  %v1149 = vld [vmem:[%s7 + $0x18] sm:$0xff]
  %v1150 = vld [vmem:[%s7 + $0x20] sm:$0xff]
  %v1151 = vld [vmem:[%s7 + $0x28] sm:$0xff]
  %v1152 = vld [vmem:[%s7 + $0x30] sm:$0xff]
  %v1153 = vld [vmem:[%s7 + $0x38] sm:$0xff]
  %v1154 = vld [vmem:[%s7 + $0x40] sm:$0xff]
  %v1155 = vld [vmem:[%s7 + $0x48] sm:$0xff]
  %v1156 = vld [vmem:[%s7 + $0x50] sm:$0xff]
  %v1157 = vld [vmem:[%s7 + $0x58] sm:$0xff]
  %v1158 = vld [vmem:[%s7 + $0x60] sm:$0xff]
  %v1159 = vld [vmem:[%s7 + $0x68] sm:$0xff]
  %v1160 = vld [vmem:[%s7 + $0x70] sm:$0xff]
  %v1161 = vld [vmem:[%s7 + $0x78] sm:$0xff]
  %1162 = vmatprep.subr.mxu0 0.0
  %1163 = vmatpush1.msra.mxu0 %v1161
  %1164 = vmatprep.subr.mxu0 0.0
  %1165 = vmatpush1.msra.mxu0 %v1160
  %1166 = vmatprep.subr.mxu0 0.0
  %1167 = vmatpush1.msra.mxu0 %v1159
  %1168 = vmatprep.subr.mxu0 0.0
  %1169 = vmatpush1.msra.mxu0 %v1158
  %1170 = vmatprep.subr.mxu0 0.0
  %1171 = vmatpush1.msra.mxu0 %v1157
  %1172 = vmatprep.subr.mxu0 0.0
  %1173 = vmatpush1.msra.mxu0 %v1156
  %1174 = vmatprep.subr.mxu0 0.0
  %1175 = vmatpush1.msra.mxu0 %v1155
  %1176 = vmatprep.subr.mxu0 0.0
  %1177 = vmatpush1.msra.mxu0 %v1154
  %1178 = vmatprep.subr.mxu0 0.0
  %1179 = vmatpush1.msra.mxu0 %v1153
  %1180 = vmatprep.subr.mxu0 0.0
  %1181 = vmatpush1.msra.mxu0 %v1152
  %1182 = vmatprep.subr.mxu0 0.0
  %1183 = vmatpush1.msra.mxu0 %v1151
  %1184 = vmatprep.subr.mxu0 0.0
  %1185 = vmatpush1.msra.mxu0 %v1150
  %1186 = vmatprep.subr.mxu0 0.0
  %1187 = vmatpush1.msra.mxu0 %v1149
  %1188 = vmatprep.subr.mxu0 0.0
  %1189 = vmatpush1.msra.mxu0 %v1148
  %1190 = vmatprep.subr.mxu0 0.0
  %1191 = vmatpush1.msra.mxu0 %v1147
  %1192 = vmatprep.subr.mxu0 0.0
  %1193 = vmatpush1.msra.mxu0 %v1146
  %1194 = vmatprep.subr.mxu0 0.0
  %1195 = vmatpush2.msra.mxu0 0.0
  %1196 = vmatprep.subr.mxu0 0.0
  %1197 = vmatpush2.msra.mxu0 0.0
  %1198 = vmatprep.subr.mxu0 0.0
  %1199 = vmatpush2.msra.mxu0 0.0
  %1200 = vmatprep.subr.mxu0 0.0
  %1201 = vmatpush2.msra.mxu0 0.0
  %1202 = vmatprep.subr.mxu0 0.0
  %1203 = vmatpush2.msra.mxu0 0.0
  %1204 = vmatprep.subr.mxu0 0.0
  %1205 = vmatpush2.msra.mxu0 0.0
  %1206 = vmatprep.subr.mxu0 0.0
  %1207 = vmatpush2.msra.mxu0 0.0
  %1208 = vmatprep.subr.mxu0 0.0
  %1209 = vmatpush2.msra.mxu0 0.0
  %1210 = vmatprep.subr.mxu0 0.0
  %1211 = vmatpush2.msra.mxu0 0.0
  %1212 = vmatprep.subr.mxu0 0.0
  %1213 = vmatpush2.msra.mxu0 0.0
  %1214 = vmatprep.subr.mxu0 0.0
  %1215 = vmatpush2.msra.mxu0 0.0
  %1216 = vmatprep.subr.mxu0 0.0
  %1217 = vmatpush2.msra.mxu0 0.0
  %1218 = vmatprep.subr.mxu0 0.0
  %1219 = vmatpush2.msra.mxu0 0.0
  %1220 = vmatprep.subr.mxu0 0.0
  %1221 = vmatpush2.msra.mxu0 0.0
  %1222 = vmatprep.subr.mxu0 0.0
  %1223 = vmatpush2.msra.mxu0 0.0
  %1224 = vmatprep.subr.mxu0 0.0
  %1225 = vmatpush2.msra.mxu0 0.0
  %1226 = vmatprep.mubr.f32.mxu0 0.0
  %1227 = vmatmul.mubr.f32.gmra.mxu0 %v1145
  %v1228 = vpop.f32.mrf.mxu0
  %v1229 = vadd.f32 0.0, %v1228
  %v1230 = vpop.f32.mrf.mxu0
  %1231 = vdwg.mxu0
  %vm1232 = vcmask 1024
  %1233 = vst.msk [vmem:[%s8] sm:$0x3] %vm1232, %v1229
  // Predicated region
  $region34: #{mrbdta_forward.5} parent=0 // pred_check
    _
  $region35: #{mrbdta_forward.5} parent=0 // pred_check_branch
    %1235 = sbr.rel (0) target = $region37
  $region36: #{mrbdta_forward.5} parent=0 // pred_region
    _
  $region37: #{mrbdta_forward.5} parent=0 // pred_fallthru
    _
  // Predicated region
  $region38: #{mrbdta_forward.5} parent=0 // pred_check
    _
  $region39: #{mrbdta_forward.5} parent=0 // pred_check_branch
    %1237 = sbr.rel (0) target = $region41
  $region40: #{mrbdta_forward.5} parent=0 // pred_region
    _
  $region41: #{mrbdta_forward.5} parent=0 // pred_fallthru
    _

</llo_original>
